<compile_context>
chip_gen: v7x
topology: tpu7x:2x2x1
jax: 0.10.0
libtpu: 0.0.40
codegen_flags: <defaults>
</compile_context>

<pallas_src>
import functools

import jax
import jax.numpy as jnp
from jax import lax
from jax.experimental import pallas as pl
from jax.experimental.pallas import tpu as pltpu


def _fold_upsample_into_conv_weights(weight_oihw):
    """Fold the 2x nearest upsample into the 3x3 conv weights.

    Returns wbig of shape (12, Cin, 2*Cout) indexed [a*6 + r*3 + u, ci, b*Cout+co]:
      a : output row phase (even/odd output row)
      r : row inside the 2-row input window            (padded row = p + a + r)
      u : column inside the 3-col input window         (padded col = q + u)
      b : output column phase, packed onto the output channel axis
    """
    Cout, Cin = int(weight_oihw.shape[0]), int(weight_oihw.shape[1])
    w = jnp.transpose(weight_oihw, (2, 3, 1, 0))  # (ky, kx, Cin, Cout)
    # Which original 3x3 taps (ky or kx) feed output phase `a` from window
    # position `r` (identical table for columns: phase b, window col s).
    taps = {(0, 0): (0,), (0, 1): (1, 2), (1, 0): (0, 1), (1, 1): (2,)}
    zeros = jnp.zeros((Cin, Cout), w.dtype)

    a_blocks = []
    for a in range(2):
        r_blocks = []
        for r in range(2):
            u_blocks = []
            for u in range(3):
                b_blocks = []
                for b in range(2):
                    s = u - b          # window column seen by output col phase b
                    if 0 <= s <= 1:
                        m = zeros
                        for ky in taps[(a, r)]:
                            for kx in taps[(b, s)]:
                                m = m + w[ky, kx]
                    else:
                        m = zeros
                    b_blocks.append(m)
                u_blocks.append(jnp.stack(b_blocks, axis=1))   # (Cin, 2, Cout)
            r_blocks.append(jnp.stack(u_blocks, axis=0))       # (3, Cin, 2, Cout)
        a_blocks.append(jnp.stack(r_blocks, axis=0))           # (2, 3, Cin, 2, Cout)
    wbig = jnp.stack(a_blocks, axis=0)                         # (2, 2, 3, Cin, 2, Cout)
    return wbig.reshape(12, Cin, 2 * Cout)


def _fused_upsample_conv3x3_kernel(xm_ref, xh_ref, w_ref, b_ref, o_ref, xwin_ref,
                                   *, cast_bf16):
    """Fused 2x-nearest-upsample + 3x3/pad=1 conv on one row tile.

    xm_ref:   (1, TH, W+2, Cin)      main rows of the zero-padded input tile
    xh_ref:   (1, 2,  W+2, Cin)      2-row bottom halo
    w_ref:    (12, Cin, 2*Cout)      phase-folded weights [a*6+r*3+u, ci, b*Cout+co]
    b_ref:    (1, 2*Cout)            bias, tiled over the 2 column phases
    o_ref:    (1, TH, 2, W, 2*Cout)  output, phase-packed (free reshape outside)
    xwin_ref: VMEM scratch (TH+2, W+2, Cin)
    """
    TH, Wp, Cin = xm_ref.shape[1], xm_ref.shape[2], xm_ref.shape[3]
    W = Wp - 2
    Cout2 = o_ref.shape[4]

    # Assemble the (TH+2)-row padded window (main rows + halo) in VMEM scratch.
    xwin_ref[0:TH] = xm_ref[0]
    xwin_ref[TH:TH + 2] = xh_ref[0]

    bias = b_ref[...]  # (1, 2*Cout) -> broadcasts over rows

    # NOTE: when Cin is a multiple of 128 the 6 taps per phase could be folded
    # into a single K = 6*Cin contraction (im2col on the lane axis); kept as
    # per-tap K=Cin matmuls here because lane-axis concatenation of channel
    # counts that are not 128-aligned does not lower on TPU.
    for a in range(2):                       # output row phase (even / odd rows)
        acc = jnp.zeros((TH * W, Cout2), jnp.float32)
        for r in range(2):                   # window row
            for u in range(3):               # window column
                tap = xwin_ref[a + r:a + r + TH, u:u + W, :]     # (TH, W, Cin)
                tap2d = tap.reshape(TH * W, Cin)
                if cast_bf16:
                    tap2d = tap2d.astype(jnp.bfloat16)
                acc = acc + jnp.dot(tap2d, w_ref[a * 6 + r * 3 + u],
                                    preferred_element_type=jnp.float32)
        y = (acc + bias).reshape(TH, W, Cout2)
        o_ref[0, :, a, :, :] = y.astype(o_ref.dtype)


def _choose_row_tile(H, W, Cin, Cout, budget_bytes=24 * 1024 * 1024):
    """Pick an even row tile TH dividing H_eff, keeping per-step VMEM bounded."""
    H_eff = H if H % 2 == 0 else H + 1   # need an even tile for the halo BlockSpec

    def est(th):  # rough per-step VMEM (f32, incl. double buffering + scratch)
        return 4 * th * W * (17 * Cin + 10 * Cout)

    cands = sorted((t for t in range(2, H_eff + 1, 2) if H_eff % t == 0),
                   reverse=True)
    th = cands[-1]
    for t in cands:
        if est(t) <= budget_bytes:
            th = t
            break
    return H_eff, th


def upsample_nhwc(x_nhwc, weight_oihw=None, bias=None, *, use_conv=True,
                  row_tile=None, use_bf16_matmul=False):
    """2x nearest upsample (+ optional fused 3x3 conv, pad=1).  NHWC in / out."""
    N, H, W, C = x_nhwc.shape

    if not use_conv:
        # Pure data movement, no compute to fuse with -> leave to XLA.
        return jnp.repeat(jnp.repeat(x_nhwc, 2, axis=1), 2, axis=2)

    Cout = int(weight_oihw.shape[0])
    assert weight_oihw.shape == (Cout, C, 3, 3)
    assert bias is not None and bias.shape == (Cout,)

    # ---- row tiling ---------------------------------------------------------
    if row_tile is None:
        H_eff, TH = _choose_row_tile(H, W, C, Cout)
    else:
        TH = int(row_tile)
        assert TH % 2 == 0 and H % TH == 0, "row_tile must be even and divide H"
        H_eff = H
    NRB = H_eff // TH
    Wp = W + 2

    # Zero pad the ORIGINAL input: 1 row/col conv halo on each side, plus extra
    # zero rows at the bottom if H was rounded up to an even H_eff.
    xp = jnp.pad(x_nhwc, ((0, 0), (1, 1 + (H_eff - H)), (1, 1), (0, 0)))

    wbig = _fold_upsample_into_conv_weights(weight_oihw)
    if use_bf16_matmul:
        wbig = wbig.astype(jnp.bfloat16)
    b2 = jnp.tile(bias.astype(jnp.float32), 2).reshape(1, 2 * Cout)

    kernel = functools.partial(_fused_upsample_conv3x3_kernel,
                               cast_bf16=use_bf16_matmul)

    out = pl.pallas_call(
        kernel,
        out_shape=jax.ShapeDtypeStruct((N, H_eff, 2, W, 2 * Cout), x_nhwc.dtype),
        grid_spec=pltpu.PrefetchScalarGridSpec(
            num_scalar_prefetch=0,
            grid=(N, NRB),
            in_specs=[
                # TH-row main window of the padded input.
                pl.BlockSpec((1, TH, Wp, C), lambda n, rb: (n, rb, 0, 0)),
                # 2-row bottom halo (TH is even -> halo start is block-aligned).
                pl.BlockSpec((1, 2, Wp, C),
                             lambda n, rb: (n, (rb + 1) * (TH // 2), 0, 0)),
                pl.BlockSpec((12, C, 2 * Cout), lambda n, rb: (0, 0, 0)),
                pl.BlockSpec((1, 2 * Cout), lambda n, rb: (0, 0)),
            ],
            out_specs=pl.BlockSpec((1, TH, 2, W, 2 * Cout),
                                   lambda n, rb: (n, rb, 0, 0, 0)),
            scratch_shapes=[pltpu.VMEM((TH + 2, Wp, C), x_nhwc.dtype)],
        ),
        compiler_params=pltpu.CompilerParams(
            dimension_semantics=("parallel", "parallel"),
            vmem_limit_bytes=48 * 1024 * 1024),
    )(xp, xp, wbig, b2)

    # Free row-major reshapes: (H_eff, 2) -> 2*H_eff and (W, 2*Cout) -> (2W, Cout).
    out = out.reshape(N, 2 * H_eff, 2 * W, Cout)
    if H_eff != H:
        out = out[:, :2 * H]
    return out


def upsample_forward(x_nchw, weight_oihw=None, bias=None, *, use_conv=True, dims=2,
                     row_tile=None, use_bf16_matmul=False):
    """PyTorch-layout (NCHW) adapter around the NHWC-native Pallas kernel."""
    assert dims == 2, "only dims=2 implemented"  # TODO(synk): dims=1 / dims=3 (inner-two) variants
    x_nhwc = jnp.transpose(x_nchw, (0, 2, 3, 1))
    out = upsample_nhwc(x_nhwc, weight_oihw, bias, use_conv=use_conv,
                        row_tile=row_tile, use_bf16_matmul=use_bf16_matmul)
    return jnp.transpose(out, (0, 3, 1, 2))


if __name__ == "__main__":
    key = jax.random.PRNGKey(0)
    kx, kw, kb = jax.random.split(key, 3)

    N, C, H, W = 2, 4, 16, 16
    Cout = C                                   # out_channels defaults to channels
    x = jax.random.normal(kx, (N, C, H, W), jnp.float32)

    # deterministic Conv2d-style init: U(-1/sqrt(fan_in), 1/sqrt(fan_in))
    fan_in = C * 3 * 3
    bound = 1.0 / (fan_in ** 0.5)
    weight = jax.random.uniform(kw, (Cout, C, 3, 3), jnp.float32, -bound, bound)
    bias = jax.random.uniform(kb, (Cout,), jnp.float32, -bound, bound)

    # pure-JAX reference (same semantics as F.interpolate(nearest, 2x) + Conv2d)
    up_ref = jnp.repeat(jnp.repeat(x, 2, axis=2), 2, axis=3)
    ref = lax.conv_general_dilated(
        up_ref, weight, window_strides=(1, 1), padding=((1, 1), (1, 1)),
        dimension_numbers=("NCHW", "OIHW", "NCHW")) + bias[None, :, None, None]

    # 1) single row-block per image (TH == H)
    out = jax.block_until_ready(upsample_forward(x, weight, bias))
    assert out.shape == (N, Cout, 2 * H, 2 * W), out.shape
    err = float(jnp.max(jnp.abs(out - ref)))
    assert jnp.allclose(out, ref, atol=2e-3, rtol=2e-3), f"max abs err={err}"

    # 2) multi-row-block path (exercises the 2-row halo BlockSpec), grid (N, 4)
    out_tiled = jax.block_until_ready(
        upsample_forward(x, weight, bias, row_tile=4))
    err2 = float(jnp.max(jnp.abs(out_tiled - ref)))
    assert jnp.allclose(out_tiled, ref, atol=2e-3, rtol=2e-3), f"max abs err={err2}"

    # 3) upsample-only path (use_conv=False)
    out_nc = jax.block_until_ready(upsample_forward(x, None, None, use_conv=False))
    assert out_nc.shape == (N, C, 2 * H, 2 * W), out_nc.shape
    assert jnp.allclose(out_nc, up_ref)

    print("KERNEL_OK")
</pallas_src>

<mosaic_0001>
module attributes {stable_mosaic.version = 11 : i64} {
  func.func @_fused_upsample_conv3x3_kernel(%arg0: i32, %arg1: i32, %arg2: memref<1x16x18x4xf32, #tpu.memory_space<vmem>>, %arg3: memref<1x2x18x4xf32, #tpu.memory_space<vmem>>, %arg4: memref<12x4x8xf32, #tpu.memory_space<vmem>>, %arg5: memref<1x8xf32, #tpu.memory_space<vmem>>, %arg6: memref<1x16x2x16x8xf32, #tpu.memory_space<vmem>>, %arg7: memref<18x18x4xf32, #tpu.memory_space<vmem>>) attributes {dimension_semantics = [#tpu.dimension_semantics<parallel>, #tpu.dimension_semantics<parallel>], iteration_bounds = array<i64: 2, 1>, scalar_prefetch = 0 : i64, scratch_operands = 1 : i64, tpu.core_type = #tpu.core_type<tc>, window_params = [{transform_indices = @transform_0, window_bounds = array<i64: 1, 16, 18, 4>}, {transform_indices = @transform_1, window_bounds = array<i64: 1, 2, 18, 4>}, {pipeline_mode = #tpu.pipeline_mode<synchronous>, transform_indices = @transform_2, window_bounds = array<i64: 12, 4, 8>}, {pipeline_mode = #tpu.pipeline_mode<synchronous>, transform_indices = @transform_3, window_bounds = array<i64: 1, 8>}, {transform_indices = @transform_4, window_bounds = array<i64: 1, 16, 2, 16, 8>}]} {
    %c0 = arith.constant 0 : index
    %c0_0 = arith.constant 0 : index
    %c0_1 = arith.constant 0 : index
    %c0_2 = arith.constant 0 : index
    %0 = vector.load %arg2[%c0, %c0_0, %c0_1, %c0_2] : memref<1x16x18x4xf32, #tpu.memory_space<vmem>>, vector<1x16x18x4xf32>
    %1 = vector.shape_cast %0 : vector<1x16x18x4xf32> to vector<16x18x4xf32>
    %c0_3 = arith.constant 0 : index
    %c0_4 = arith.constant 0 : index
    %c0_5 = arith.constant 0 : index
    %2 = vector.load %arg7[%c0_3, %c0_4, %c0_5] : memref<18x18x4xf32, #tpu.memory_space<vmem>>, vector<16x18x4xf32>
    tpu.vector_store %arg7[%c0_3, %c0_4, %c0_5], %1 {strides = array<i32>} : memref<18x18x4xf32, #tpu.memory_space<vmem>>, vector<16x18x4xf32>,
    %c0_6 = arith.constant 0 : index
    %c0_7 = arith.constant 0 : index
    %c0_8 = arith.constant 0 : index
    %c0_9 = arith.constant 0 : index
    %3 = vector.load %arg3[%c0_6, %c0_7, %c0_8, %c0_9] : memref<1x2x18x4xf32, #tpu.memory_space<vmem>>, vector<1x2x18x4xf32>
    %4 = vector.shape_cast %3 : vector<1x2x18x4xf32> to vector<2x18x4xf32>
    %c16 = arith.constant 16 : index
    %c0_10 = arith.constant 0 : index
    %c0_11 = arith.constant 0 : index
    %5 = vector.load %arg7[%c16, %c0_10, %c0_11] : memref<18x18x4xf32, #tpu.memory_space<vmem>>, vector<2x18x4xf32>
    tpu.vector_store %arg7[%c16, %c0_10, %c0_11], %4 {strides = array<i32>} : memref<18x18x4xf32, #tpu.memory_space<vmem>>, vector<2x18x4xf32>,
    %c0_12 = arith.constant 0 : index
    %c0_13 = arith.constant 0 : index
    %6 = vector.load %arg5[%c0_12, %c0_13] : memref<1x8xf32, #tpu.memory_space<vmem>>, vector<1x8xf32>
    %cst = arith.constant 0.000000e+00 : f32
    %7 = vector.broadcast %cst : f32 to vector<256x8xf32>
    %c0_14 = arith.constant 0 : index
    %c0_15 = arith.constant 0 : index
    %c0_16 = arith.constant 0 : index
    %8 = vector.load %arg7[%c0_14, %c0_15, %c0_16] : memref<18x18x4xf32, #tpu.memory_space<vmem>>, vector<16x16x4xf32>
    %9 = vector.shape_cast %8 : vector<16x16x4xf32> to vector<256x4xf32>
    %c0_17 = arith.constant 0 : index
    %c0_18 = arith.constant 0 : index
    %c0_19 = arith.constant 0 : index
    %10 = vector.load %arg4[%c0_17, %c0_18, %c0_19] : memref<12x4x8xf32, #tpu.memory_space<vmem>>, vector<1x4x8xf32>
    %11 = vector.shape_cast %10 : vector<1x4x8xf32> to vector<4x8xf32>
    %cst_20 = arith.constant dense<0.000000e+00> : vector<256x8xf32>
    %12 = tpu.matmul %9, %11, %cst_20 {dimension_numbers = #tpu.dot_dimension_numbers<[1], [0], [0], [1], [0, 0, 1, 1], [], []>} : vector<256x4xf32>, vector<4x8xf32>, vector<256x8xf32> -> vector<256x8xf32>
    %13 = arith.addf %7, %12 : vector<256x8xf32>
    %c0_21 = arith.constant 0 : index
    %c1 = arith.constant 1 : index
    %c0_22 = arith.constant 0 : index
    %14 = vector.load %arg7[%c0_21, %c1, %c0_22] : memref<18x18x4xf32, #tpu.memory_space<vmem>>, vector<16x16x4xf32>
    %15 = vector.shape_cast %14 : vector<16x16x4xf32> to vector<256x4xf32>
    %c1_23 = arith.constant 1 : index
    %c0_24 = arith.constant 0 : index
    %c0_25 = arith.constant 0 : index
    %16 = vector.load %arg4[%c1_23, %c0_24, %c0_25] : memref<12x4x8xf32, #tpu.memory_space<vmem>>, vector<1x4x8xf32>
    %17 = vector.shape_cast %16 : vector<1x4x8xf32> to vector<4x8xf32>
    %cst_26 = arith.constant dense<0.000000e+00> : vector<256x8xf32>
    %18 = tpu.matmul %15, %17, %cst_26 {dimension_numbers = #tpu.dot_dimension_numbers<[1], [0], [0], [1], [0, 0, 1, 1], [], []>} : vector<256x4xf32>, vector<4x8xf32>, vector<256x8xf32> -> vector<256x8xf32>
    %19 = arith.addf %13, %18 : vector<256x8xf32>
    %c0_27 = arith.constant 0 : index
    %c2 = arith.constant 2 : index
    %c0_28 = arith.constant 0 : index
    %20 = vector.load %arg7[%c0_27, %c2, %c0_28] : memref<18x18x4xf32, #tpu.memory_space<vmem>>, vector<16x16x4xf32>
    %21 = vector.shape_cast %20 : vector<16x16x4xf32> to vector<256x4xf32>
    %c2_29 = arith.constant 2 : index
    %c0_30 = arith.constant 0 : index
    %c0_31 = arith.constant 0 : index
    %22 = vector.load %arg4[%c2_29, %c0_30, %c0_31] : memref<12x4x8xf32, #tpu.memory_space<vmem>>, vector<1x4x8xf32>
    %23 = vector.shape_cast %22 : vector<1x4x8xf32> to vector<4x8xf32>
    %cst_32 = arith.constant dense<0.000000e+00> : vector<256x8xf32>
    %24 = tpu.matmul %21, %23, %cst_32 {dimension_numbers = #tpu.dot_dimension_numbers<[1], [0], [0], [1], [0, 0, 1, 1], [], []>} : vector<256x4xf32>, vector<4x8xf32>, vector<256x8xf32> -> vector<256x8xf32>
    %25 = arith.addf %19, %24 : vector<256x8xf32>
    %c1_33 = arith.constant 1 : index
    %c0_34 = arith.constant 0 : index
    %c0_35 = arith.constant 0 : index
    %26 = vector.load %arg7[%c1_33, %c0_34, %c0_35] : memref<18x18x4xf32, #tpu.memory_space<vmem>>, vector<16x16x4xf32>
    %27 = vector.shape_cast %26 : vector<16x16x4xf32> to vector<256x4xf32>
    %c3 = arith.constant 3 : index
    %c0_36 = arith.constant 0 : index
    %c0_37 = arith.constant 0 : index
    %28 = vector.load %arg4[%c3, %c0_36, %c0_37] : memref<12x4x8xf32, #tpu.memory_space<vmem>>, vector<1x4x8xf32>
    %29 = vector.shape_cast %28 : vector<1x4x8xf32> to vector<4x8xf32>
    %cst_38 = arith.constant dense<0.000000e+00> : vector<256x8xf32>
    %30 = tpu.matmul %27, %29, %cst_38 {dimension_numbers = #tpu.dot_dimension_numbers<[1], [0], [0], [1], [0, 0, 1, 1], [], []>} : vector<256x4xf32>, vector<4x8xf32>, vector<256x8xf32> -> vector<256x8xf32>
    %31 = arith.addf %25, %30 : vector<256x8xf32>
    %c1_39 = arith.constant 1 : index
    %c1_40 = arith.constant 1 : index
    %c0_41 = arith.constant 0 : index
    %32 = vector.load %arg7[%c1_39, %c1_40, %c0_41] : memref<18x18x4xf32, #tpu.memory_space<vmem>>, vector<16x16x4xf32>
    %33 = vector.shape_cast %32 : vector<16x16x4xf32> to vector<256x4xf32>
    %c4 = arith.constant 4 : index
    %c0_42 = arith.constant 0 : index
    %c0_43 = arith.constant 0 : index
    %34 = vector.load %arg4[%c4, %c0_42, %c0_43] : memref<12x4x8xf32, #tpu.memory_space<vmem>>, vector<1x4x8xf32>
    %35 = vector.shape_cast %34 : vector<1x4x8xf32> to vector<4x8xf32>
    %cst_44 = arith.constant dense<0.000000e+00> : vector<256x8xf32>
    %36 = tpu.matmul %33, %35, %cst_44 {dimension_numbers = #tpu.dot_dimension_numbers<[1], [0], [0], [1], [0, 0, 1, 1], [], []>} : vector<256x4xf32>, vector<4x8xf32>, vector<256x8xf32> -> vector<256x8xf32>
    %37 = arith.addf %31, %36 : vector<256x8xf32>
    %c1_45 = arith.constant 1 : index
    %c2_46 = arith.constant 2 : index
    %c0_47 = arith.constant 0 : index
    %38 = vector.load %arg7[%c1_45, %c2_46, %c0_47] : memref<18x18x4xf32, #tpu.memory_space<vmem>>, vector<16x16x4xf32>
    %39 = vector.shape_cast %38 : vector<16x16x4xf32> to vector<256x4xf32>
    %c5 = arith.constant 5 : index
    %c0_48 = arith.constant 0 : index
    %c0_49 = arith.constant 0 : index
    %40 = vector.load %arg4[%c5, %c0_48, %c0_49] : memref<12x4x8xf32, #tpu.memory_space<vmem>>, vector<1x4x8xf32>
    %41 = vector.shape_cast %40 : vector<1x4x8xf32> to vector<4x8xf32>
    %cst_50 = arith.constant dense<0.000000e+00> : vector<256x8xf32>
    %42 = tpu.matmul %39, %41, %cst_50 {dimension_numbers = #tpu.dot_dimension_numbers<[1], [0], [0], [1], [0, 0, 1, 1], [], []>} : vector<256x4xf32>, vector<4x8xf32>, vector<256x8xf32> -> vector<256x8xf32>
    %43 = arith.addf %37, %42 : vector<256x8xf32>
    %44 = vector.broadcast %6 : vector<1x8xf32> to vector<256x8xf32>
    %45 = arith.addf %43, %44 : vector<256x8xf32>
    %46 = vector.shape_cast %45 : vector<256x8xf32> to vector<16x16x8xf32>
    %c0_51 = arith.constant 0 : index
    %c0_52 = arith.constant 0 : index
    %c0_53 = arith.constant 0 : index
    %c0_54 = arith.constant 0 : index
    %c0_55 = arith.constant 0 : index
    %47 = vector.load %arg6[%c0_51, %c0_52, %c0_53, %c0_54, %c0_55] : memref<1x16x2x16x8xf32, #tpu.memory_space<vmem>>, vector<1x16x1x16x8xf32>
    %48 = vector.shape_cast %47 : vector<1x16x1x16x8xf32> to vector<16x16x8xf32>
    %49 = vector.shape_cast %46 : vector<16x16x8xf32> to vector<1x16x1x16x8xf32>
    tpu.vector_store %arg6[%c0_51, %c0_52, %c0_53, %c0_54, %c0_55], %49 {strides = array<i32>} : memref<1x16x2x16x8xf32, #tpu.memory_space<vmem>>, vector<1x16x1x16x8xf32>,
    %cst_56 = arith.constant 0.000000e+00 : f32
    %50 = vector.broadcast %cst_56 : f32 to vector<256x8xf32>
    %c1_57 = arith.constant 1 : index
    %c0_58 = arith.constant 0 : index
    %c0_59 = arith.constant 0 : index
    %51 = vector.load %arg7[%c1_57, %c0_58, %c0_59] : memref<18x18x4xf32, #tpu.memory_space<vmem>>, vector<16x16x4xf32>
    %52 = vector.shape_cast %51 : vector<16x16x4xf32> to vector<256x4xf32>
    %c6 = arith.constant 6 : index
    %c0_60 = arith.constant 0 : index
    %c0_61 = arith.constant 0 : index
    %53 = vector.load %arg4[%c6, %c0_60, %c0_61] : memref<12x4x8xf32, #tpu.memory_space<vmem>>, vector<1x4x8xf32>
    %54 = vector.shape_cast %53 : vector<1x4x8xf32> to vector<4x8xf32>
    %cst_62 = arith.constant dense<0.000000e+00> : vector<256x8xf32>
    %55 = tpu.matmul %52, %54, %cst_62 {dimension_numbers = #tpu.dot_dimension_numbers<[1], [0], [0], [1], [0, 0, 1, 1], [], []>} : vector<256x4xf32>, vector<4x8xf32>, vector<256x8xf32> -> vector<256x8xf32>
    %56 = arith.addf %50, %55 : vector<256x8xf32>
    %c1_63 = arith.constant 1 : index
    %c1_64 = arith.constant 1 : index
    %c0_65 = arith.constant 0 : index
    %57 = vector.load %arg7[%c1_63, %c1_64, %c0_65] : memref<18x18x4xf32, #tpu.memory_space<vmem>>, vector<16x16x4xf32>
    %58 = vector.shape_cast %57 : vector<16x16x4xf32> to vector<256x4xf32>
    %c7 = arith.constant 7 : index
    %c0_66 = arith.constant 0 : index
    %c0_67 = arith.constant 0 : index
    %59 = vector.load %arg4[%c7, %c0_66, %c0_67] : memref<12x4x8xf32, #tpu.memory_space<vmem>>, vector<1x4x8xf32>
    %60 = vector.shape_cast %59 : vector<1x4x8xf32> to vector<4x8xf32>
    %cst_68 = arith.constant dense<0.000000e+00> : vector<256x8xf32>
    %61 = tpu.matmul %58, %60, %cst_68 {dimension_numbers = #tpu.dot_dimension_numbers<[1], [0], [0], [1], [0, 0, 1, 1], [], []>} : vector<256x4xf32>, vector<4x8xf32>, vector<256x8xf32> -> vector<256x8xf32>
    %62 = arith.addf %56, %61 : vector<256x8xf32>
    %c1_69 = arith.constant 1 : index
    %c2_70 = arith.constant 2 : index
    %c0_71 = arith.constant 0 : index
    %63 = vector.load %arg7[%c1_69, %c2_70, %c0_71] : memref<18x18x4xf32, #tpu.memory_space<vmem>>, vector<16x16x4xf32>
    %64 = vector.shape_cast %63 : vector<16x16x4xf32> to vector<256x4xf32>
    %c8 = arith.constant 8 : index
    %c0_72 = arith.constant 0 : index
    %c0_73 = arith.constant 0 : index
    %65 = vector.load %arg4[%c8, %c0_72, %c0_73] : memref<12x4x8xf32, #tpu.memory_space<vmem>>, vector<1x4x8xf32>
    %66 = vector.shape_cast %65 : vector<1x4x8xf32> to vector<4x8xf32>
    %cst_74 = arith.constant dense<0.000000e+00> : vector<256x8xf32>
    %67 = tpu.matmul %64, %66, %cst_74 {dimension_numbers = #tpu.dot_dimension_numbers<[1], [0], [0], [1], [0, 0, 1, 1], [], []>} : vector<256x4xf32>, vector<4x8xf32>, vector<256x8xf32> -> vector<256x8xf32>
    %68 = arith.addf %62, %67 : vector<256x8xf32>
    %c2_75 = arith.constant 2 : index
    %c0_76 = arith.constant 0 : index
    %c0_77 = arith.constant 0 : index
    %69 = vector.load %arg7[%c2_75, %c0_76, %c0_77] : memref<18x18x4xf32, #tpu.memory_space<vmem>>, vector<16x16x4xf32>
    %70 = vector.shape_cast %69 : vector<16x16x4xf32> to vector<256x4xf32>
    %c9 = arith.constant 9 : index
    %c0_78 = arith.constant 0 : index
    %c0_79 = arith.constant 0 : index
    %71 = vector.load %arg4[%c9, %c0_78, %c0_79] : memref<12x4x8xf32, #tpu.memory_space<vmem>>, vector<1x4x8xf32>
    %72 = vector.shape_cast %71 : vector<1x4x8xf32> to vector<4x8xf32>
    %cst_80 = arith.constant dense<0.000000e+00> : vector<256x8xf32>
    %73 = tpu.matmul %70, %72, %cst_80 {dimension_numbers = #tpu.dot_dimension_numbers<[1], [0], [0], [1], [0, 0, 1, 1], [], []>} : vector<256x4xf32>, vector<4x8xf32>, vector<256x8xf32> -> vector<256x8xf32>
    %74 = arith.addf %68, %73 : vector<256x8xf32>
    %c2_81 = arith.constant 2 : index
    %c1_82 = arith.constant 1 : index
    %c0_83 = arith.constant 0 : index
    %75 = vector.load %arg7[%c2_81, %c1_82, %c0_83] : memref<18x18x4xf32, #tpu.memory_space<vmem>>, vector<16x16x4xf32>
    %76 = vector.shape_cast %75 : vector<16x16x4xf32> to vector<256x4xf32>
    %c10 = arith.constant 10 : index
    %c0_84 = arith.constant 0 : index
    %c0_85 = arith.constant 0 : index
    %77 = vector.load %arg4[%c10, %c0_84, %c0_85] : memref<12x4x8xf32, #tpu.memory_space<vmem>>, vector<1x4x8xf32>
    %78 = vector.shape_cast %77 : vector<1x4x8xf32> to vector<4x8xf32>
    %cst_86 = arith.constant dense<0.000000e+00> : vector<256x8xf32>
    %79 = tpu.matmul %76, %78, %cst_86 {dimension_numbers = #tpu.dot_dimension_numbers<[1], [0], [0], [1], [0, 0, 1, 1], [], []>} : vector<256x4xf32>, vector<4x8xf32>, vector<256x8xf32> -> vector<256x8xf32>
    %80 = arith.addf %74, %79 : vector<256x8xf32>
    %c2_87 = arith.constant 2 : index
    %c2_88 = arith.constant 2 : index
    %c0_89 = arith.constant 0 : index
    %81 = vector.load %arg7[%c2_87, %c2_88, %c0_89] : memref<18x18x4xf32, #tpu.memory_space<vmem>>, vector<16x16x4xf32>
    %82 = vector.shape_cast %81 : vector<16x16x4xf32> to vector<256x4xf32>
    %c11 = arith.constant 11 : index
    %c0_90 = arith.constant 0 : index
    %c0_91 = arith.constant 0 : index
    %83 = vector.load %arg4[%c11, %c0_90, %c0_91] : memref<12x4x8xf32, #tpu.memory_space<vmem>>, vector<1x4x8xf32>
    %84 = vector.shape_cast %83 : vector<1x4x8xf32> to vector<4x8xf32>
    %cst_92 = arith.constant dense<0.000000e+00> : vector<256x8xf32>
    %85 = tpu.matmul %82, %84, %cst_92 {dimension_numbers = #tpu.dot_dimension_numbers<[1], [0], [0], [1], [0, 0, 1, 1], [], []>} : vector<256x4xf32>, vector<4x8xf32>, vector<256x8xf32> -> vector<256x8xf32>
    %86 = arith.addf %80, %85 : vector<256x8xf32>
    %87 = vector.broadcast %6 : vector<1x8xf32> to vector<256x8xf32>
    %88 = arith.addf %86, %87 : vector<256x8xf32>
    %89 = vector.shape_cast %88 : vector<256x8xf32> to vector<16x16x8xf32>
    %c0_93 = arith.constant 0 : index
    %c0_94 = arith.constant 0 : index
    %c1_95 = arith.constant 1 : index
    %c0_96 = arith.constant 0 : index
    %c0_97 = arith.constant 0 : index
    %90 = vector.load %arg6[%c0_93, %c0_94, %c1_95, %c0_96, %c0_97] : memref<1x16x2x16x8xf32, #tpu.memory_space<vmem>>, vector<1x16x1x16x8xf32>
    %91 = vector.shape_cast %90 : vector<1x16x1x16x8xf32> to vector<16x16x8xf32>
    %92 = vector.shape_cast %89 : vector<16x16x8xf32> to vector<1x16x1x16x8xf32>
    tpu.vector_store %arg6[%c0_93, %c0_94, %c1_95, %c0_96, %c0_97], %92 {strides = array<i32>} : memref<1x16x2x16x8xf32, #tpu.memory_space<vmem>>, vector<1x16x1x16x8xf32>,
    return
  }
  func.func @transform_0(%arg0: i32, %arg1: i32) -> (i32, i32, i32, i32) {
    %c0_i32 = arith.constant 0 : i32
    %c0_i32_0 = arith.constant 0 : i32
    %c0_i32_1 = arith.constant 0 : i32
    return %arg0, %arg1, %c0_i32, %c0_i32_0 : i32, i32, i32, i32
  }
  func.func @transform_1(%arg0: i32, %arg1: i32) -> (i32, i32, i32, i32) {
    %c1_i32 = arith.constant 1 : i32
    %0 = arith.addi %arg1, %c1_i32 : i32
    %c8_i32 = arith.constant 8 : i32
    %1 = arith.muli %0, %c8_i32 : i32
    %c0_i32 = arith.constant 0 : i32
    %c0_i32_0 = arith.constant 0 : i32
    %c0_i32_1 = arith.constant 0 : i32
    return %arg0, %1, %c0_i32, %c0_i32_0 : i32, i32, i32, i32
  }
  func.func @transform_2(%arg0: i32, %arg1: i32) -> (i32, i32, i32) {
    %c0_i32 = arith.constant 0 : i32
    %c0_i32_0 = arith.constant 0 : i32
    %c0_i32_1 = arith.constant 0 : i32
    %c0_i32_2 = arith.constant 0 : i32
    return %c0_i32, %c0_i32_0, %c0_i32_1 : i32, i32, i32
  }
  func.func @transform_3(%arg0: i32, %arg1: i32) -> (i32, i32) {
    %c0_i32 = arith.constant 0 : i32
    %c0_i32_0 = arith.constant 0 : i32
    %c0_i32_1 = arith.constant 0 : i32
    return %c0_i32, %c0_i32_0 : i32, i32
  }
  func.func @transform_4(%arg0: i32, %arg1: i32) -> (i32, i32, i32, i32, i32) {
    %c0_i32 = arith.constant 0 : i32
    %c0_i32_0 = arith.constant 0 : i32
    %c0_i32_1 = arith.constant 0 : i32
    %c0_i32_2 = arith.constant 0 : i32
    return %arg0, %arg1, %c0_i32, %c0_i32_0, %c0_i32_1 : i32, i32, i32, i32, i32
  }
}

</mosaic_0001>

<llo_original>
// kernel: tpu_custom_call.1
$region0: #{tpu_custom_call.1}
  #allocation0 [shape = 'u32[]', space=smem, size = 0x4, offset = 0x4, fixed_abs, tag = 'smem constant byte address 0x4 - core index']
  #allocation1 [shape = 'u32[144,128]{1,0:T(1,128)}', space=vmem, size = 0x12000, scoped, tag = 'internal scratch']
  #allocation2 [shape = 'f32[18,18,4]{2,1,0:T(8,128)}', space=vmem, size = 0x36000, scoped, tag = 'scratch operand']
  %s0 = inlined_call_operand.vmem [shape: f32[2,18,18,4], index: 0, kind: input, shape index: {}]
  %s1 = inlined_call_operand.vmem [shape: f32[2,18,18,4], index: 1, kind: input, shape index: {}]
  %s2 = inlined_call_operand.vmem [shape: f32[12,4,8], index: 2, kind: input, shape index: {}]
  %s3 = inlined_call_operand.vmem [shape: f32[1,8], index: 3, kind: input, shape index: {}]
  %s4 = inlined_call_operand.vmem [shape: f32[2,16,2,16,8], index: 4, kind: output, shape index: {}]
  %s5 = sld [smem:[#allocation0]]
  $region49: #{tpu_custom_call.1} parent=0
    _
  %s7 = ssub.s32 1, %s5
  %s8 = scalar_select 0, %s7, %s5
  loop: start=0, step=1, limit=4
  $region2: #{tpu_custom_call.1} parent=0 // loop_pre_header
    _
  $region3: #{tpu_custom_call.1} parent=0 // loop_header
    %s10 = sphi 0, %s14
    %p11 = scmp.ge.s32.totalorder %s10, 4
    %s17 = sphi 0, %s29
    %s18 = sphi 0, %s25
    %s19 = sphi 0, %s17
    %s20 = sphi 0, %s18
    %s21 = sphi 0, %s19
    %s22 = sphi 0, %s20
    %s34 = sphi 0, %s36
    %s37 = sphi 0, %s34
    %s38 = sphi 0, %s37
    %s54 = sphi 0, %s38
    %s66 = sphi 0, %s68
    %s69 = sphi 0, %s66
    %s70 = sphi 0, %s69
    %s86 = sphi 0, %s70
    %s90 = sphi 0, %s90
    %s92 = sphi 0, %s90
    %s93 = sphi 0, %s92
    %s107 = sphi 0, %s93
    %s111 = sphi 0, %s111
    %s113 = sphi 0, %s111
    %s114 = sphi 0, %s113
    %s128 = sphi 0, %s114
    %s136 = sphi 0, %s138
    %s139 = sphi 0, %s136
    %s140 = sphi 0, %s139
    %s156 = sphi 0, %s140
  $region4: #{tpu_custom_call.1} parent=0 // loop_header_branch
    %13 = sbr.rel (%p11) target = $region8
  $region5: #{tpu_custom_call.1} parent=0 // loop_body
    %s15 = ssub.s32 %s10, 1
    %s16 = ssub.s32 %s10, 2
    %s23 = sadd.s32 1, %s18
    %p24 = scmp.ge.s32.totalorder %s23, 1
    %s25 = scalar_select %p24, 0, %s23
    %s26 = sadd.s32 1, %s17
    %s27 = scalar_select %p24, %s26, %s17
    %p28 = scmp.ge.s32.totalorder %s27, 2
    %s29 = scalar_select %p28, 0, %s27
    %s30 = ssub.s32 %s17, %s29
    %s31 = ssub.s32 %s18, %s25
    %s32 = sor.u32 %s30, %s31
    %p33 = scmp.eq.s32.totalorder %s32, 0
    %s35 = sadd.s32 %s34, 1
    %s36 = scalar_select %p33, %s34, %s35
    %p39 = pneg %p33
    %p40 = scmp.eq.s32.totalorder %s10, 1
    %p41 = por %p39, %p40
    %p42 = scmp.ne.s32.totalorder %s34, %s37
    %p43 = scmp.eq.s32.totalorder %s10, 0
    %p44 = por %p42, %p43
    %p45 = scmp.ne.s32.totalorder %s34, %s37
    %p46 = scmp.eq.s32.totalorder %s15, 1
    %p47 = por %p45, %p46
    %p48 = scmp.ne.s32.totalorder %s37, %s38
    %p49 = scmp.eq.s32.totalorder %s15, 0
    %p50 = por %p48, %p49
    %p51 = scmp.ne.s32.totalorder %s37, %s38
    %p52 = scmp.eq.s32.totalorder %s16, 1
    %p53 = por %p51, %p52
    %p55 = scmp.ne.s32.totalorder %s38, %s54
    %p56 = scmp.eq.s32.totalorder %s16, 0
    %p57 = por %p55, %p56
    %s58 = sadd.s32 %s18, 1
    %s59 = smul.u32 %s58, 8
    %s60 = sadd.s32 %s25, 1
    %s61 = smul.u32 %s60, 8
    %s62 = ssub.s32 %s17, %s29
    %s63 = ssub.s32 %s59, %s61
    %s64 = sor.u32 %s62, %s63
    %p65 = scmp.eq.s32.totalorder %s64, 0
    %s67 = sadd.s32 %s66, 1
    %s68 = scalar_select %p65, %s66, %s67
    %p71 = pneg %p65
    %p72 = scmp.eq.s32.totalorder %s10, 1
    %p73 = por %p71, %p72
    %p74 = scmp.ne.s32.totalorder %s66, %s69
    %p75 = scmp.eq.s32.totalorder %s10, 0
    %p76 = por %p74, %p75
    %p77 = scmp.ne.s32.totalorder %s66, %s69
    %p78 = scmp.eq.s32.totalorder %s15, 1
    %p79 = por %p77, %p78
    %p80 = scmp.ne.s32.totalorder %s69, %s70
    %p81 = scmp.eq.s32.totalorder %s15, 0
    %p82 = por %p80, %p81
    %p83 = scmp.ne.s32.totalorder %s69, %s70
    %p84 = scmp.eq.s32.totalorder %s16, 1
    %p85 = por %p83, %p84
    %p87 = scmp.ne.s32.totalorder %s70, %s86
    %p88 = scmp.eq.s32.totalorder %s16, 0
    %p89 = por %p87, %p88
    %s91 = sadd.s32 %s90, 1
    %p94 = scmp.eq.s32.totalorder %s10, 1
    %p95 = scmp.ne.s32.totalorder %s90, %s92
    %p96 = scmp.eq.s32.totalorder %s10, 0
    %p97 = por %p95, %p96
    %p98 = scmp.ne.s32.totalorder %s90, %s92
    %p99 = scmp.eq.s32.totalorder %s15, 1
    %p100 = por %p98, %p99
    %p101 = scmp.ne.s32.totalorder %s92, %s93
    %p102 = scmp.eq.s32.totalorder %s15, 0
    %p103 = por %p101, %p102
    %p104 = scmp.ne.s32.totalorder %s92, %s93
    %p105 = scmp.eq.s32.totalorder %s16, 1
    %p106 = por %p104, %p105
    %p108 = scmp.ne.s32.totalorder %s93, %s107
    %p109 = scmp.eq.s32.totalorder %s16, 0
    %p110 = por %p108, %p109
    %s112 = sadd.s32 %s111, 1
    %p115 = scmp.eq.s32.totalorder %s10, 1
    %p116 = scmp.ne.s32.totalorder %s111, %s113
    %p117 = scmp.eq.s32.totalorder %s10, 0
    %p118 = por %p116, %p117
    %p119 = scmp.ne.s32.totalorder %s111, %s113
    %p120 = scmp.eq.s32.totalorder %s15, 1
    %p121 = por %p119, %p120
    %p122 = scmp.ne.s32.totalorder %s113, %s114
    %p123 = scmp.eq.s32.totalorder %s15, 0
    %p124 = por %p122, %p123
    %p125 = scmp.ne.s32.totalorder %s113, %s114
    %p126 = scmp.eq.s32.totalorder %s16, 1
    %p127 = por %p125, %p126
    %p129 = scmp.ne.s32.totalorder %s114, %s128
    %p130 = scmp.eq.s32.totalorder %s16, 0
    %p131 = por %p129, %p130
    %s132 = ssub.s32 %s17, %s29
    %s133 = ssub.s32 %s18, %s25
    %s134 = sor.u32 %s132, %s133
    %p135 = scmp.eq.s32.totalorder %s134, 0
    %s137 = sadd.s32 %s136, 1
    %s138 = scalar_select %p135, %s136, %s137
    %p141 = pneg %p135
    %p142 = scmp.eq.s32.totalorder %s10, 1
    %p143 = por %p141, %p142
    %p144 = scmp.ne.s32.totalorder %s136, %s139
    %p145 = scmp.eq.s32.totalorder %s10, 0
    %p146 = por %p144, %p145
    %p147 = scmp.ne.s32.totalorder %s136, %s139
    %p148 = scmp.eq.s32.totalorder %s15, 1
    %p149 = por %p147, %p148
    %p150 = scmp.ne.s32.totalorder %s139, %s140
    %p151 = scmp.eq.s32.totalorder %s15, 0
    %p152 = por %p150, %p151
    %p153 = scmp.ne.s32.totalorder %s139, %s140
    %p154 = scmp.eq.s32.totalorder %s16, 1
    %p155 = por %p153, %p154
    %p157 = scmp.ne.s32.totalorder %s140, %s156
    %p158 = scmp.eq.s32.totalorder %s16, 0
    %p159 = por %p157, %p158
    %p160 = scmp.le.s32.totalorder 1, %s10
    %p161 = scmp.lt.s32.totalorder %s10, 3
    %p162 = pnand %p160, %p161
    %p163 = pneg %p162
    // Predicated region
    $region9: #{tpu_custom_call.1} parent=5 // pred_check
      _
    $region10: #{tpu_custom_call.1} parent=5 // pred_check_branch
      %165 = sbr.rel (%p162) target = $region12
    $region11: #{tpu_custom_call.1} parent=5 // pred_region
      %s166 = ssub.s32 %s10, 1
      // Predicated region
      $region13: #{tpu_custom_call.1} parent=11 // pred_check
        %p167 = pneg %p103
      $region14: #{tpu_custom_call.1} parent=11 // pred_check_branch
        %169 = sbr.rel (%p167) target = $region16
      $region15: #{tpu_custom_call.1} parent=11 // pred_region
        _
      $region16: #{tpu_custom_call.1} parent=11 // pred_fallthru
        _
      // Predicated region
      $region17: #{tpu_custom_call.1} parent=11 // pred_check
        %p170 = pneg %p124
      $region18: #{tpu_custom_call.1} parent=11 // pred_check_branch
        %172 = sbr.rel (%p170) target = $region20
      $region19: #{tpu_custom_call.1} parent=11 // pred_region
        _
      $region20: #{tpu_custom_call.1} parent=11 // pred_fallthru
        _
    $region12: #{tpu_custom_call.1} parent=5 // pred_fallthru
      _
    %p173 = scmp.lt.s32.totalorder %s10, 2
    // Predicated region
    $region21: #{tpu_custom_call.1} parent=5 // pred_check
      %p174 = pneg %p173
    $region22: #{tpu_custom_call.1} parent=5 // pred_check_branch
      %176 = sbr.rel (%p174) target = $region24
    $region23: #{tpu_custom_call.1} parent=5 // pred_region
      // Predicated region
      $region25: #{tpu_custom_call.1} parent=23 // pred_check
        %p177 = pneg %p44
      $region26: #{tpu_custom_call.1} parent=23 // pred_check_branch
        %179 = sbr.rel (%p177) target = $region28
      $region27: #{tpu_custom_call.1} parent=23 // pred_region
        %s180 = smul.u32 16, %s18
        %s181 = ssub.s32 18, %s180
        %p182 = scmp.lt.s32.totalorder %s181, 16
        %s183 = scalar_select %p182, %s181, 16
        %s184 = smul.u32 128, %s183
        %s185 = smul.u32 %s184, 3
        %p186 = scmp.lt.s32.totalorder %s17, 1
        %s187 = scalar_select %p186, %s17, 1
        %p188 = scmp.lt.s32.totalorder %s180, 17
        %s189 = scalar_select %p188, %s180, 17
        %s190 = smul.addr %s189, 3
        %s191 = smul.addr %s187, 54
        %s192 = sadd.s32 %s190, %s191
        %s193 = smul.addr %s192, 8
        %s194 = scalar_lea.vmem %s0, %s193
        %s195 = smul.u32 16, %s18
        %s196 = ssub.s32 18, %s195
        %p197 = scmp.lt.s32.totalorder %s196, 16
        %s198 = scalar_select %p197, %s196, 16
        %s199 = smul.u32 128, %s198
        %s200 = smul.u32 %s199, 3
      $region28: #{tpu_custom_call.1} parent=23 // pred_fallthru
        _
      // Predicated region
      $region29: #{tpu_custom_call.1} parent=23 // pred_check
        %p201 = pneg %p76
      $region30: #{tpu_custom_call.1} parent=23 // pred_check_branch
        %203 = sbr.rel (%p201) target = $region32
      $region31: #{tpu_custom_call.1} parent=23 // pred_region
        %s204 = sadd.s32 %s18, 1
        %s205 = smul.u32 %s204, 8
        %s206 = smul.u32 2, %s205
        %p207 = scmp.lt.s32.totalorder %s17, 1
        %s208 = scalar_select %p207, %s17, 1
        %p209 = scmp.lt.s32.totalorder %s206, 17
        %s210 = scalar_select %p209, %s206, 17
        %s211 = smul.addr %s210, 3
        %s212 = smul.addr %s208, 54
        %s213 = sadd.s32 %s211, %s212
        %s214 = smul.addr %s213, 8
        %s215 = scalar_lea.vmem %s1, %s214
        %s216 = sadd.s32 %s18, 1
        %s217 = smul.u32 %s216, 8
        %s218 = smul.u32 2, %s217
      $region32: #{tpu_custom_call.1} parent=23 // pred_fallthru
        _
    $region24: #{tpu_custom_call.1} parent=5 // pred_fallthru
      _
    %p219 = scmp.le.s32.totalorder 1, %s10
    %p220 = scmp.lt.s32.totalorder %s10, 3
    %p221 = pnand %p219, %p220
    %p222 = pneg %p221
    // Predicated region
    $region33: #{tpu_custom_call.1} parent=5 // pred_check
      _
    $region34: #{tpu_custom_call.1} parent=5 // pred_check_branch
      %224 = sbr.rel (%p221) target = $region36
    $region35: #{tpu_custom_call.1} parent=5 // pred_region
      %s225 = ssub.s32 %s10, 1
      %s226 = smul.u32 16, %s20
      %s227 = ssub.s32 18, %s226
      %p228 = scmp.lt.s32.totalorder %s227, 16
      %s229 = scalar_select %p228, %s227, 16
      %s230 = smul.u32 128, %s229
      %s231 = smul.u32 %s230, 3
      %p232 = scmp.lt.s32.totalorder %s19, 1
      %s233 = scalar_select %p232, %s19, 1
      %p234 = scmp.lt.s32.totalorder %s226, 17
      %s235 = scalar_select %p234, %s226, 17
      %s236 = smul.addr %s235, 3
      %s237 = smul.addr %s233, 54
      %s238 = sadd.s32 %s236, %s237
      %s239 = smul.addr %s238, 8
      %s240 = scalar_lea.vmem %s0, %s239
      %p241 = pneg %p50
      %p242 = pneg %p47
      %s243 = sadd.s32 %s20, 1
      %s244 = smul.u32 %s243, 8
      %s245 = smul.u32 2, %s244
      %p246 = scmp.lt.s32.totalorder %s19, 1
      %s247 = scalar_select %p246, %s19, 1
      %p248 = scmp.lt.s32.totalorder %s245, 17
      %s249 = scalar_select %p248, %s245, 17
      %s250 = smul.addr %s249, 3
      %s251 = smul.addr %s247, 54
      %s252 = sadd.s32 %s250, %s251
      %s253 = smul.addr %s252, 8
      %s254 = scalar_lea.vmem %s1, %s253
      %p255 = pneg %p82
      %p256 = pneg %p79
      %p257 = pneg %p103
      %p258 = pneg %p100
      %p259 = pneg %p124
      %p260 = pneg %p121
      %p261 = pneg %p152
      %p262 = pneg %p149
      %s263 = smul.u32 16, %s20
      %p264 = scmp.lt.s32.totalorder %s19, 1
      %s265 = scalar_select %p264, %s19, 1
      %p266 = scmp.lt.s32.totalorder %s263, 15
      %s267 = scalar_select %p266, %s263, 15
      %s268 = smul.addr %s267, 4
      %s269 = smul.addr %s265, 64
      %s270 = sadd.s32 %s268, %s269
      %s271 = smul.addr %s270, 8
      %s272 = scalar_lea.vmem %s4, %s271
      %s273 = smul.u32 16, %s20
      %s274 = ssub.s32 18, %s273
      %p275 = scmp.lt.s32.totalorder %s274, 16
      %s276 = scalar_select %p275, %s274, 16
      %s277 = smul.u32 128, %s276
      %s278 = smul.u32 %s277, 3
      %p279 = scmp.lt.s32.totalorder %s19, 1
      %s280 = scalar_select %p279, %s19, 1
      %p281 = scmp.lt.s32.totalorder %s273, 17
      %s282 = scalar_select %p281, %s273, 17
      %s283 = smul.addr %s282, 3
      %s284 = smul.addr %s280, 54
      %s285 = sadd.s32 %s283, %s284
      %s286 = smul.addr %s285, 8
      %s287 = scalar_lea.vmem %s0, %s286
      %s288 = smul.u32 16, %s20
      %s289 = ssub.s32 18, %s288
      %p290 = scmp.lt.s32.totalorder %s289, 16
      %s291 = scalar_select %p290, %s289, 16
      %s292 = smul.u32 128, %s291
      %s293 = smul.u32 %s292, 3
      %s294 = sadd.s32 %s20, 1
      %s295 = smul.u32 %s294, 8
      %s296 = smul.u32 2, %s295
      %p297 = scmp.lt.s32.totalorder %s19, 1
      %s298 = scalar_select %p297, %s19, 1
      %p299 = scmp.lt.s32.totalorder %s296, 17
      %s300 = scalar_select %p299, %s296, 17
      %s301 = smul.addr %s300, 3
      %s302 = smul.addr %s298, 54
      %s303 = sadd.s32 %s301, %s302
      %s304 = smul.addr %s303, 8
      %s305 = scalar_lea.vmem %s1, %s304
      %s306 = sadd.s32 %s20, 1
      %s307 = smul.u32 %s306, 8
      %s308 = smul.u32 2, %s307
      %s309 = smul.u32 16, %s20
      %p310 = scmp.lt.s32.totalorder %s19, 1
      %s311 = scalar_select %p310, %s19, 1
      %p312 = scmp.lt.s32.totalorder %s309, 15
      %s313 = scalar_select %p312, %s309, 15
      %s314 = smul.addr %s313, 4
      %s315 = smul.addr %s311, 64
      %s316 = sadd.s32 %s314, %s315
      %s317 = smul.addr %s316, 8
      %s318 = scalar_lea.vmem %s4, %s317
      %s319 = smul.u32 16, %s20
      %v320 = vld [vmem:[%s287] sm:$0xff]
      %v321 = vld [vmem:[%s287 + $0x8] sm:$0xff]
      %v322 = vld [vmem:[%s287 + $0x10] sm:$0x3]
      %v323 = vld [vmem:[%s287 + $0x18] sm:$0xff]
      %v324 = vld [vmem:[%s287 + $0x20] sm:$0xff]
      %v325 = vld [vmem:[%s287 + $0x28] sm:$0x3]
      %v326 = vld [vmem:[%s287 + $0x30] sm:$0xff]
      %v327 = vld [vmem:[%s287 + $0x38] sm:$0xff]
      %v328 = vld [vmem:[%s287 + $0x40] sm:$0x3]
      %v329 = vld [vmem:[%s287 + $0x48] sm:$0xff]
      %v330 = vld [vmem:[%s287 + $0x50] sm:$0xff]
      %v331 = vld [vmem:[%s287 + $0x58] sm:$0x3]
      %v332 = vld [vmem:[%s287 + $0x60] sm:$0xff]
      %v333 = vld [vmem:[%s287 + $0x68] sm:$0xff]
      %v334 = vld [vmem:[%s287 + $0x70] sm:$0x3]
      %v335 = vld [vmem:[%s287 + $0x78] sm:$0xff]
      %v336 = vld [vmem:[%s287 + $0x80] sm:$0xff]
      %v337 = vld [vmem:[%s287 + $0x88] sm:$0x3]
      %v338 = vld [vmem:[%s287 + $0x90] sm:$0xff]
      %v339 = vld [vmem:[%s287 + $0x98] sm:$0xff]
      %v340 = vld [vmem:[%s287 + $0xa0] sm:$0x3]
      %v341 = vld [vmem:[%s287 + $0xa8] sm:$0xff]
      %v342 = vld [vmem:[%s287 + $0xb0] sm:$0xff]
      %v343 = vld [vmem:[%s287 + $0xb8] sm:$0x3]
      %v344 = vld [vmem:[%s287 + $0xc0] sm:$0xff]
      %v345 = vld [vmem:[%s287 + $0xc8] sm:$0xff]
      %v346 = vld [vmem:[%s287 + $0xd0] sm:$0x3]
      %v347 = vld [vmem:[%s287 + $0xd8] sm:$0xff]
      %v348 = vld [vmem:[%s287 + $0xe0] sm:$0xff]
      %v349 = vld [vmem:[%s287 + $0xe8] sm:$0x3]
      %v350 = vld [vmem:[%s287 + $0xf0] sm:$0xff]
      %v351 = vld [vmem:[%s287 + $0xf8] sm:$0xff]
      %v352 = vld [vmem:[%s287 + $0x100] sm:$0x3]
      %v353 = vld [vmem:[%s287 + $0x108] sm:$0xff]
      %v354 = vld [vmem:[%s287 + $0x110] sm:$0xff]
      %v355 = vld [vmem:[%s287 + $0x118] sm:$0x3]
      %v356 = vld [vmem:[%s287 + $0x120] sm:$0xff]
      %v357 = vld [vmem:[%s287 + $0x128] sm:$0xff]
      %v358 = vld [vmem:[%s287 + $0x130] sm:$0x3]
      %v359 = vld [vmem:[%s287 + $0x138] sm:$0xff]
      %v360 = vld [vmem:[%s287 + $0x140] sm:$0xff]
      %v361 = vld [vmem:[%s287 + $0x148] sm:$0x3]
      %v362 = vld [vmem:[%s287 + $0x150] sm:$0xff]
      %v363 = vld [vmem:[%s287 + $0x158] sm:$0xff]
      %v364 = vld [vmem:[%s287 + $0x160] sm:$0x3]
      %v365 = vld [vmem:[%s287 + $0x168] sm:$0xff]
      %v366 = vld [vmem:[%s287 + $0x170] sm:$0xff]
      %v367 = vld [vmem:[%s287 + $0x178] sm:$0x3]
      %vm368 = vcmask 31744
      %369 = vst.msk [vmem:[#allocation2] sm:$0xff] %vm368, %v320
      %370 = vst.msk [vmem:[#allocation2 + $0x8] sm:$0xff] %vm368, %v321
      %vm371 = vcmask 25600
      %372 = vst.msk [vmem:[#allocation2 + $0x10] sm:$0x3] %vm371, %v322
      %373 = vst.msk [vmem:[#allocation2 + $0x18] sm:$0xff] %vm368, %v323
      %374 = vst.msk [vmem:[#allocation2 + $0x20] sm:$0xff] %vm368, %v324
      %375 = vst.msk [vmem:[#allocation2 + $0x28] sm:$0x3] %vm371, %v325
      %376 = vst.msk [vmem:[#allocation2 + $0x30] sm:$0xff] %vm368, %v326
      %377 = vst.msk [vmem:[#allocation2 + $0x38] sm:$0xff] %vm368, %v327
      %378 = vst.msk [vmem:[#allocation2 + $0x40] sm:$0x3] %vm371, %v328
      %379 = vst.msk [vmem:[#allocation2 + $0x48] sm:$0xff] %vm368, %v329
      %380 = vst.msk [vmem:[#allocation2 + $0x50] sm:$0xff] %vm368, %v330
      %381 = vst.msk [vmem:[#allocation2 + $0x58] sm:$0x3] %vm371, %v331
      %382 = vst.msk [vmem:[#allocation2 + $0x60] sm:$0xff] %vm368, %v332
      %383 = vst.msk [vmem:[#allocation2 + $0x68] sm:$0xff] %vm368, %v333
      %384 = vst.msk [vmem:[#allocation2 + $0x70] sm:$0x3] %vm371, %v334
      %385 = vst.msk [vmem:[#allocation2 + $0x78] sm:$0xff] %vm368, %v335
      %386 = vst.msk [vmem:[#allocation2 + $0x80] sm:$0xff] %vm368, %v336
      %387 = vst.msk [vmem:[#allocation2 + $0x88] sm:$0x3] %vm371, %v337
      %388 = vst.msk [vmem:[#allocation2 + $0x90] sm:$0xff] %vm368, %v338
      %389 = vst.msk [vmem:[#allocation2 + $0x98] sm:$0xff] %vm368, %v339
      %390 = vst.msk [vmem:[#allocation2 + $0xa0] sm:$0x3] %vm371, %v340
      %391 = vst.msk [vmem:[#allocation2 + $0xa8] sm:$0xff] %vm368, %v341
      %392 = vst.msk [vmem:[#allocation2 + $0xb0] sm:$0xff] %vm368, %v342
      %393 = vst.msk [vmem:[#allocation2 + $0xb8] sm:$0x3] %vm371, %v343
      %394 = vst.msk [vmem:[#allocation2 + $0xc0] sm:$0xff] %vm368, %v344
      %395 = vst.msk [vmem:[#allocation2 + $0xc8] sm:$0xff] %vm368, %v345
      %396 = vst.msk [vmem:[#allocation2 + $0xd0] sm:$0x3] %vm371, %v346
      %397 = vst.msk [vmem:[#allocation2 + $0xd8] sm:$0xff] %vm368, %v347
      %398 = vst.msk [vmem:[#allocation2 + $0xe0] sm:$0xff] %vm368, %v348
      %399 = vst.msk [vmem:[#allocation2 + $0xe8] sm:$0x3] %vm371, %v349
      %400 = vst.msk [vmem:[#allocation2 + $0xf0] sm:$0xff] %vm368, %v350
      %401 = vst.msk [vmem:[#allocation2 + $0xf8] sm:$0xff] %vm368, %v351
      %402 = vst.msk [vmem:[#allocation2 + $0x100] sm:$0x3] %vm371, %v352
      %403 = vst.msk [vmem:[#allocation2 + $0x108] sm:$0xff] %vm368, %v353
      %404 = vst.msk [vmem:[#allocation2 + $0x110] sm:$0xff] %vm368, %v354
      %405 = vst.msk [vmem:[#allocation2 + $0x118] sm:$0x3] %vm371, %v355
      %406 = vst.msk [vmem:[#allocation2 + $0x120] sm:$0xff] %vm368, %v356
      %407 = vst.msk [vmem:[#allocation2 + $0x128] sm:$0xff] %vm368, %v357
      %408 = vst.msk [vmem:[#allocation2 + $0x130] sm:$0x3] %vm371, %v358
      %409 = vst.msk [vmem:[#allocation2 + $0x138] sm:$0xff] %vm368, %v359
      %410 = vst.msk [vmem:[#allocation2 + $0x140] sm:$0xff] %vm368, %v360
      %411 = vst.msk [vmem:[#allocation2 + $0x148] sm:$0x3] %vm371, %v361
      %412 = vst.msk [vmem:[#allocation2 + $0x150] sm:$0xff] %vm368, %v362
      %413 = vst.msk [vmem:[#allocation2 + $0x158] sm:$0xff] %vm368, %v363
      %414 = vst.msk [vmem:[#allocation2 + $0x160] sm:$0x3] %vm371, %v364
      %415 = vst.msk [vmem:[#allocation2 + $0x168] sm:$0xff] %vm368, %v365
      %416 = vst.msk [vmem:[#allocation2 + $0x170] sm:$0xff] %vm368, %v366
      %417 = vst.msk [vmem:[#allocation2 + $0x178] sm:$0x3] %vm371, %v367
      %v418 = vld [vmem:[%s305] sm:$0xff]
      %v419 = vld [vmem:[%s305 + $0x8] sm:$0xff]
      %v420 = vld [vmem:[%s305 + $0x10] sm:$0x3]
      %v421 = vld [vmem:[%s305 + $0x18] sm:$0xff]
      %v422 = vld [vmem:[%s305 + $0x20] sm:$0xff]
      %v423 = vld [vmem:[%s305 + $0x28] sm:$0x3]
      %s424 = scalar_lea.vmem [#allocation2], 384
      %425 = vst.msk [vmem:[%s424] sm:$0xff] %vm368, %v418
      %426 = vst.msk [vmem:[%s424 + $0x8] sm:$0xff] %vm368, %v419
      %427 = vst.msk [vmem:[%s424 + $0x10] sm:$0x3] %vm371, %v420
      %428 = vst.msk [vmem:[%s424 + $0x18] sm:$0xff] %vm368, %v421
      %429 = vst.msk [vmem:[%s424 + $0x20] sm:$0xff] %vm368, %v422
      %430 = vst.msk [vmem:[%s424 + $0x28] sm:$0x3] %vm371, %v423
      %v431 = vld [vmem:[%s3] sm:$0x1]
      %v432 = vld [vmem:[#allocation2] sm:$0xff]
      %v433 = vld [vmem:[#allocation2 + $0x8] sm:$0xff]
      %v434 = vld [vmem:[#allocation2 + $0x18] sm:$0xff]
      %v435 = vld [vmem:[#allocation2 + $0x20] sm:$0xff]
      %v436 = vld [vmem:[#allocation2 + $0x30] sm:$0xff]
      %v437 = vld [vmem:[#allocation2 + $0x38] sm:$0xff]
      %v438 = vld [vmem:[#allocation2 + $0x48] sm:$0xff]
      %v439 = vld [vmem:[#allocation2 + $0x50] sm:$0xff]
      %v440 = vld [vmem:[#allocation2 + $0x60] sm:$0xff]
      %v441 = vld [vmem:[#allocation2 + $0x68] sm:$0xff]
      %v442 = vld [vmem:[#allocation2 + $0x78] sm:$0xff]
      %v443 = vld [vmem:[#allocation2 + $0x80] sm:$0xff]
      %v444 = vld [vmem:[#allocation2 + $0x90] sm:$0xff]
      %v445 = vld [vmem:[#allocation2 + $0x98] sm:$0xff]
      %v446 = vld [vmem:[#allocation2 + $0xa8] sm:$0xff]
      %v447 = vld [vmem:[#allocation2 + $0xb0] sm:$0xff]
      %v448 = vld [vmem:[#allocation2 + $0xc0] sm:$0xff]
      %v449 = vld [vmem:[#allocation2 + $0xc8] sm:$0xff]
      %v450 = vld [vmem:[#allocation2 + $0xd8] sm:$0xff]
      %v451 = vld [vmem:[#allocation2 + $0xe0] sm:$0xff]
      %v452 = vld [vmem:[#allocation2 + $0xf0] sm:$0xff]
      %v453 = vld [vmem:[#allocation2 + $0xf8] sm:$0xff]
      %v454 = vld [vmem:[#allocation2 + $0x108] sm:$0xff]
      %v455 = vld [vmem:[#allocation2 + $0x110] sm:$0xff]
      %v456 = vld [vmem:[#allocation2 + $0x120] sm:$0xff]
      %v457 = vld [vmem:[#allocation2 + $0x128] sm:$0xff]
      %v458 = vld [vmem:[#allocation2 + $0x138] sm:$0xff]
      %v459 = vld [vmem:[#allocation2 + $0x140] sm:$0xff]
      %v460 = vld [vmem:[#allocation2 + $0x150] sm:$0xff]
      %v461 = vld [vmem:[#allocation2 + $0x158] sm:$0xff]
      %v462 = vld [vmem:[#allocation2 + $0x168] sm:$0xff]
      %v463 = vld [vmem:[#allocation2 + $0x170] sm:$0xff]
      %v464 = vld [vmem:[%s2] sm:$0xf]
      %v465 = vld [vmem:[#allocation2 + $0x1] sm:$0xff]
      %v466 = vld [vmem:[#allocation2 + $0x9] sm:$0xff]
      %v467 = vld [vmem:[#allocation2 + $0x19] sm:$0xff]
      %v468 = vld [vmem:[#allocation2 + $0x21] sm:$0xff]
      %v469 = vld [vmem:[#allocation2 + $0x31] sm:$0xff]
      %v470 = vld [vmem:[#allocation2 + $0x39] sm:$0xff]
      %v471 = vld [vmem:[#allocation2 + $0x49] sm:$0xff]
      %v472 = vld [vmem:[#allocation2 + $0x51] sm:$0xff]
      %v473 = vld [vmem:[#allocation2 + $0x61] sm:$0xff]
      %v474 = vld [vmem:[#allocation2 + $0x69] sm:$0xff]
      %v475 = vld [vmem:[#allocation2 + $0x79] sm:$0xff]
      %v476 = vld [vmem:[#allocation2 + $0x81] sm:$0xff]
      %v477 = vld [vmem:[#allocation2 + $0x91] sm:$0xff]
      %v478 = vld [vmem:[#allocation2 + $0x99] sm:$0xff]
      %v479 = vld [vmem:[#allocation2 + $0xa9] sm:$0xff]
      %v480 = vld [vmem:[#allocation2 + $0xb1] sm:$0xff]
      %v481 = vld [vmem:[#allocation2 + $0xc1] sm:$0xff]
      %v482 = vld [vmem:[#allocation2 + $0xc9] sm:$0xff]
      %v483 = vld [vmem:[#allocation2 + $0xd9] sm:$0xff]
      %v484 = vld [vmem:[#allocation2 + $0xe1] sm:$0xff]
      %v485 = vld [vmem:[#allocation2 + $0xf1] sm:$0xff]
      %v486 = vld [vmem:[#allocation2 + $0xf9] sm:$0xff]
      %v487 = vld [vmem:[#allocation2 + $0x109] sm:$0xff]
      %v488 = vld [vmem:[#allocation2 + $0x111] sm:$0xff]
      %v489 = vld [vmem:[#allocation2 + $0x121] sm:$0xff]
      %v490 = vld [vmem:[#allocation2 + $0x129] sm:$0xff]
      %v491 = vld [vmem:[#allocation2 + $0x139] sm:$0xff]
      %v492 = vld [vmem:[#allocation2 + $0x141] sm:$0xff]
      %v493 = vld [vmem:[#allocation2 + $0x151] sm:$0xff]
      %v494 = vld [vmem:[#allocation2 + $0x159] sm:$0xff]
      %v495 = vld [vmem:[#allocation2 + $0x169] sm:$0xff]
      %v496 = vld [vmem:[#allocation2 + $0x171] sm:$0xff]
      %s497 = scalar_lea.vmem %s2, 4
      %v498 = vld [vmem:[%s497] sm:$0xf]
      %v500 = vsel %vm368, %v465, 0
      %v503 = vsel %vm368, %v466, 0
      %v506 = vsel %vm368, %v467, 0
      %v509 = vsel %vm368, %v468, 0
      %v512 = vsel %vm368, %v469, 0
      %v515 = vsel %vm368, %v470, 0
      %v518 = vsel %vm368, %v471, 0
      %v521 = vsel %vm368, %v472, 0
      %v524 = vsel %vm368, %v473, 0
      %v527 = vsel %vm368, %v474, 0
      %v530 = vsel %vm368, %v475, 0
      %v533 = vsel %vm368, %v476, 0
      %v536 = vsel %vm368, %v477, 0
      %v539 = vsel %vm368, %v478, 0
      %v542 = vsel %vm368, %v479, 0
      %v545 = vsel %vm368, %v480, 0
      %v548 = vsel %vm368, %v481, 0
      %v551 = vsel %vm368, %v482, 0
      %v554 = vsel %vm368, %v483, 0
      %v557 = vsel %vm368, %v484, 0
      %v560 = vsel %vm368, %v485, 0
      %v563 = vsel %vm368, %v486, 0
      %v566 = vsel %vm368, %v487, 0
      %v569 = vsel %vm368, %v488, 0
      %v572 = vsel %vm368, %v489, 0
      %v575 = vsel %vm368, %v490, 0
      %v578 = vsel %vm368, %v491, 0
      %v581 = vsel %vm368, %v492, 0
      %v584 = vsel %vm368, %v493, 0
      %v587 = vsel %vm368, %v494, 0
      %v590 = vsel %vm368, %v495, 0
      %v593 = vsel %vm368, %v496, 0
      %vm595 = vcmask 1043456
      %v597 = vsel %vm595, %v498, 0
      %599 = vmatprep.subr.mxu0 0.0
      %600 = vmatpush1.msra.mxu0 %v597
      %601 = vmatprep.subr.mxu0 0.0
      %602 = vmatpush1.msra.mxu0 0.0
      %603 = vmatprep.subr.mxu0 0.0
      %604 = vmatpush1.msra.mxu0 0.0
      %605 = vmatprep.subr.mxu0 0.0
      %606 = vmatpush1.msra.mxu0 0.0
      %607 = vmatprep.subr.mxu0 0.0
      %608 = vmatpush1.msra.mxu0 0.0
      %609 = vmatprep.subr.mxu0 0.0
      %610 = vmatpush1.msra.mxu0 0.0
      %611 = vmatprep.subr.mxu0 0.0
      %612 = vmatpush1.msra.mxu0 0.0
      %613 = vmatprep.subr.mxu0 0.0
      %614 = vmatpush1.msra.mxu0 0.0
      %615 = vmatprep.subr.mxu0 0.0
      %616 = vmatpush1.msra.mxu0 0.0
      %617 = vmatprep.subr.mxu0 0.0
      %618 = vmatpush1.msra.mxu0 0.0
      %619 = vmatprep.subr.mxu0 0.0
      %620 = vmatpush1.msra.mxu0 0.0
      %621 = vmatprep.subr.mxu0 0.0
      %622 = vmatpush1.msra.mxu0 0.0
      %623 = vmatprep.subr.mxu0 0.0
      %624 = vmatpush1.msra.mxu0 0.0
      %625 = vmatprep.subr.mxu0 0.0
      %626 = vmatpush1.msra.mxu0 0.0
      %627 = vmatprep.subr.mxu0 0.0
      %628 = vmatpush1.msra.mxu0 0.0
      %629 = vmatprep.subr.mxu0 0.0
      %630 = vmatpush1.msra.mxu0 0.0
      %631 = vmatprep.subr.mxu0 0.0
      %632 = vmatpush1.msra.mxu0 0.0
      %633 = vmatprep.subr.mxu0 0.0
      %634 = vmatpush1.msra.mxu0 0.0
      %635 = vmatprep.subr.mxu0 0.0
      %636 = vmatpush1.msra.mxu0 0.0
      %637 = vmatprep.subr.mxu0 0.0
      %638 = vmatpush1.msra.mxu0 0.0
      %639 = vmatprep.subr.mxu0 0.0
      %640 = vmatpush1.msra.mxu0 0.0
      %641 = vmatprep.subr.mxu0 0.0
      %642 = vmatpush1.msra.mxu0 0.0
      %643 = vmatprep.subr.mxu0 0.0
      %644 = vmatpush1.msra.mxu0 0.0
      %645 = vmatprep.subr.mxu0 0.0
      %646 = vmatpush1.msra.mxu0 0.0
      %647 = vmatprep.subr.mxu0 0.0
      %648 = vmatpush1.msra.mxu0 0.0
      %649 = vmatprep.subr.mxu0 0.0
      %650 = vmatpush1.msra.mxu0 0.0
      %651 = vmatprep.subr.mxu0 0.0
      %652 = vmatpush1.msra.mxu0 0.0
      %653 = vmatprep.subr.mxu0 0.0
      %654 = vmatpush1.msra.mxu0 0.0
      %655 = vmatprep.subr.mxu0 0.0
      %656 = vmatpush1.msra.mxu0 0.0
      %657 = vmatprep.subr.mxu0 0.0
      %658 = vmatpush1.msra.mxu0 0.0
      %659 = vmatprep.subr.mxu0 0.0
      %660 = vmatpush1.msra.mxu0 0.0
      %661 = vmatprep.subr.mxu0 0.0
      %662 = vmatpush1.msra.mxu0 0.0
      %663 = vmatprep.mubr.f32.mxu0 0.0
      %664 = vmatmul.mubr.f32.gmra.mrb[0].mxu0 %v500
      %v665 = vpop.f32.mrb[0].mxu0
      %v666 = vadd.f32 0.0, %v665
      %v667 = vpop.f32.mrb[0].mxu0
      %668 = vmatprep.mubr.f32.mxu0 0.0
      %669 = vmatmul.mubr.f32.gmra.mrb[0].mxu0 %v503
      %v670 = vpop.f32.mrb[0].mxu0
      %v671 = vadd.f32 0.0, %v670
      %v672 = vpop.f32.mrb[0].mxu0
      %673 = vmatprep.mubr.f32.mxu0 0.0
      %674 = vmatmul.mubr.f32.gmra.mrb[0].mxu0 %v506
      %v675 = vpop.f32.mrb[0].mxu0
      %v676 = vadd.f32 0.0, %v675
      %v677 = vpop.f32.mrb[0].mxu0
      %678 = vmatprep.mubr.f32.mxu0 0.0
      %679 = vmatmul.mubr.f32.gmra.mrb[0].mxu0 %v509
      %v680 = vpop.f32.mrb[0].mxu0
      %v681 = vadd.f32 0.0, %v680
      %v682 = vpop.f32.mrb[0].mxu0
      %683 = vmatprep.mubr.f32.mxu0 0.0
      %684 = vmatmul.mubr.f32.gmra.mrb[0].mxu0 %v512
      %v685 = vpop.f32.mrb[0].mxu0
      %v686 = vadd.f32 0.0, %v685
      %v687 = vpop.f32.mrb[0].mxu0
      %688 = vmatprep.mubr.f32.mxu0 0.0
      %689 = vmatmul.mubr.f32.gmra.mrb[0].mxu0 %v515
      %v690 = vpop.f32.mrb[0].mxu0
      %v691 = vadd.f32 0.0, %v690
      %v692 = vpop.f32.mrb[0].mxu0
      %693 = vmatprep.mubr.f32.mxu0 0.0
      %694 = vmatmul.mubr.f32.gmra.mrb[0].mxu0 %v518
      %v695 = vpop.f32.mrb[0].mxu0
      %v696 = vadd.f32 0.0, %v695
      %v697 = vpop.f32.mrb[0].mxu0
      %698 = vmatprep.mubr.f32.mxu0 0.0
      %699 = vmatmul.mubr.f32.gmra.mrb[0].mxu0 %v521
      %v700 = vpop.f32.mrb[0].mxu0
      %v701 = vadd.f32 0.0, %v700
      %v702 = vpop.f32.mrb[0].mxu0
      %703 = vmatprep.mubr.f32.mxu0 0.0
      %704 = vmatmul.mubr.f32.gmra.mrb[0].mxu0 %v524
      %v705 = vpop.f32.mrb[0].mxu0
      %v706 = vadd.f32 0.0, %v705
      %v707 = vpop.f32.mrb[0].mxu0
      %708 = vmatprep.mubr.f32.mxu0 0.0
      %709 = vmatmul.mubr.f32.gmra.mrb[0].mxu0 %v527
      %v710 = vpop.f32.mrb[0].mxu0
      %v711 = vadd.f32 0.0, %v710
      %v712 = vpop.f32.mrb[0].mxu0
      %713 = vmatprep.mubr.f32.mxu0 0.0
      %714 = vmatmul.mubr.f32.gmra.mrb[0].mxu0 %v530
      %v715 = vpop.f32.mrb[0].mxu0
      %v716 = vadd.f32 0.0, %v715
      %v717 = vpop.f32.mrb[0].mxu0
      %718 = vmatprep.mubr.f32.mxu0 0.0
      %719 = vmatmul.mubr.f32.gmra.mrb[0].mxu0 %v533
      %v720 = vpop.f32.mrb[0].mxu0
      %v721 = vadd.f32 0.0, %v720
      %v722 = vpop.f32.mrb[0].mxu0
      %723 = vmatprep.mubr.f32.mxu0 0.0
      %724 = vmatmul.mubr.f32.gmra.mrb[0].mxu0 %v536
      %v725 = vpop.f32.mrb[0].mxu0
      %v726 = vadd.f32 0.0, %v725
      %v727 = vpop.f32.mrb[0].mxu0
      %728 = vmatprep.mubr.f32.mxu0 0.0
      %729 = vmatmul.mubr.f32.gmra.mrb[0].mxu0 %v539
      %v730 = vpop.f32.mrb[0].mxu0
      %v731 = vadd.f32 0.0, %v730
      %v732 = vpop.f32.mrb[0].mxu0
      %733 = vmatprep.mubr.f32.mxu0 0.0
      %734 = vmatmul.mubr.f32.gmra.mrb[0].mxu0 %v542
      %v735 = vpop.f32.mrb[0].mxu0
      %v736 = vadd.f32 0.0, %v735
      %v737 = vpop.f32.mrb[0].mxu0
      %738 = vmatprep.mubr.f32.mxu0 0.0
      %739 = vmatmul.mubr.f32.gmra.mrb[0].mxu0 %v545
      %v740 = vpop.f32.mrb[0].mxu0
      %v741 = vadd.f32 0.0, %v740
      %v742 = vpop.f32.mrb[0].mxu0
      %743 = vmatprep.mubr.f32.mxu0 0.0
      %744 = vmatmul.mubr.f32.gmra.mrb[0].mxu0 %v548
      %v745 = vpop.f32.mrb[0].mxu0
      %v746 = vadd.f32 0.0, %v745
      %v747 = vpop.f32.mrb[0].mxu0
      %748 = vmatprep.mubr.f32.mxu0 0.0
      %749 = vmatmul.mubr.f32.gmra.mrb[0].mxu0 %v551
      %v750 = vpop.f32.mrb[0].mxu0
      %v751 = vadd.f32 0.0, %v750
      %v752 = vpop.f32.mrb[0].mxu0
      %753 = vmatprep.mubr.f32.mxu0 0.0
      %754 = vmatmul.mubr.f32.gmra.mrb[0].mxu0 %v554
      %v755 = vpop.f32.mrb[0].mxu0
      %v756 = vadd.f32 0.0, %v755
      %v757 = vpop.f32.mrb[0].mxu0
      %758 = vmatprep.mubr.f32.mxu0 0.0
      %759 = vmatmul.mubr.f32.gmra.mrb[0].mxu0 %v557
      %v760 = vpop.f32.mrb[0].mxu0
      %v761 = vadd.f32 0.0, %v760
      %v762 = vpop.f32.mrb[0].mxu0
      %763 = vmatprep.mubr.f32.mxu0 0.0
      %764 = vmatmul.mubr.f32.gmra.mrb[0].mxu0 %v560
      %v765 = vpop.f32.mrb[0].mxu0
      %v766 = vadd.f32 0.0, %v765
      %v767 = vpop.f32.mrb[0].mxu0
      %768 = vmatprep.mubr.f32.mxu0 0.0
      %769 = vmatmul.mubr.f32.gmra.mrb[0].mxu0 %v563
      %v770 = vpop.f32.mrb[0].mxu0
      %v771 = vadd.f32 0.0, %v770
      %v772 = vpop.f32.mrb[0].mxu0
      %773 = vmatprep.mubr.f32.mxu0 0.0
      %774 = vmatmul.mubr.f32.gmra.mrb[0].mxu0 %v566
      %v775 = vpop.f32.mrb[0].mxu0
      %v776 = vadd.f32 0.0, %v775
      %v777 = vpop.f32.mrb[0].mxu0
      %778 = vmatprep.mubr.f32.mxu0 0.0
      %779 = vmatmul.mubr.f32.gmra.mrb[0].mxu0 %v569
      %v780 = vpop.f32.mrb[0].mxu0
      %v781 = vadd.f32 0.0, %v780
      %v782 = vpop.f32.mrb[0].mxu0
      %783 = vmatprep.mubr.f32.mxu0 0.0
      %784 = vmatmul.mubr.f32.gmra.mrb[0].mxu0 %v572
      %v785 = vpop.f32.mrb[0].mxu0
      %v786 = vadd.f32 0.0, %v785
      %v787 = vpop.f32.mrb[0].mxu0
      %788 = vmatprep.mubr.f32.mxu0 0.0
      %789 = vmatmul.mubr.f32.gmra.mrb[0].mxu0 %v575
      %v790 = vpop.f32.mrb[0].mxu0
      %v791 = vadd.f32 0.0, %v790
      %v792 = vpop.f32.mrb[0].mxu0
      %793 = vmatprep.mubr.f32.mxu0 0.0
      %794 = vmatmul.mubr.f32.gmra.mrb[0].mxu0 %v578
      %v795 = vpop.f32.mrb[0].mxu0
      %v796 = vadd.f32 0.0, %v795
      %v797 = vpop.f32.mrb[0].mxu0
      %798 = vmatprep.mubr.f32.mxu0 0.0
      %799 = vmatmul.mubr.f32.gmra.mrb[0].mxu0 %v581
      %v800 = vpop.f32.mrb[0].mxu0
      %v801 = vadd.f32 0.0, %v800
      %v802 = vpop.f32.mrb[0].mxu0
      %803 = vmatprep.mubr.f32.mxu0 0.0
      %804 = vmatmul.mubr.f32.gmra.mrb[0].mxu0 %v584
      %v805 = vpop.f32.mrb[0].mxu0
      %v806 = vadd.f32 0.0, %v805
      %v807 = vpop.f32.mrb[0].mxu0
      %808 = vmatprep.mubr.f32.mxu0 0.0
      %809 = vmatmul.mubr.f32.gmra.mrb[0].mxu0 %v587
      %v810 = vpop.f32.mrb[0].mxu0
      %v811 = vadd.f32 0.0, %v810
      %v812 = vpop.f32.mrb[0].mxu0
      %813 = vmatprep.mubr.f32.mxu0 0.0
      %814 = vmatmul.mubr.f32.gmra.mrb[0].mxu0 %v590
      %v815 = vpop.f32.mrb[0].mxu0
      %v816 = vadd.f32 0.0, %v815
      %v817 = vpop.f32.mrb[0].mxu0
      %818 = vmatprep.mubr.f32.mxu0 0.0
      %819 = vmatmul.mubr.f32.gmra.mrb[0].mxu0 %v593
      %v820 = vpop.f32.mrb[0].mxu0
      %v821 = vadd.f32 0.0, %v820
      %v822 = vpop.f32.mrb[0].mxu0
      %823 = vdwg.mxu0
      %v825 = vsel %vm368, %v432, 0
      %v828 = vsel %vm368, %v433, 0
      %v831 = vsel %vm368, %v434, 0
      %v834 = vsel %vm368, %v435, 0
      %v837 = vsel %vm368, %v436, 0
      %v840 = vsel %vm368, %v437, 0
      %v843 = vsel %vm368, %v438, 0
      %v846 = vsel %vm368, %v439, 0
      %v849 = vsel %vm368, %v440, 0
      %v852 = vsel %vm368, %v441, 0
      %v855 = vsel %vm368, %v442, 0
      %v858 = vsel %vm368, %v443, 0
      %v861 = vsel %vm368, %v444, 0
      %v864 = vsel %vm368, %v445, 0
      %v867 = vsel %vm368, %v446, 0
      %v870 = vsel %vm368, %v447, 0
      %v873 = vsel %vm368, %v448, 0
      %v876 = vsel %vm368, %v449, 0
      %v879 = vsel %vm368, %v450, 0
      %v882 = vsel %vm368, %v451, 0
      %v885 = vsel %vm368, %v452, 0
      %v888 = vsel %vm368, %v453, 0
      %v891 = vsel %vm368, %v454, 0
      %v894 = vsel %vm368, %v455, 0
      %v897 = vsel %vm368, %v456, 0
      %v900 = vsel %vm368, %v457, 0
      %v903 = vsel %vm368, %v458, 0
      %v906 = vsel %vm368, %v459, 0
      %v909 = vsel %vm368, %v460, 0
      %v912 = vsel %vm368, %v461, 0
      %v915 = vsel %vm368, %v462, 0
      %v918 = vsel %vm368, %v463, 0
      %v921 = vsel %vm595, %v464, 0
      %923 = vmatprep.subr.mxu0 0.0
      %924 = vmatpush1.msra.mxu0 %v921
      %925 = vmatprep.subr.mxu0 0.0
      %926 = vmatpush1.msra.mxu0 0.0
      %927 = vmatprep.subr.mxu0 0.0
      %928 = vmatpush1.msra.mxu0 0.0
      %929 = vmatprep.subr.mxu0 0.0
      %930 = vmatpush1.msra.mxu0 0.0
      %931 = vmatprep.subr.mxu0 0.0
      %932 = vmatpush1.msra.mxu0 0.0
      %933 = vmatprep.subr.mxu0 0.0
      %934 = vmatpush1.msra.mxu0 0.0
      %935 = vmatprep.subr.mxu0 0.0
      %936 = vmatpush1.msra.mxu0 0.0
      %937 = vmatprep.subr.mxu0 0.0
      %938 = vmatpush1.msra.mxu0 0.0
      %939 = vmatprep.subr.mxu0 0.0
      %940 = vmatpush1.msra.mxu0 0.0
      %941 = vmatprep.subr.mxu0 0.0
      %942 = vmatpush1.msra.mxu0 0.0
      %943 = vmatprep.subr.mxu0 0.0
      %944 = vmatpush1.msra.mxu0 0.0
      %945 = vmatprep.subr.mxu0 0.0
      %946 = vmatpush1.msra.mxu0 0.0
      %947 = vmatprep.subr.mxu0 0.0
      %948 = vmatpush1.msra.mxu0 0.0
      %949 = vmatprep.subr.mxu0 0.0
      %950 = vmatpush1.msra.mxu0 0.0
      %951 = vmatprep.subr.mxu0 0.0
      %952 = vmatpush1.msra.mxu0 0.0
      %953 = vmatprep.subr.mxu0 0.0
      %954 = vmatpush1.msra.mxu0 0.0
      %955 = vmatprep.subr.mxu0 0.0
      %956 = vmatpush1.msra.mxu0 0.0
      %957 = vmatprep.subr.mxu0 0.0
      %958 = vmatpush1.msra.mxu0 0.0
      %959 = vmatprep.subr.mxu0 0.0
      %960 = vmatpush1.msra.mxu0 0.0
      %961 = vmatprep.subr.mxu0 0.0
      %962 = vmatpush1.msra.mxu0 0.0
      %963 = vmatprep.subr.mxu0 0.0
      %964 = vmatpush1.msra.mxu0 0.0
      %965 = vmatprep.subr.mxu0 0.0
      %966 = vmatpush1.msra.mxu0 0.0
      %967 = vmatprep.subr.mxu0 0.0
      %968 = vmatpush1.msra.mxu0 0.0
      %969 = vmatprep.subr.mxu0 0.0
      %970 = vmatpush1.msra.mxu0 0.0
      %971 = vmatprep.subr.mxu0 0.0
      %972 = vmatpush1.msra.mxu0 0.0
      %973 = vmatprep.subr.mxu0 0.0
      %974 = vmatpush1.msra.mxu0 0.0
      %975 = vmatprep.subr.mxu0 0.0
      %976 = vmatpush1.msra.mxu0 0.0
      %977 = vmatprep.subr.mxu0 0.0
      %978 = vmatpush1.msra.mxu0 0.0
      %979 = vmatprep.subr.mxu0 0.0
      %980 = vmatpush1.msra.mxu0 0.0
      %981 = vmatprep.subr.mxu0 0.0
      %982 = vmatpush1.msra.mxu0 0.0
      %983 = vmatprep.subr.mxu0 0.0
      %984 = vmatpush1.msra.mxu0 0.0
      %985 = vmatprep.subr.mxu0 0.0
      %986 = vmatpush1.msra.mxu0 0.0
      %987 = vmatprep.mubr.f32.mxu0 0.0
      %988 = vmatmul.mubr.f32.gmra.mrb[0].mxu0 %v825
      %v989 = vpop.f32.mrb[0].mxu0
      %v990 = vadd.f32 %v666, %v989
      %v991 = vpop.f32.mrb[0].mxu0
      %992 = vmatprep.mubr.f32.mxu0 0.0
      %993 = vmatmul.mubr.f32.gmra.mrb[0].mxu0 %v828
      %v994 = vpop.f32.mrb[0].mxu0
      %v995 = vadd.f32 %v671, %v994
      %v996 = vpop.f32.mrb[0].mxu0
      %997 = vmatprep.mubr.f32.mxu0 0.0
      %998 = vmatmul.mubr.f32.gmra.mrb[0].mxu0 %v831
      %v999 = vpop.f32.mrb[0].mxu0
      %v1000 = vadd.f32 %v676, %v999
      %v1001 = vpop.f32.mrb[0].mxu0
      %1002 = vmatprep.mubr.f32.mxu0 0.0
      %1003 = vmatmul.mubr.f32.gmra.mrb[0].mxu0 %v834
      %v1004 = vpop.f32.mrb[0].mxu0
      %v1005 = vadd.f32 %v681, %v1004
      %v1006 = vpop.f32.mrb[0].mxu0
      %1007 = vmatprep.mubr.f32.mxu0 0.0
      %1008 = vmatmul.mubr.f32.gmra.mrb[0].mxu0 %v837
      %v1009 = vpop.f32.mrb[0].mxu0
      %v1010 = vadd.f32 %v686, %v1009
      %v1011 = vpop.f32.mrb[0].mxu0
      %1012 = vmatprep.mubr.f32.mxu0 0.0
      %1013 = vmatmul.mubr.f32.gmra.mrb[0].mxu0 %v840
      %v1014 = vpop.f32.mrb[0].mxu0
      %v1015 = vadd.f32 %v691, %v1014
      %v1016 = vpop.f32.mrb[0].mxu0
      %1017 = vmatprep.mubr.f32.mxu0 0.0
      %1018 = vmatmul.mubr.f32.gmra.mrb[0].mxu0 %v843
      %v1019 = vpop.f32.mrb[0].mxu0
      %v1020 = vadd.f32 %v696, %v1019
      %v1021 = vpop.f32.mrb[0].mxu0
      %1022 = vmatprep.mubr.f32.mxu0 0.0
      %1023 = vmatmul.mubr.f32.gmra.mrb[0].mxu0 %v846
      %v1024 = vpop.f32.mrb[0].mxu0
      %v1025 = vadd.f32 %v701, %v1024
      %v1026 = vpop.f32.mrb[0].mxu0
      %1027 = vmatprep.mubr.f32.mxu0 0.0
      %1028 = vmatmul.mubr.f32.gmra.mrb[0].mxu0 %v849
      %v1029 = vpop.f32.mrb[0].mxu0
      %v1030 = vadd.f32 %v706, %v1029
      %v1031 = vpop.f32.mrb[0].mxu0
      %1032 = vmatprep.mubr.f32.mxu0 0.0
      %1033 = vmatmul.mubr.f32.gmra.mrb[0].mxu0 %v852
      %v1034 = vpop.f32.mrb[0].mxu0
      %v1035 = vadd.f32 %v711, %v1034
      %v1036 = vpop.f32.mrb[0].mxu0
      %1037 = vmatprep.mubr.f32.mxu0 0.0
      %1038 = vmatmul.mubr.f32.gmra.mrb[0].mxu0 %v855
      %v1039 = vpop.f32.mrb[0].mxu0
      %v1040 = vadd.f32 %v716, %v1039
      %v1041 = vpop.f32.mrb[0].mxu0
      %1042 = vmatprep.mubr.f32.mxu0 0.0
      %1043 = vmatmul.mubr.f32.gmra.mrb[0].mxu0 %v858
      %v1044 = vpop.f32.mrb[0].mxu0
      %v1045 = vadd.f32 %v721, %v1044
      %v1046 = vpop.f32.mrb[0].mxu0
      %1047 = vmatprep.mubr.f32.mxu0 0.0
      %1048 = vmatmul.mubr.f32.gmra.mrb[0].mxu0 %v861
      %v1049 = vpop.f32.mrb[0].mxu0
      %v1050 = vadd.f32 %v726, %v1049
      %v1051 = vpop.f32.mrb[0].mxu0
      %1052 = vmatprep.mubr.f32.mxu0 0.0
      %1053 = vmatmul.mubr.f32.gmra.mrb[0].mxu0 %v864
      %v1054 = vpop.f32.mrb[0].mxu0
      %v1055 = vadd.f32 %v731, %v1054
      %v1056 = vpop.f32.mrb[0].mxu0
      %1057 = vmatprep.mubr.f32.mxu0 0.0
      %1058 = vmatmul.mubr.f32.gmra.mrb[0].mxu0 %v867
      %v1059 = vpop.f32.mrb[0].mxu0
      %v1060 = vadd.f32 %v736, %v1059
      %v1061 = vpop.f32.mrb[0].mxu0
      %1062 = vmatprep.mubr.f32.mxu0 0.0
      %1063 = vmatmul.mubr.f32.gmra.mrb[0].mxu0 %v870
      %v1064 = vpop.f32.mrb[0].mxu0
      %v1065 = vadd.f32 %v741, %v1064
      %v1066 = vpop.f32.mrb[0].mxu0
      %1067 = vmatprep.mubr.f32.mxu0 0.0
      %1068 = vmatmul.mubr.f32.gmra.mrb[0].mxu0 %v873
      %v1069 = vpop.f32.mrb[0].mxu0
      %v1070 = vadd.f32 %v746, %v1069
      %v1071 = vpop.f32.mrb[0].mxu0
      %1072 = vmatprep.mubr.f32.mxu0 0.0
      %1073 = vmatmul.mubr.f32.gmra.mrb[0].mxu0 %v876
      %v1074 = vpop.f32.mrb[0].mxu0
      %v1075 = vadd.f32 %v751, %v1074
      %v1076 = vpop.f32.mrb[0].mxu0
      %1077 = vmatprep.mubr.f32.mxu0 0.0
      %1078 = vmatmul.mubr.f32.gmra.mrb[0].mxu0 %v879
      %v1079 = vpop.f32.mrb[0].mxu0
      %v1080 = vadd.f32 %v756, %v1079
      %v1081 = vpop.f32.mrb[0].mxu0
      %1082 = vmatprep.mubr.f32.mxu0 0.0
      %1083 = vmatmul.mubr.f32.gmra.mrb[0].mxu0 %v882
      %v1084 = vpop.f32.mrb[0].mxu0
      %v1085 = vadd.f32 %v761, %v1084
      %v1086 = vpop.f32.mrb[0].mxu0
      %1087 = vmatprep.mubr.f32.mxu0 0.0
      %1088 = vmatmul.mubr.f32.gmra.mrb[0].mxu0 %v885
      %v1089 = vpop.f32.mrb[0].mxu0
      %v1090 = vadd.f32 %v766, %v1089
      %v1091 = vpop.f32.mrb[0].mxu0
      %1092 = vmatprep.mubr.f32.mxu0 0.0
      %1093 = vmatmul.mubr.f32.gmra.mrb[0].mxu0 %v888
      %v1094 = vpop.f32.mrb[0].mxu0
      %v1095 = vadd.f32 %v771, %v1094
      %v1096 = vpop.f32.mrb[0].mxu0
      %1097 = vmatprep.mubr.f32.mxu0 0.0
      %1098 = vmatmul.mubr.f32.gmra.mrb[0].mxu0 %v891
      %v1099 = vpop.f32.mrb[0].mxu0
      %v1100 = vadd.f32 %v776, %v1099
      %v1101 = vpop.f32.mrb[0].mxu0
      %1102 = vmatprep.mubr.f32.mxu0 0.0
      %1103 = vmatmul.mubr.f32.gmra.mrb[0].mxu0 %v894
      %v1104 = vpop.f32.mrb[0].mxu0
      %v1105 = vadd.f32 %v781, %v1104
      %v1106 = vpop.f32.mrb[0].mxu0
      %1107 = vmatprep.mubr.f32.mxu0 0.0
      %1108 = vmatmul.mubr.f32.gmra.mrb[0].mxu0 %v897
      %v1109 = vpop.f32.mrb[0].mxu0
      %v1110 = vadd.f32 %v786, %v1109
      %v1111 = vpop.f32.mrb[0].mxu0
      %1112 = vmatprep.mubr.f32.mxu0 0.0
      %1113 = vmatmul.mubr.f32.gmra.mrb[0].mxu0 %v900
      %v1114 = vpop.f32.mrb[0].mxu0
      %v1115 = vadd.f32 %v791, %v1114
      %v1116 = vpop.f32.mrb[0].mxu0
      %1117 = vmatprep.mubr.f32.mxu0 0.0
      %1118 = vmatmul.mubr.f32.gmra.mrb[0].mxu0 %v903
      %v1119 = vpop.f32.mrb[0].mxu0
      %v1120 = vadd.f32 %v796, %v1119
      %v1121 = vpop.f32.mrb[0].mxu0
      %1122 = vmatprep.mubr.f32.mxu0 0.0
      %1123 = vmatmul.mubr.f32.gmra.mrb[0].mxu0 %v906
      %v1124 = vpop.f32.mrb[0].mxu0
      %v1125 = vadd.f32 %v801, %v1124
      %v1126 = vpop.f32.mrb[0].mxu0
      %1127 = vmatprep.mubr.f32.mxu0 0.0
      %1128 = vmatmul.mubr.f32.gmra.mrb[0].mxu0 %v909
      %v1129 = vpop.f32.mrb[0].mxu0
      %v1130 = vadd.f32 %v806, %v1129
      %v1131 = vpop.f32.mrb[0].mxu0
      %1132 = vmatprep.mubr.f32.mxu0 0.0
      %1133 = vmatmul.mubr.f32.gmra.mrb[0].mxu0 %v912
      %v1134 = vpop.f32.mrb[0].mxu0
      %v1135 = vadd.f32 %v811, %v1134
      %v1136 = vpop.f32.mrb[0].mxu0
      %1137 = vmatprep.mubr.f32.mxu0 0.0
      %1138 = vmatmul.mubr.f32.gmra.mrb[0].mxu0 %v915
      %v1139 = vpop.f32.mrb[0].mxu0
      %v1140 = vadd.f32 %v816, %v1139
      %v1141 = vpop.f32.mrb[0].mxu0
      %1142 = vmatprep.mubr.f32.mxu0 0.0
      %1143 = vmatmul.mubr.f32.gmra.mrb[0].mxu0 %v918
      %v1144 = vpop.f32.mrb[0].mxu0
      %v1145 = vadd.f32 %v821, %v1144
      %v1146 = vpop.f32.mrb[0].mxu0
      %1147 = vdwg.mxu0
      %v1148 = vld [vmem:[#allocation2 + $0x2] sm:$0xff]
      %v1149 = vld [vmem:[#allocation2 + $0xa] sm:$0xff]
      %v1150 = vld [vmem:[#allocation2 + $0x1a] sm:$0xff]
      %v1151 = vld [vmem:[#allocation2 + $0x22] sm:$0xff]
      %v1152 = vld [vmem:[#allocation2 + $0x32] sm:$0xff]
      %v1153 = vld [vmem:[#allocation2 + $0x3a] sm:$0xff]
      %v1154 = vld [vmem:[#allocation2 + $0x4a] sm:$0xff]
      %v1155 = vld [vmem:[#allocation2 + $0x52] sm:$0xff]
      %v1156 = vld [vmem:[#allocation2 + $0x62] sm:$0xff]
      %v1157 = vld [vmem:[#allocation2 + $0x6a] sm:$0xff]
      %v1158 = vld [vmem:[#allocation2 + $0x7a] sm:$0xff]
      %v1159 = vld [vmem:[#allocation2 + $0x82] sm:$0xff]
      %v1160 = vld [vmem:[#allocation2 + $0x92] sm:$0xff]
      %v1161 = vld [vmem:[#allocation2 + $0x9a] sm:$0xff]
      %v1162 = vld [vmem:[#allocation2 + $0xaa] sm:$0xff]
      %v1163 = vld [vmem:[#allocation2 + $0xb2] sm:$0xff]
      %v1164 = vld [vmem:[#allocation2 + $0xc2] sm:$0xff]
      %v1165 = vld [vmem:[#allocation2 + $0xca] sm:$0xff]
      %v1166 = vld [vmem:[#allocation2 + $0xda] sm:$0xff]
      %v1167 = vld [vmem:[#allocation2 + $0xe2] sm:$0xff]
      %v1168 = vld [vmem:[#allocation2 + $0xf2] sm:$0xff]
      %v1169 = vld [vmem:[#allocation2 + $0xfa] sm:$0xff]
      %v1170 = vld [vmem:[#allocation2 + $0x10a] sm:$0xff]
      %v1171 = vld [vmem:[#allocation2 + $0x112] sm:$0xff]
      %v1172 = vld [vmem:[#allocation2 + $0x122] sm:$0xff]
      %v1173 = vld [vmem:[#allocation2 + $0x12a] sm:$0xff]
      %v1174 = vld [vmem:[#allocation2 + $0x13a] sm:$0xff]
      %v1175 = vld [vmem:[#allocation2 + $0x142] sm:$0xff]
      %v1176 = vld [vmem:[#allocation2 + $0x152] sm:$0xff]
      %v1177 = vld [vmem:[#allocation2 + $0x15a] sm:$0xff]
      %v1178 = vld [vmem:[#allocation2 + $0x16a] sm:$0xff]
      %v1179 = vld [vmem:[#allocation2 + $0x172] sm:$0xff]
      %s1180 = scalar_lea.vmem %s2, 8
      %v1181 = vld [vmem:[%s1180] sm:$0xf]
      %v1183 = vsel %vm368, %v1148, 0
      %v1186 = vsel %vm368, %v1149, 0
      %v1189 = vsel %vm368, %v1150, 0
      %v1192 = vsel %vm368, %v1151, 0
      %v1195 = vsel %vm368, %v1152, 0
      %v1198 = vsel %vm368, %v1153, 0
      %v1201 = vsel %vm368, %v1154, 0
      %v1204 = vsel %vm368, %v1155, 0
      %v1207 = vsel %vm368, %v1156, 0
      %v1210 = vsel %vm368, %v1157, 0
      %v1213 = vsel %vm368, %v1158, 0
      %v1216 = vsel %vm368, %v1159, 0
      %v1219 = vsel %vm368, %v1160, 0
      %v1222 = vsel %vm368, %v1161, 0
      %v1225 = vsel %vm368, %v1162, 0
      %v1228 = vsel %vm368, %v1163, 0
      %v1231 = vsel %vm368, %v1164, 0
      %v1234 = vsel %vm368, %v1165, 0
      %v1237 = vsel %vm368, %v1166, 0
      %v1240 = vsel %vm368, %v1167, 0
      %v1243 = vsel %vm368, %v1168, 0
      %v1246 = vsel %vm368, %v1169, 0
      %v1249 = vsel %vm368, %v1170, 0
      %v1252 = vsel %vm368, %v1171, 0
      %v1255 = vsel %vm368, %v1172, 0
      %v1258 = vsel %vm368, %v1173, 0
      %v1261 = vsel %vm368, %v1174, 0
      %v1264 = vsel %vm368, %v1175, 0
      %v1267 = vsel %vm368, %v1176, 0
      %v1270 = vsel %vm368, %v1177, 0
      %v1273 = vsel %vm368, %v1178, 0
      %v1276 = vsel %vm368, %v1179, 0
      %v1279 = vsel %vm595, %v1181, 0
      %1281 = vmatprep.subr.mxu0 0.0
      %1282 = vmatpush1.msra.mxu0 %v1279
      %1283 = vmatprep.subr.mxu0 0.0
      %1284 = vmatpush1.msra.mxu0 0.0
      %1285 = vmatprep.subr.mxu0 0.0
      %1286 = vmatpush1.msra.mxu0 0.0
      %1287 = vmatprep.subr.mxu0 0.0
      %1288 = vmatpush1.msra.mxu0 0.0
      %1289 = vmatprep.subr.mxu0 0.0
      %1290 = vmatpush1.msra.mxu0 0.0
      %1291 = vmatprep.subr.mxu0 0.0
      %1292 = vmatpush1.msra.mxu0 0.0
      %1293 = vmatprep.subr.mxu0 0.0
      %1294 = vmatpush1.msra.mxu0 0.0
      %1295 = vmatprep.subr.mxu0 0.0
      %1296 = vmatpush1.msra.mxu0 0.0
      %1297 = vmatprep.subr.mxu0 0.0
      %1298 = vmatpush1.msra.mxu0 0.0
      %1299 = vmatprep.subr.mxu0 0.0
      %1300 = vmatpush1.msra.mxu0 0.0
      %1301 = vmatprep.subr.mxu0 0.0
      %1302 = vmatpush1.msra.mxu0 0.0
      %1303 = vmatprep.subr.mxu0 0.0
      %1304 = vmatpush1.msra.mxu0 0.0
      %1305 = vmatprep.subr.mxu0 0.0
      %1306 = vmatpush1.msra.mxu0 0.0
      %1307 = vmatprep.subr.mxu0 0.0
      %1308 = vmatpush1.msra.mxu0 0.0
      %1309 = vmatprep.subr.mxu0 0.0
      %1310 = vmatpush1.msra.mxu0 0.0
      %1311 = vmatprep.subr.mxu0 0.0
      %1312 = vmatpush1.msra.mxu0 0.0
      %1313 = vmatprep.subr.mxu0 0.0
      %1314 = vmatpush1.msra.mxu0 0.0
      %1315 = vmatprep.subr.mxu0 0.0
      %1316 = vmatpush1.msra.mxu0 0.0
      %1317 = vmatprep.subr.mxu0 0.0
      %1318 = vmatpush1.msra.mxu0 0.0
      %1319 = vmatprep.subr.mxu0 0.0
      %1320 = vmatpush1.msra.mxu0 0.0
      %1321 = vmatprep.subr.mxu0 0.0
      %1322 = vmatpush1.msra.mxu0 0.0
      %1323 = vmatprep.subr.mxu0 0.0
      %1324 = vmatpush1.msra.mxu0 0.0
      %1325 = vmatprep.subr.mxu0 0.0
      %1326 = vmatpush1.msra.mxu0 0.0
      %1327 = vmatprep.subr.mxu0 0.0
      %1328 = vmatpush1.msra.mxu0 0.0
      %1329 = vmatprep.subr.mxu0 0.0
      %1330 = vmatpush1.msra.mxu0 0.0
      %1331 = vmatprep.subr.mxu0 0.0
      %1332 = vmatpush1.msra.mxu0 0.0
      %1333 = vmatprep.subr.mxu0 0.0
      %1334 = vmatpush1.msra.mxu0 0.0
      %1335 = vmatprep.subr.mxu0 0.0
      %1336 = vmatpush1.msra.mxu0 0.0
      %1337 = vmatprep.subr.mxu0 0.0
      %1338 = vmatpush1.msra.mxu0 0.0
      %1339 = vmatprep.subr.mxu0 0.0
      %1340 = vmatpush1.msra.mxu0 0.0
      %1341 = vmatprep.subr.mxu0 0.0
      %1342 = vmatpush1.msra.mxu0 0.0
      %1343 = vmatprep.subr.mxu0 0.0
      %1344 = vmatpush1.msra.mxu0 0.0
      %1345 = vmatprep.mubr.f32.mxu0 0.0
      %1346 = vmatmul.mubr.f32.gmra.mrb[0].mxu0 %v1183
      %v1347 = vpop.f32.mrb[0].mxu0
      %v1348 = vadd.f32 0.0, %v1347
      %v1349 = vpop.f32.mrb[0].mxu0
      %1350 = vmatprep.mubr.f32.mxu0 0.0
      %1351 = vmatmul.mubr.f32.gmra.mrb[0].mxu0 %v1186
      %v1352 = vpop.f32.mrb[0].mxu0
      %v1353 = vadd.f32 0.0, %v1352
      %v1354 = vpop.f32.mrb[0].mxu0
      %1355 = vmatprep.mubr.f32.mxu0 0.0
      %1356 = vmatmul.mubr.f32.gmra.mrb[0].mxu0 %v1189
      %v1357 = vpop.f32.mrb[0].mxu0
      %v1358 = vadd.f32 0.0, %v1357
      %v1359 = vpop.f32.mrb[0].mxu0
      %1360 = vmatprep.mubr.f32.mxu0 0.0
      %1361 = vmatmul.mubr.f32.gmra.mrb[0].mxu0 %v1192
      %v1362 = vpop.f32.mrb[0].mxu0
      %v1363 = vadd.f32 0.0, %v1362
      %v1364 = vpop.f32.mrb[0].mxu0
      %1365 = vmatprep.mubr.f32.mxu0 0.0
      %1366 = vmatmul.mubr.f32.gmra.mrb[0].mxu0 %v1195
      %v1367 = vpop.f32.mrb[0].mxu0
      %v1368 = vadd.f32 0.0, %v1367
      %v1369 = vpop.f32.mrb[0].mxu0
      %1370 = vmatprep.mubr.f32.mxu0 0.0
      %1371 = vmatmul.mubr.f32.gmra.mrb[0].mxu0 %v1198
      %v1372 = vpop.f32.mrb[0].mxu0
      %v1373 = vadd.f32 0.0, %v1372
      %v1374 = vpop.f32.mrb[0].mxu0
      %1375 = vmatprep.mubr.f32.mxu0 0.0
      %1376 = vmatmul.mubr.f32.gmra.mrb[0].mxu0 %v1201
      %v1377 = vpop.f32.mrb[0].mxu0
      %v1378 = vadd.f32 0.0, %v1377
      %v1379 = vpop.f32.mrb[0].mxu0
      %1380 = vmatprep.mubr.f32.mxu0 0.0
      %1381 = vmatmul.mubr.f32.gmra.mrb[0].mxu0 %v1204
      %v1382 = vpop.f32.mrb[0].mxu0
      %v1383 = vadd.f32 0.0, %v1382
      %v1384 = vpop.f32.mrb[0].mxu0
      %1385 = vmatprep.mubr.f32.mxu0 0.0
      %1386 = vmatmul.mubr.f32.gmra.mrb[0].mxu0 %v1207
      %v1387 = vpop.f32.mrb[0].mxu0
      %v1388 = vadd.f32 0.0, %v1387
      %v1389 = vpop.f32.mrb[0].mxu0
      %1390 = vmatprep.mubr.f32.mxu0 0.0
      %1391 = vmatmul.mubr.f32.gmra.mrb[0].mxu0 %v1210
      %v1392 = vpop.f32.mrb[0].mxu0
      %v1393 = vadd.f32 0.0, %v1392
      %v1394 = vpop.f32.mrb[0].mxu0
      %1395 = vmatprep.mubr.f32.mxu0 0.0
      %1396 = vmatmul.mubr.f32.gmra.mrb[0].mxu0 %v1213
      %v1397 = vpop.f32.mrb[0].mxu0
      %v1398 = vadd.f32 0.0, %v1397
      %v1399 = vpop.f32.mrb[0].mxu0
      %1400 = vmatprep.mubr.f32.mxu0 0.0
      %1401 = vmatmul.mubr.f32.gmra.mrb[0].mxu0 %v1216
      %v1402 = vpop.f32.mrb[0].mxu0
      %v1403 = vadd.f32 0.0, %v1402
      %v1404 = vpop.f32.mrb[0].mxu0
      %1405 = vmatprep.mubr.f32.mxu0 0.0
      %1406 = vmatmul.mubr.f32.gmra.mrb[0].mxu0 %v1219
      %v1407 = vpop.f32.mrb[0].mxu0
      %v1408 = vadd.f32 0.0, %v1407
      %v1409 = vpop.f32.mrb[0].mxu0
      %1410 = vmatprep.mubr.f32.mxu0 0.0
      %1411 = vmatmul.mubr.f32.gmra.mrb[0].mxu0 %v1222
      %v1412 = vpop.f32.mrb[0].mxu0
      %v1413 = vadd.f32 0.0, %v1412
      %v1414 = vpop.f32.mrb[0].mxu0
      %1415 = vmatprep.mubr.f32.mxu0 0.0
      %1416 = vmatmul.mubr.f32.gmra.mrb[0].mxu0 %v1225
      %v1417 = vpop.f32.mrb[0].mxu0
      %v1418 = vadd.f32 0.0, %v1417
      %v1419 = vpop.f32.mrb[0].mxu0
      %1420 = vmatprep.mubr.f32.mxu0 0.0
      %1421 = vmatmul.mubr.f32.gmra.mrb[0].mxu0 %v1228
      %v1422 = vpop.f32.mrb[0].mxu0
      %v1423 = vadd.f32 0.0, %v1422
      %v1424 = vpop.f32.mrb[0].mxu0
      %1425 = vmatprep.mubr.f32.mxu0 0.0
      %1426 = vmatmul.mubr.f32.gmra.mrb[0].mxu0 %v1231
      %v1427 = vpop.f32.mrb[0].mxu0
      %v1428 = vadd.f32 0.0, %v1427
      %v1429 = vpop.f32.mrb[0].mxu0
      %1430 = vmatprep.mubr.f32.mxu0 0.0
      %1431 = vmatmul.mubr.f32.gmra.mrb[0].mxu0 %v1234
      %v1432 = vpop.f32.mrb[0].mxu0
      %v1433 = vadd.f32 0.0, %v1432
      %v1434 = vpop.f32.mrb[0].mxu0
      %1435 = vmatprep.mubr.f32.mxu0 0.0
      %1436 = vmatmul.mubr.f32.gmra.mrb[0].mxu0 %v1237
      %v1437 = vpop.f32.mrb[0].mxu0
      %v1438 = vadd.f32 0.0, %v1437
      %v1439 = vpop.f32.mrb[0].mxu0
      %1440 = vmatprep.mubr.f32.mxu0 0.0
      %1441 = vmatmul.mubr.f32.gmra.mrb[0].mxu0 %v1240
      %v1442 = vpop.f32.mrb[0].mxu0
      %v1443 = vadd.f32 0.0, %v1442
      %v1444 = vpop.f32.mrb[0].mxu0
      %1445 = vmatprep.mubr.f32.mxu0 0.0
      %1446 = vmatmul.mubr.f32.gmra.mrb[0].mxu0 %v1243
      %v1447 = vpop.f32.mrb[0].mxu0
      %v1448 = vadd.f32 0.0, %v1447
      %v1449 = vpop.f32.mrb[0].mxu0
      %1450 = vmatprep.mubr.f32.mxu0 0.0
      %1451 = vmatmul.mubr.f32.gmra.mrb[0].mxu0 %v1246
      %v1452 = vpop.f32.mrb[0].mxu0
      %v1453 = vadd.f32 0.0, %v1452
      %v1454 = vpop.f32.mrb[0].mxu0
      %1455 = vmatprep.mubr.f32.mxu0 0.0
      %1456 = vmatmul.mubr.f32.gmra.mrb[0].mxu0 %v1249
      %v1457 = vpop.f32.mrb[0].mxu0
      %v1458 = vadd.f32 0.0, %v1457
      %v1459 = vpop.f32.mrb[0].mxu0
      %1460 = vmatprep.mubr.f32.mxu0 0.0
      %1461 = vmatmul.mubr.f32.gmra.mrb[0].mxu0 %v1252
      %v1462 = vpop.f32.mrb[0].mxu0
      %v1463 = vadd.f32 0.0, %v1462
      %v1464 = vpop.f32.mrb[0].mxu0
      %1465 = vmatprep.mubr.f32.mxu0 0.0
      %1466 = vmatmul.mubr.f32.gmra.mrb[0].mxu0 %v1255
      %v1467 = vpop.f32.mrb[0].mxu0
      %v1468 = vadd.f32 0.0, %v1467
      %v1469 = vpop.f32.mrb[0].mxu0
      %1470 = vmatprep.mubr.f32.mxu0 0.0
      %1471 = vmatmul.mubr.f32.gmra.mrb[0].mxu0 %v1258
      %v1472 = vpop.f32.mrb[0].mxu0
      %v1473 = vadd.f32 0.0, %v1472
      %v1474 = vpop.f32.mrb[0].mxu0
      %1475 = vmatprep.mubr.f32.mxu0 0.0
      %1476 = vmatmul.mubr.f32.gmra.mrb[0].mxu0 %v1261
      %v1477 = vpop.f32.mrb[0].mxu0
      %v1478 = vadd.f32 0.0, %v1477
      %v1479 = vpop.f32.mrb[0].mxu0
      %1480 = vmatprep.mubr.f32.mxu0 0.0
      %1481 = vmatmul.mubr.f32.gmra.mrb[0].mxu0 %v1264
      %v1482 = vpop.f32.mrb[0].mxu0
      %v1483 = vadd.f32 0.0, %v1482
      %v1484 = vpop.f32.mrb[0].mxu0
      %1485 = vmatprep.mubr.f32.mxu0 0.0
      %1486 = vmatmul.mubr.f32.gmra.mrb[0].mxu0 %v1267
      %v1487 = vpop.f32.mrb[0].mxu0
      %v1488 = vadd.f32 0.0, %v1487
      %v1489 = vpop.f32.mrb[0].mxu0
      %1490 = vmatprep.mubr.f32.mxu0 0.0
      %1491 = vmatmul.mubr.f32.gmra.mrb[0].mxu0 %v1270
      %v1492 = vpop.f32.mrb[0].mxu0
      %v1493 = vadd.f32 0.0, %v1492
      %v1494 = vpop.f32.mrb[0].mxu0
      %1495 = vmatprep.mubr.f32.mxu0 0.0
      %1496 = vmatmul.mubr.f32.gmra.mrb[0].mxu0 %v1273
      %v1497 = vpop.f32.mrb[0].mxu0
      %v1498 = vadd.f32 0.0, %v1497
      %v1499 = vpop.f32.mrb[0].mxu0
      %1500 = vmatprep.mubr.f32.mxu0 0.0
      %1501 = vmatmul.mubr.f32.gmra.mrb[0].mxu0 %v1276
      %v1502 = vpop.f32.mrb[0].mxu0
      %v1503 = vadd.f32 0.0, %v1502
      %v1504 = vpop.f32.mrb[0].mxu0
      %1505 = vdwg.mxu0
      %v1506 = vadd.f32 %v990, %v1348
      %v1507 = vadd.f32 %v995, %v1353
      %v1508 = vadd.f32 %v1000, %v1358
      %v1509 = vadd.f32 %v1005, %v1363
      %v1510 = vadd.f32 %v1010, %v1368
      %v1511 = vadd.f32 %v1015, %v1373
      %v1512 = vadd.f32 %v1020, %v1378
      %v1513 = vadd.f32 %v1025, %v1383
      %v1514 = vadd.f32 %v1030, %v1388
      %v1515 = vadd.f32 %v1035, %v1393
      %v1516 = vadd.f32 %v1040, %v1398
      %v1517 = vadd.f32 %v1045, %v1403
      %v1518 = vadd.f32 %v1050, %v1408
      %v1519 = vadd.f32 %v1055, %v1413
      %v1520 = vadd.f32 %v1060, %v1418
      %v1521 = vadd.f32 %v1065, %v1423
      %v1522 = vadd.f32 %v1070, %v1428
      %v1523 = vadd.f32 %v1075, %v1433
      %v1524 = vadd.f32 %v1080, %v1438
      %v1525 = vadd.f32 %v1085, %v1443
      %v1526 = vadd.f32 %v1090, %v1448
      %v1527 = vadd.f32 %v1095, %v1453
      %v1528 = vadd.f32 %v1100, %v1458
      %v1529 = vadd.f32 %v1105, %v1463
      %v1530 = vadd.f32 %v1110, %v1468
      %v1531 = vadd.f32 %v1115, %v1473
      %v1532 = vadd.f32 %v1120, %v1478
      %v1533 = vadd.f32 %v1125, %v1483
      %v1534 = vadd.f32 %v1130, %v1488
      %v1535 = vadd.f32 %v1135, %v1493
      %v1536 = vadd.f32 %v1140, %v1498
      %v1537 = vadd.f32 %v1145, %v1503
      %s1538 = scalar_lea.vmem [#allocation2], 24
      %v1539 = vld [vmem:[%s1538] sm:$0xff]
      %v1540 = vld [vmem:[%s1538 + $0x8] sm:$0xff]
      %v1541 = vld [vmem:[%s1538 + $0x18] sm:$0xff]
      %v1542 = vld [vmem:[%s1538 + $0x20] sm:$0xff]
      %v1543 = vld [vmem:[%s1538 + $0x30] sm:$0xff]
      %v1544 = vld [vmem:[%s1538 + $0x38] sm:$0xff]
      %v1545 = vld [vmem:[%s1538 + $0x48] sm:$0xff]
      %v1546 = vld [vmem:[%s1538 + $0x50] sm:$0xff]
      %v1547 = vld [vmem:[%s1538 + $0x60] sm:$0xff]
      %v1548 = vld [vmem:[%s1538 + $0x68] sm:$0xff]
      %v1549 = vld [vmem:[%s1538 + $0x78] sm:$0xff]
      %v1550 = vld [vmem:[%s1538 + $0x80] sm:$0xff]
      %v1551 = vld [vmem:[%s1538 + $0x90] sm:$0xff]
      %v1552 = vld [vmem:[%s1538 + $0x98] sm:$0xff]
      %v1553 = vld [vmem:[%s1538 + $0xa8] sm:$0xff]
      %v1554 = vld [vmem:[%s1538 + $0xb0] sm:$0xff]
      %v1555 = vld [vmem:[%s1538 + $0xc0] sm:$0xff]
      %v1556 = vld [vmem:[%s1538 + $0xc8] sm:$0xff]
      %v1557 = vld [vmem:[%s1538 + $0xd8] sm:$0xff]
      %v1558 = vld [vmem:[%s1538 + $0xe0] sm:$0xff]
      %v1559 = vld [vmem:[%s1538 + $0xf0] sm:$0xff]
      %v1560 = vld [vmem:[%s1538 + $0xf8] sm:$0xff]
      %v1561 = vld [vmem:[%s1538 + $0x108] sm:$0xff]
      %v1562 = vld [vmem:[%s1538 + $0x110] sm:$0xff]
      %v1563 = vld [vmem:[%s1538 + $0x120] sm:$0xff]
      %v1564 = vld [vmem:[%s1538 + $0x128] sm:$0xff]
      %v1565 = vld [vmem:[%s1538 + $0x138] sm:$0xff]
      %v1566 = vld [vmem:[%s1538 + $0x140] sm:$0xff]
      %v1567 = vld [vmem:[%s1538 + $0x150] sm:$0xff]
      %v1568 = vld [vmem:[%s1538 + $0x158] sm:$0xff]
      %v1569 = vld [vmem:[%s1538 + $0x168] sm:$0xff]
      %v1570 = vld [vmem:[%s1538 + $0x170] sm:$0xff]
      %s1571 = scalar_lea.vmem %s2, 12
      %v1572 = vld [vmem:[%s1571] sm:$0xf]
      %v1574 = vsel %vm368, %v1539, 0
      %v1577 = vsel %vm368, %v1540, 0
      %v1580 = vsel %vm368, %v1541, 0
      %v1583 = vsel %vm368, %v1542, 0
      %v1586 = vsel %vm368, %v1543, 0
      %v1589 = vsel %vm368, %v1544, 0
      %v1592 = vsel %vm368, %v1545, 0
      %v1595 = vsel %vm368, %v1546, 0
      %v1598 = vsel %vm368, %v1547, 0
      %v1601 = vsel %vm368, %v1548, 0
      %v1604 = vsel %vm368, %v1549, 0
      %v1607 = vsel %vm368, %v1550, 0
      %v1610 = vsel %vm368, %v1551, 0
      %v1613 = vsel %vm368, %v1552, 0
      %v1616 = vsel %vm368, %v1553, 0
      %v1619 = vsel %vm368, %v1554, 0
      %v1622 = vsel %vm368, %v1555, 0
      %v1625 = vsel %vm368, %v1556, 0
      %v1628 = vsel %vm368, %v1557, 0
      %v1631 = vsel %vm368, %v1558, 0
      %v1634 = vsel %vm368, %v1559, 0
      %v1637 = vsel %vm368, %v1560, 0
      %v1640 = vsel %vm368, %v1561, 0
      %v1643 = vsel %vm368, %v1562, 0
      %v1646 = vsel %vm368, %v1563, 0
      %v1649 = vsel %vm368, %v1564, 0
      %v1652 = vsel %vm368, %v1565, 0
      %v1655 = vsel %vm368, %v1566, 0
      %v1658 = vsel %vm368, %v1567, 0
      %v1661 = vsel %vm368, %v1568, 0
      %v1664 = vsel %vm368, %v1569, 0
      %v1667 = vsel %vm368, %v1570, 0
      %v1670 = vsel %vm595, %v1572, 0
      %1672 = vmatprep.subr.mxu0 0.0
      %1673 = vmatpush1.msra.mxu0 %v1670
      %1674 = vmatprep.subr.mxu0 0.0
      %1675 = vmatpush1.msra.mxu0 0.0
      %1676 = vmatprep.subr.mxu0 0.0
      %1677 = vmatpush1.msra.mxu0 0.0
      %1678 = vmatprep.subr.mxu0 0.0
      %1679 = vmatpush1.msra.mxu0 0.0
      %1680 = vmatprep.subr.mxu0 0.0
      %1681 = vmatpush1.msra.mxu0 0.0
      %1682 = vmatprep.subr.mxu0 0.0
      %1683 = vmatpush1.msra.mxu0 0.0
      %1684 = vmatprep.subr.mxu0 0.0
      %1685 = vmatpush1.msra.mxu0 0.0
      %1686 = vmatprep.subr.mxu0 0.0
      %1687 = vmatpush1.msra.mxu0 0.0
      %1688 = vmatprep.subr.mxu0 0.0
      %1689 = vmatpush1.msra.mxu0 0.0
      %1690 = vmatprep.subr.mxu0 0.0
      %1691 = vmatpush1.msra.mxu0 0.0
      %1692 = vmatprep.subr.mxu0 0.0
      %1693 = vmatpush1.msra.mxu0 0.0
      %1694 = vmatprep.subr.mxu0 0.0
      %1695 = vmatpush1.msra.mxu0 0.0
      %1696 = vmatprep.subr.mxu0 0.0
      %1697 = vmatpush1.msra.mxu0 0.0
      %1698 = vmatprep.subr.mxu0 0.0
      %1699 = vmatpush1.msra.mxu0 0.0
      %1700 = vmatprep.subr.mxu0 0.0
      %1701 = vmatpush1.msra.mxu0 0.0
      %1702 = vmatprep.subr.mxu0 0.0
      %1703 = vmatpush1.msra.mxu0 0.0
      %1704 = vmatprep.subr.mxu0 0.0
      %1705 = vmatpush1.msra.mxu0 0.0
      %1706 = vmatprep.subr.mxu0 0.0
      %1707 = vmatpush1.msra.mxu0 0.0
      %1708 = vmatprep.subr.mxu0 0.0
      %1709 = vmatpush1.msra.mxu0 0.0
      %1710 = vmatprep.subr.mxu0 0.0
      %1711 = vmatpush1.msra.mxu0 0.0
      %1712 = vmatprep.subr.mxu0 0.0
      %1713 = vmatpush1.msra.mxu0 0.0
      %1714 = vmatprep.subr.mxu0 0.0
      %1715 = vmatpush1.msra.mxu0 0.0
      %1716 = vmatprep.subr.mxu0 0.0
      %1717 = vmatpush1.msra.mxu0 0.0
      %1718 = vmatprep.subr.mxu0 0.0
      %1719 = vmatpush1.msra.mxu0 0.0
      %1720 = vmatprep.subr.mxu0 0.0
      %1721 = vmatpush1.msra.mxu0 0.0
      %1722 = vmatprep.subr.mxu0 0.0
      %1723 = vmatpush1.msra.mxu0 0.0
      %1724 = vmatprep.subr.mxu0 0.0
      %1725 = vmatpush1.msra.mxu0 0.0
      %1726 = vmatprep.subr.mxu0 0.0
      %1727 = vmatpush1.msra.mxu0 0.0
      %1728 = vmatprep.subr.mxu0 0.0
      %1729 = vmatpush1.msra.mxu0 0.0
      %1730 = vmatprep.subr.mxu0 0.0
      %1731 = vmatpush1.msra.mxu0 0.0
      %1732 = vmatprep.subr.mxu0 0.0
      %1733 = vmatpush1.msra.mxu0 0.0
      %1734 = vmatprep.subr.mxu0 0.0
      %1735 = vmatpush1.msra.mxu0 0.0
      %1736 = vmatprep.mubr.f32.mxu0 0.0
      %1737 = vmatmul.mubr.f32.gmra.mrb[0].mxu0 %v1574
      %v1738 = vpop.f32.mrb[0].mxu0
      %v1739 = vadd.f32 0.0, %v1738
      %v1740 = vpop.f32.mrb[0].mxu0
      %1741 = vmatprep.mubr.f32.mxu0 0.0
      %1742 = vmatmul.mubr.f32.gmra.mrb[0].mxu0 %v1577
      %v1743 = vpop.f32.mrb[0].mxu0
      %v1744 = vadd.f32 0.0, %v1743
      %v1745 = vpop.f32.mrb[0].mxu0
      %1746 = vmatprep.mubr.f32.mxu0 0.0
      %1747 = vmatmul.mubr.f32.gmra.mrb[0].mxu0 %v1580
      %v1748 = vpop.f32.mrb[0].mxu0
      %v1749 = vadd.f32 0.0, %v1748
      %v1750 = vpop.f32.mrb[0].mxu0
      %1751 = vmatprep.mubr.f32.mxu0 0.0
      %1752 = vmatmul.mubr.f32.gmra.mrb[0].mxu0 %v1583
      %v1753 = vpop.f32.mrb[0].mxu0
      %v1754 = vadd.f32 0.0, %v1753
      %v1755 = vpop.f32.mrb[0].mxu0
      %1756 = vmatprep.mubr.f32.mxu0 0.0
      %1757 = vmatmul.mubr.f32.gmra.mrb[0].mxu0 %v1586
      %v1758 = vpop.f32.mrb[0].mxu0
      %v1759 = vadd.f32 0.0, %v1758
      %v1760 = vpop.f32.mrb[0].mxu0
      %1761 = vmatprep.mubr.f32.mxu0 0.0
      %1762 = vmatmul.mubr.f32.gmra.mrb[0].mxu0 %v1589
      %v1763 = vpop.f32.mrb[0].mxu0
      %v1764 = vadd.f32 0.0, %v1763
      %v1765 = vpop.f32.mrb[0].mxu0
      %1766 = vmatprep.mubr.f32.mxu0 0.0
      %1767 = vmatmul.mubr.f32.gmra.mrb[0].mxu0 %v1592
      %v1768 = vpop.f32.mrb[0].mxu0
      %v1769 = vadd.f32 0.0, %v1768
      %v1770 = vpop.f32.mrb[0].mxu0
      %1771 = vmatprep.mubr.f32.mxu0 0.0
      %1772 = vmatmul.mubr.f32.gmra.mrb[0].mxu0 %v1595
      %v1773 = vpop.f32.mrb[0].mxu0
      %v1774 = vadd.f32 0.0, %v1773
      %v1775 = vpop.f32.mrb[0].mxu0
      %1776 = vmatprep.mubr.f32.mxu0 0.0
      %1777 = vmatmul.mubr.f32.gmra.mrb[0].mxu0 %v1598
      %v1778 = vpop.f32.mrb[0].mxu0
      %v1779 = vadd.f32 0.0, %v1778
      %v1780 = vpop.f32.mrb[0].mxu0
      %1781 = vmatprep.mubr.f32.mxu0 0.0
      %1782 = vmatmul.mubr.f32.gmra.mrb[0].mxu0 %v1601
      %v1783 = vpop.f32.mrb[0].mxu0
      %v1784 = vadd.f32 0.0, %v1783
      %v1785 = vpop.f32.mrb[0].mxu0
      %1786 = vmatprep.mubr.f32.mxu0 0.0
      %1787 = vmatmul.mubr.f32.gmra.mrb[0].mxu0 %v1604
      %v1788 = vpop.f32.mrb[0].mxu0
      %v1789 = vadd.f32 0.0, %v1788
      %v1790 = vpop.f32.mrb[0].mxu0
      %1791 = vmatprep.mubr.f32.mxu0 0.0
      %1792 = vmatmul.mubr.f32.gmra.mrb[0].mxu0 %v1607
      %v1793 = vpop.f32.mrb[0].mxu0
      %v1794 = vadd.f32 0.0, %v1793
      %v1795 = vpop.f32.mrb[0].mxu0
      %1796 = vmatprep.mubr.f32.mxu0 0.0
      %1797 = vmatmul.mubr.f32.gmra.mrb[0].mxu0 %v1610
      %v1798 = vpop.f32.mrb[0].mxu0
      %v1799 = vadd.f32 0.0, %v1798
      %v1800 = vpop.f32.mrb[0].mxu0
      %1801 = vmatprep.mubr.f32.mxu0 0.0
      %1802 = vmatmul.mubr.f32.gmra.mrb[0].mxu0 %v1613
      %v1803 = vpop.f32.mrb[0].mxu0
      %v1804 = vadd.f32 0.0, %v1803
      %v1805 = vpop.f32.mrb[0].mxu0
      %1806 = vmatprep.mubr.f32.mxu0 0.0
      %1807 = vmatmul.mubr.f32.gmra.mrb[0].mxu0 %v1616
      %v1808 = vpop.f32.mrb[0].mxu0
      %v1809 = vadd.f32 0.0, %v1808
      %v1810 = vpop.f32.mrb[0].mxu0
      %1811 = vmatprep.mubr.f32.mxu0 0.0
      %1812 = vmatmul.mubr.f32.gmra.mrb[0].mxu0 %v1619
      %v1813 = vpop.f32.mrb[0].mxu0
      %v1814 = vadd.f32 0.0, %v1813
      %v1815 = vpop.f32.mrb[0].mxu0
      %1816 = vmatprep.mubr.f32.mxu0 0.0
      %1817 = vmatmul.mubr.f32.gmra.mrb[0].mxu0 %v1622
      %v1818 = vpop.f32.mrb[0].mxu0
      %v1819 = vadd.f32 0.0, %v1818
      %v1820 = vpop.f32.mrb[0].mxu0
      %1821 = vmatprep.mubr.f32.mxu0 0.0
      %1822 = vmatmul.mubr.f32.gmra.mrb[0].mxu0 %v1625
      %v1823 = vpop.f32.mrb[0].mxu0
      %v1824 = vadd.f32 0.0, %v1823
      %v1825 = vpop.f32.mrb[0].mxu0
      %1826 = vmatprep.mubr.f32.mxu0 0.0
      %1827 = vmatmul.mubr.f32.gmra.mrb[0].mxu0 %v1628
      %v1828 = vpop.f32.mrb[0].mxu0
      %v1829 = vadd.f32 0.0, %v1828
      %v1830 = vpop.f32.mrb[0].mxu0
      %1831 = vmatprep.mubr.f32.mxu0 0.0
      %1832 = vmatmul.mubr.f32.gmra.mrb[0].mxu0 %v1631
      %v1833 = vpop.f32.mrb[0].mxu0
      %v1834 = vadd.f32 0.0, %v1833
      %v1835 = vpop.f32.mrb[0].mxu0
      %1836 = vmatprep.mubr.f32.mxu0 0.0
      %1837 = vmatmul.mubr.f32.gmra.mrb[0].mxu0 %v1634
      %v1838 = vpop.f32.mrb[0].mxu0
      %v1839 = vadd.f32 0.0, %v1838
      %v1840 = vpop.f32.mrb[0].mxu0
      %1841 = vmatprep.mubr.f32.mxu0 0.0
      %1842 = vmatmul.mubr.f32.gmra.mrb[0].mxu0 %v1637
      %v1843 = vpop.f32.mrb[0].mxu0
      %v1844 = vadd.f32 0.0, %v1843
      %v1845 = vpop.f32.mrb[0].mxu0
      %1846 = vmatprep.mubr.f32.mxu0 0.0
      %1847 = vmatmul.mubr.f32.gmra.mrb[0].mxu0 %v1640
      %v1848 = vpop.f32.mrb[0].mxu0
      %v1849 = vadd.f32 0.0, %v1848
      %v1850 = vpop.f32.mrb[0].mxu0
      %1851 = vmatprep.mubr.f32.mxu0 0.0
      %1852 = vmatmul.mubr.f32.gmra.mrb[0].mxu0 %v1643
      %v1853 = vpop.f32.mrb[0].mxu0
      %v1854 = vadd.f32 0.0, %v1853
      %v1855 = vpop.f32.mrb[0].mxu0
      %1856 = vmatprep.mubr.f32.mxu0 0.0
      %1857 = vmatmul.mubr.f32.gmra.mrb[0].mxu0 %v1646
      %v1858 = vpop.f32.mrb[0].mxu0
      %v1859 = vadd.f32 0.0, %v1858
      %v1860 = vpop.f32.mrb[0].mxu0
      %1861 = vmatprep.mubr.f32.mxu0 0.0
      %1862 = vmatmul.mubr.f32.gmra.mrb[0].mxu0 %v1649
      %v1863 = vpop.f32.mrb[0].mxu0
      %v1864 = vadd.f32 0.0, %v1863
      %v1865 = vpop.f32.mrb[0].mxu0
      %1866 = vmatprep.mubr.f32.mxu0 0.0
      %1867 = vmatmul.mubr.f32.gmra.mrb[0].mxu0 %v1652
      %v1868 = vpop.f32.mrb[0].mxu0
      %v1869 = vadd.f32 0.0, %v1868
      %v1870 = vpop.f32.mrb[0].mxu0
      %1871 = vmatprep.mubr.f32.mxu0 0.0
      %1872 = vmatmul.mubr.f32.gmra.mrb[0].mxu0 %v1655
      %v1873 = vpop.f32.mrb[0].mxu0
      %v1874 = vadd.f32 0.0, %v1873
      %v1875 = vpop.f32.mrb[0].mxu0
      %1876 = vmatprep.mubr.f32.mxu0 0.0
      %1877 = vmatmul.mubr.f32.gmra.mrb[0].mxu0 %v1658
      %v1878 = vpop.f32.mrb[0].mxu0
      %v1879 = vadd.f32 0.0, %v1878
      %v1880 = vpop.f32.mrb[0].mxu0
      %1881 = vmatprep.mubr.f32.mxu0 0.0
      %1882 = vmatmul.mubr.f32.gmra.mrb[0].mxu0 %v1661
      %v1883 = vpop.f32.mrb[0].mxu0
      %v1884 = vadd.f32 0.0, %v1883
      %v1885 = vpop.f32.mrb[0].mxu0
      %1886 = vmatprep.mubr.f32.mxu0 0.0
      %1887 = vmatmul.mubr.f32.gmra.mrb[0].mxu0 %v1664
      %v1888 = vpop.f32.mrb[0].mxu0
      %v1889 = vadd.f32 0.0, %v1888
      %v1890 = vpop.f32.mrb[0].mxu0
      %1891 = vmatprep.mubr.f32.mxu0 0.0
      %1892 = vmatmul.mubr.f32.gmra.mrb[0].mxu0 %v1667
      %v1893 = vpop.f32.mrb[0].mxu0
      %v1894 = vadd.f32 0.0, %v1893
      %v1895 = vpop.f32.mrb[0].mxu0
      %1896 = vdwg.mxu0
      %v1897 = vadd.f32 %v1506, %v1739
      %v1898 = vadd.f32 %v1507, %v1744
      %v1899 = vadd.f32 %v1508, %v1749
      %v1900 = vadd.f32 %v1509, %v1754
      %v1901 = vadd.f32 %v1510, %v1759
      %v1902 = vadd.f32 %v1511, %v1764
      %v1903 = vadd.f32 %v1512, %v1769
      %v1904 = vadd.f32 %v1513, %v1774
      %v1905 = vadd.f32 %v1514, %v1779
      %v1906 = vadd.f32 %v1515, %v1784
      %v1907 = vadd.f32 %v1516, %v1789
      %v1908 = vadd.f32 %v1517, %v1794
      %v1909 = vadd.f32 %v1518, %v1799
      %v1910 = vadd.f32 %v1519, %v1804
      %v1911 = vadd.f32 %v1520, %v1809
      %v1912 = vadd.f32 %v1521, %v1814
      %v1913 = vadd.f32 %v1522, %v1819
      %v1914 = vadd.f32 %v1523, %v1824
      %v1915 = vadd.f32 %v1524, %v1829
      %v1916 = vadd.f32 %v1525, %v1834
      %v1917 = vadd.f32 %v1526, %v1839
      %v1918 = vadd.f32 %v1527, %v1844
      %v1919 = vadd.f32 %v1528, %v1849
      %v1920 = vadd.f32 %v1529, %v1854
      %v1921 = vadd.f32 %v1530, %v1859
      %v1922 = vadd.f32 %v1531, %v1864
      %v1923 = vadd.f32 %v1532, %v1869
      %v1924 = vadd.f32 %v1533, %v1874
      %v1925 = vadd.f32 %v1534, %v1879
      %v1926 = vadd.f32 %v1535, %v1884
      %v1927 = vadd.f32 %v1536, %v1889
      %v1928 = vadd.f32 %v1537, %v1894
      %v1929 = vld [vmem:[%s1538 + $0x1] sm:$0xff]
      %v1930 = vld [vmem:[%s1538 + $0x9] sm:$0xff]
      %v1931 = vld [vmem:[%s1538 + $0x19] sm:$0xff]
      %v1932 = vld [vmem:[%s1538 + $0x21] sm:$0xff]
      %v1933 = vld [vmem:[%s1538 + $0x31] sm:$0xff]
      %v1934 = vld [vmem:[%s1538 + $0x39] sm:$0xff]
      %v1935 = vld [vmem:[%s1538 + $0x49] sm:$0xff]
      %v1936 = vld [vmem:[%s1538 + $0x51] sm:$0xff]
      %v1937 = vld [vmem:[%s1538 + $0x61] sm:$0xff]
      %v1938 = vld [vmem:[%s1538 + $0x69] sm:$0xff]
      %v1939 = vld [vmem:[%s1538 + $0x79] sm:$0xff]
      %v1940 = vld [vmem:[%s1538 + $0x81] sm:$0xff]
      %v1941 = vld [vmem:[%s1538 + $0x91] sm:$0xff]
      %v1942 = vld [vmem:[%s1538 + $0x99] sm:$0xff]
      %v1943 = vld [vmem:[%s1538 + $0xa9] sm:$0xff]
      %v1944 = vld [vmem:[%s1538 + $0xb1] sm:$0xff]
      %v1945 = vld [vmem:[%s1538 + $0xc1] sm:$0xff]
      %v1946 = vld [vmem:[%s1538 + $0xc9] sm:$0xff]
      %v1947 = vld [vmem:[%s1538 + $0xd9] sm:$0xff]
      %v1948 = vld [vmem:[%s1538 + $0xe1] sm:$0xff]
      %v1949 = vld [vmem:[%s1538 + $0xf1] sm:$0xff]
      %v1950 = vld [vmem:[%s1538 + $0xf9] sm:$0xff]
      %v1951 = vld [vmem:[%s1538 + $0x109] sm:$0xff]
      %v1952 = vld [vmem:[%s1538 + $0x111] sm:$0xff]
      %v1953 = vld [vmem:[%s1538 + $0x121] sm:$0xff]
      %v1954 = vld [vmem:[%s1538 + $0x129] sm:$0xff]
      %v1955 = vld [vmem:[%s1538 + $0x139] sm:$0xff]
      %v1956 = vld [vmem:[%s1538 + $0x141] sm:$0xff]
      %v1957 = vld [vmem:[%s1538 + $0x151] sm:$0xff]
      %v1958 = vld [vmem:[%s1538 + $0x159] sm:$0xff]
      %v1959 = vld [vmem:[%s1538 + $0x169] sm:$0xff]
      %v1960 = vld [vmem:[%s1538 + $0x171] sm:$0xff]
      %s1961 = scalar_lea.vmem %s2, 16
      %v1962 = vld [vmem:[%s1961] sm:$0xf]
      %v1964 = vsel %vm368, %v1929, 0
      %v1967 = vsel %vm368, %v1930, 0
      %v1970 = vsel %vm368, %v1931, 0
      %v1973 = vsel %vm368, %v1932, 0
      %v1976 = vsel %vm368, %v1933, 0
      %v1979 = vsel %vm368, %v1934, 0
      %v1982 = vsel %vm368, %v1935, 0
      %v1985 = vsel %vm368, %v1936, 0
      %v1988 = vsel %vm368, %v1937, 0
      %v1991 = vsel %vm368, %v1938, 0
      %v1994 = vsel %vm368, %v1939, 0
      %v1997 = vsel %vm368, %v1940, 0
      %v2000 = vsel %vm368, %v1941, 0
      %v2003 = vsel %vm368, %v1942, 0
      %v2006 = vsel %vm368, %v1943, 0
      %v2009 = vsel %vm368, %v1944, 0
      %v2012 = vsel %vm368, %v1945, 0
      %v2015 = vsel %vm368, %v1946, 0
      %v2018 = vsel %vm368, %v1947, 0
      %v2021 = vsel %vm368, %v1948, 0
      %v2024 = vsel %vm368, %v1949, 0
      %v2027 = vsel %vm368, %v1950, 0
      %v2030 = vsel %vm368, %v1951, 0
      %v2033 = vsel %vm368, %v1952, 0
      %v2036 = vsel %vm368, %v1953, 0
      %v2039 = vsel %vm368, %v1954, 0
      %v2042 = vsel %vm368, %v1955, 0
      %v2045 = vsel %vm368, %v1956, 0
      %v2048 = vsel %vm368, %v1957, 0
      %v2051 = vsel %vm368, %v1958, 0
      %v2054 = vsel %vm368, %v1959, 0
      %v2057 = vsel %vm368, %v1960, 0
      %v2060 = vsel %vm595, %v1962, 0
      %2062 = vmatprep.subr.mxu0 0.0
      %2063 = vmatpush1.msra.mxu0 %v2060
      %2064 = vmatprep.subr.mxu0 0.0
      %2065 = vmatpush1.msra.mxu0 0.0
      %2066 = vmatprep.subr.mxu0 0.0
      %2067 = vmatpush1.msra.mxu0 0.0
      %2068 = vmatprep.subr.mxu0 0.0
      %2069 = vmatpush1.msra.mxu0 0.0
      %2070 = vmatprep.subr.mxu0 0.0
      %2071 = vmatpush1.msra.mxu0 0.0
      %2072 = vmatprep.subr.mxu0 0.0
      %2073 = vmatpush1.msra.mxu0 0.0
      %2074 = vmatprep.subr.mxu0 0.0
      %2075 = vmatpush1.msra.mxu0 0.0
      %2076 = vmatprep.subr.mxu0 0.0
      %2077 = vmatpush1.msra.mxu0 0.0
      %2078 = vmatprep.subr.mxu0 0.0
      %2079 = vmatpush1.msra.mxu0 0.0
      %2080 = vmatprep.subr.mxu0 0.0
      %2081 = vmatpush1.msra.mxu0 0.0
      %2082 = vmatprep.subr.mxu0 0.0
      %2083 = vmatpush1.msra.mxu0 0.0
      %2084 = vmatprep.subr.mxu0 0.0
      %2085 = vmatpush1.msra.mxu0 0.0
      %2086 = vmatprep.subr.mxu0 0.0
      %2087 = vmatpush1.msra.mxu0 0.0
      %2088 = vmatprep.subr.mxu0 0.0
      %2089 = vmatpush1.msra.mxu0 0.0
      %2090 = vmatprep.subr.mxu0 0.0
      %2091 = vmatpush1.msra.mxu0 0.0
      %2092 = vmatprep.subr.mxu0 0.0
      %2093 = vmatpush1.msra.mxu0 0.0
      %2094 = vmatprep.subr.mxu0 0.0
      %2095 = vmatpush1.msra.mxu0 0.0
      %2096 = vmatprep.subr.mxu0 0.0
      %2097 = vmatpush1.msra.mxu0 0.0
      %2098 = vmatprep.subr.mxu0 0.0
      %2099 = vmatpush1.msra.mxu0 0.0
      %2100 = vmatprep.subr.mxu0 0.0
      %2101 = vmatpush1.msra.mxu0 0.0
      %2102 = vmatprep.subr.mxu0 0.0
      %2103 = vmatpush1.msra.mxu0 0.0
      %2104 = vmatprep.subr.mxu0 0.0
      %2105 = vmatpush1.msra.mxu0 0.0
      %2106 = vmatprep.subr.mxu0 0.0
      %2107 = vmatpush1.msra.mxu0 0.0
      %2108 = vmatprep.subr.mxu0 0.0
      %2109 = vmatpush1.msra.mxu0 0.0
      %2110 = vmatprep.subr.mxu0 0.0
      %2111 = vmatpush1.msra.mxu0 0.0
      %2112 = vmatprep.subr.mxu0 0.0
      %2113 = vmatpush1.msra.mxu0 0.0
      %2114 = vmatprep.subr.mxu0 0.0
      %2115 = vmatpush1.msra.mxu0 0.0
      %2116 = vmatprep.subr.mxu0 0.0
      %2117 = vmatpush1.msra.mxu0 0.0
      %2118 = vmatprep.subr.mxu0 0.0
      %2119 = vmatpush1.msra.mxu0 0.0
      %2120 = vmatprep.subr.mxu0 0.0
      %2121 = vmatpush1.msra.mxu0 0.0
      %2122 = vmatprep.subr.mxu0 0.0
      %2123 = vmatpush1.msra.mxu0 0.0
      %2124 = vmatprep.subr.mxu0 0.0
      %2125 = vmatpush1.msra.mxu0 0.0
      %2126 = vmatprep.mubr.f32.mxu0 0.0
      %2127 = vmatmul.mubr.f32.gmra.mrb[0].mxu0 %v1964
      %v2128 = vpop.f32.mrb[0].mxu0
      %v2129 = vadd.f32 0.0, %v2128
      %v2130 = vpop.f32.mrb[0].mxu0
      %2131 = vmatprep.mubr.f32.mxu0 0.0
      %2132 = vmatmul.mubr.f32.gmra.mrb[0].mxu0 %v1967
      %v2133 = vpop.f32.mrb[0].mxu0
      %v2134 = vadd.f32 0.0, %v2133
      %v2135 = vpop.f32.mrb[0].mxu0
      %2136 = vmatprep.mubr.f32.mxu0 0.0
      %2137 = vmatmul.mubr.f32.gmra.mrb[0].mxu0 %v1970
      %v2138 = vpop.f32.mrb[0].mxu0
      %v2139 = vadd.f32 0.0, %v2138
      %v2140 = vpop.f32.mrb[0].mxu0
      %2141 = vmatprep.mubr.f32.mxu0 0.0
      %2142 = vmatmul.mubr.f32.gmra.mrb[0].mxu0 %v1973
      %v2143 = vpop.f32.mrb[0].mxu0
      %v2144 = vadd.f32 0.0, %v2143
      %v2145 = vpop.f32.mrb[0].mxu0
      %2146 = vmatprep.mubr.f32.mxu0 0.0
      %2147 = vmatmul.mubr.f32.gmra.mrb[0].mxu0 %v1976
      %v2148 = vpop.f32.mrb[0].mxu0
      %v2149 = vadd.f32 0.0, %v2148
      %v2150 = vpop.f32.mrb[0].mxu0
      %2151 = vmatprep.mubr.f32.mxu0 0.0
      %2152 = vmatmul.mubr.f32.gmra.mrb[0].mxu0 %v1979
      %v2153 = vpop.f32.mrb[0].mxu0
      %v2154 = vadd.f32 0.0, %v2153
      %v2155 = vpop.f32.mrb[0].mxu0
      %2156 = vmatprep.mubr.f32.mxu0 0.0
      %2157 = vmatmul.mubr.f32.gmra.mrb[0].mxu0 %v1982
      %v2158 = vpop.f32.mrb[0].mxu0
      %v2159 = vadd.f32 0.0, %v2158
      %v2160 = vpop.f32.mrb[0].mxu0
      %2161 = vmatprep.mubr.f32.mxu0 0.0
      %2162 = vmatmul.mubr.f32.gmra.mrb[0].mxu0 %v1985
      %v2163 = vpop.f32.mrb[0].mxu0
      %v2164 = vadd.f32 0.0, %v2163
      %v2165 = vpop.f32.mrb[0].mxu0
      %2166 = vmatprep.mubr.f32.mxu0 0.0
      %2167 = vmatmul.mubr.f32.gmra.mrb[0].mxu0 %v1988
      %v2168 = vpop.f32.mrb[0].mxu0
      %v2169 = vadd.f32 0.0, %v2168
      %v2170 = vpop.f32.mrb[0].mxu0
      %2171 = vmatprep.mubr.f32.mxu0 0.0
      %2172 = vmatmul.mubr.f32.gmra.mrb[0].mxu0 %v1991
      %v2173 = vpop.f32.mrb[0].mxu0
      %v2174 = vadd.f32 0.0, %v2173
      %v2175 = vpop.f32.mrb[0].mxu0
      %2176 = vmatprep.mubr.f32.mxu0 0.0
      %2177 = vmatmul.mubr.f32.gmra.mrb[0].mxu0 %v1994
      %v2178 = vpop.f32.mrb[0].mxu0
      %v2179 = vadd.f32 0.0, %v2178
      %v2180 = vpop.f32.mrb[0].mxu0
      %2181 = vmatprep.mubr.f32.mxu0 0.0
      %2182 = vmatmul.mubr.f32.gmra.mrb[0].mxu0 %v1997
      %v2183 = vpop.f32.mrb[0].mxu0
      %v2184 = vadd.f32 0.0, %v2183
      %v2185 = vpop.f32.mrb[0].mxu0
      %2186 = vmatprep.mubr.f32.mxu0 0.0
      %2187 = vmatmul.mubr.f32.gmra.mrb[0].mxu0 %v2000
      %v2188 = vpop.f32.mrb[0].mxu0
      %v2189 = vadd.f32 0.0, %v2188
      %v2190 = vpop.f32.mrb[0].mxu0
      %2191 = vmatprep.mubr.f32.mxu0 0.0
      %2192 = vmatmul.mubr.f32.gmra.mrb[0].mxu0 %v2003
      %v2193 = vpop.f32.mrb[0].mxu0
      %v2194 = vadd.f32 0.0, %v2193
      %v2195 = vpop.f32.mrb[0].mxu0
      %2196 = vmatprep.mubr.f32.mxu0 0.0
      %2197 = vmatmul.mubr.f32.gmra.mrb[0].mxu0 %v2006
      %v2198 = vpop.f32.mrb[0].mxu0
      %v2199 = vadd.f32 0.0, %v2198
      %v2200 = vpop.f32.mrb[0].mxu0
      %2201 = vmatprep.mubr.f32.mxu0 0.0
      %2202 = vmatmul.mubr.f32.gmra.mrb[0].mxu0 %v2009
      %v2203 = vpop.f32.mrb[0].mxu0
      %v2204 = vadd.f32 0.0, %v2203
      %v2205 = vpop.f32.mrb[0].mxu0
      %2206 = vmatprep.mubr.f32.mxu0 0.0
      %2207 = vmatmul.mubr.f32.gmra.mrb[0].mxu0 %v2012
      %v2208 = vpop.f32.mrb[0].mxu0
      %v2209 = vadd.f32 0.0, %v2208
      %v2210 = vpop.f32.mrb[0].mxu0
      %2211 = vmatprep.mubr.f32.mxu0 0.0
      %2212 = vmatmul.mubr.f32.gmra.mrb[0].mxu0 %v2015
      %v2213 = vpop.f32.mrb[0].mxu0
      %v2214 = vadd.f32 0.0, %v2213
      %v2215 = vpop.f32.mrb[0].mxu0
      %2216 = vmatprep.mubr.f32.mxu0 0.0
      %2217 = vmatmul.mubr.f32.gmra.mrb[0].mxu0 %v2018
      %v2218 = vpop.f32.mrb[0].mxu0
      %v2219 = vadd.f32 0.0, %v2218
      %v2220 = vpop.f32.mrb[0].mxu0
      %2221 = vmatprep.mubr.f32.mxu0 0.0
      %2222 = vmatmul.mubr.f32.gmra.mrb[0].mxu0 %v2021
      %v2223 = vpop.f32.mrb[0].mxu0
      %v2224 = vadd.f32 0.0, %v2223
      %v2225 = vpop.f32.mrb[0].mxu0
      %2226 = vmatprep.mubr.f32.mxu0 0.0
      %2227 = vmatmul.mubr.f32.gmra.mrb[0].mxu0 %v2024
      %v2228 = vpop.f32.mrb[0].mxu0
      %v2229 = vadd.f32 0.0, %v2228
      %v2230 = vpop.f32.mrb[0].mxu0
      %2231 = vmatprep.mubr.f32.mxu0 0.0
      %2232 = vmatmul.mubr.f32.gmra.mrb[0].mxu0 %v2027
      %v2233 = vpop.f32.mrb[0].mxu0
      %v2234 = vadd.f32 0.0, %v2233
      %v2235 = vpop.f32.mrb[0].mxu0
      %2236 = vmatprep.mubr.f32.mxu0 0.0
      %2237 = vmatmul.mubr.f32.gmra.mrb[0].mxu0 %v2030
      %v2238 = vpop.f32.mrb[0].mxu0
      %v2239 = vadd.f32 0.0, %v2238
      %v2240 = vpop.f32.mrb[0].mxu0
      %2241 = vmatprep.mubr.f32.mxu0 0.0
      %2242 = vmatmul.mubr.f32.gmra.mrb[0].mxu0 %v2033
      %v2243 = vpop.f32.mrb[0].mxu0
      %v2244 = vadd.f32 0.0, %v2243
      %v2245 = vpop.f32.mrb[0].mxu0
      %2246 = vmatprep.mubr.f32.mxu0 0.0
      %2247 = vmatmul.mubr.f32.gmra.mrb[0].mxu0 %v2036
      %v2248 = vpop.f32.mrb[0].mxu0
      %v2249 = vadd.f32 0.0, %v2248
      %v2250 = vpop.f32.mrb[0].mxu0
      %2251 = vmatprep.mubr.f32.mxu0 0.0
      %2252 = vmatmul.mubr.f32.gmra.mrb[0].mxu0 %v2039
      %v2253 = vpop.f32.mrb[0].mxu0
      %v2254 = vadd.f32 0.0, %v2253
      %v2255 = vpop.f32.mrb[0].mxu0
      %2256 = vmatprep.mubr.f32.mxu0 0.0
      %2257 = vmatmul.mubr.f32.gmra.mrb[0].mxu0 %v2042
      %v2258 = vpop.f32.mrb[0].mxu0
      %v2259 = vadd.f32 0.0, %v2258
      %v2260 = vpop.f32.mrb[0].mxu0
      %2261 = vmatprep.mubr.f32.mxu0 0.0
      %2262 = vmatmul.mubr.f32.gmra.mrb[0].mxu0 %v2045
      %v2263 = vpop.f32.mrb[0].mxu0
      %v2264 = vadd.f32 0.0, %v2263
      %v2265 = vpop.f32.mrb[0].mxu0
      %2266 = vmatprep.mubr.f32.mxu0 0.0
      %2267 = vmatmul.mubr.f32.gmra.mrb[0].mxu0 %v2048
      %v2268 = vpop.f32.mrb[0].mxu0
      %v2269 = vadd.f32 0.0, %v2268
      %v2270 = vpop.f32.mrb[0].mxu0
      %2271 = vmatprep.mubr.f32.mxu0 0.0
      %2272 = vmatmul.mubr.f32.gmra.mrb[0].mxu0 %v2051
      %v2273 = vpop.f32.mrb[0].mxu0
      %v2274 = vadd.f32 0.0, %v2273
      %v2275 = vpop.f32.mrb[0].mxu0
      %2276 = vmatprep.mubr.f32.mxu0 0.0
      %2277 = vmatmul.mubr.f32.gmra.mrb[0].mxu0 %v2054
      %v2278 = vpop.f32.mrb[0].mxu0
      %v2279 = vadd.f32 0.0, %v2278
      %v2280 = vpop.f32.mrb[0].mxu0
      %2281 = vmatprep.mubr.f32.mxu0 0.0
      %2282 = vmatmul.mubr.f32.gmra.mrb[0].mxu0 %v2057
      %v2283 = vpop.f32.mrb[0].mxu0
      %v2284 = vadd.f32 0.0, %v2283
      %v2285 = vpop.f32.mrb[0].mxu0
      %2286 = vdwg.mxu0
      %v2287 = vadd.f32 %v1897, %v2129
      %v2288 = vadd.f32 %v1898, %v2134
      %v2289 = vadd.f32 %v1899, %v2139
      %v2290 = vadd.f32 %v1900, %v2144
      %v2291 = vadd.f32 %v1901, %v2149
      %v2292 = vadd.f32 %v1902, %v2154
      %v2293 = vadd.f32 %v1903, %v2159
      %v2294 = vadd.f32 %v1904, %v2164
      %v2295 = vadd.f32 %v1905, %v2169
      %v2296 = vadd.f32 %v1906, %v2174
      %v2297 = vadd.f32 %v1907, %v2179
      %v2298 = vadd.f32 %v1908, %v2184
      %v2299 = vadd.f32 %v1909, %v2189
      %v2300 = vadd.f32 %v1910, %v2194
      %v2301 = vadd.f32 %v1911, %v2199
      %v2302 = vadd.f32 %v1912, %v2204
      %v2303 = vadd.f32 %v1913, %v2209
      %v2304 = vadd.f32 %v1914, %v2214
      %v2305 = vadd.f32 %v1915, %v2219
      %v2306 = vadd.f32 %v1916, %v2224
      %v2307 = vadd.f32 %v1917, %v2229
      %v2308 = vadd.f32 %v1918, %v2234
      %v2309 = vadd.f32 %v1919, %v2239
      %v2310 = vadd.f32 %v1920, %v2244
      %v2311 = vadd.f32 %v1921, %v2249
      %v2312 = vadd.f32 %v1922, %v2254
      %v2313 = vadd.f32 %v1923, %v2259
      %v2314 = vadd.f32 %v1924, %v2264
      %v2315 = vadd.f32 %v1925, %v2269
      %v2316 = vadd.f32 %v1926, %v2274
      %v2317 = vadd.f32 %v1927, %v2279
      %v2318 = vadd.f32 %v1928, %v2284
      %v2319 = vld [vmem:[%s1538 + $0x2] sm:$0xff]
      %v2320 = vld [vmem:[%s1538 + $0xa] sm:$0xff]
      %v2321 = vld [vmem:[%s1538 + $0x1a] sm:$0xff]
      %v2322 = vld [vmem:[%s1538 + $0x22] sm:$0xff]
      %v2323 = vld [vmem:[%s1538 + $0x32] sm:$0xff]
      %v2324 = vld [vmem:[%s1538 + $0x3a] sm:$0xff]
      %v2325 = vld [vmem:[%s1538 + $0x4a] sm:$0xff]
      %v2326 = vld [vmem:[%s1538 + $0x52] sm:$0xff]
      %v2327 = vld [vmem:[%s1538 + $0x62] sm:$0xff]
      %v2328 = vld [vmem:[%s1538 + $0x6a] sm:$0xff]
      %v2329 = vld [vmem:[%s1538 + $0x7a] sm:$0xff]
      %v2330 = vld [vmem:[%s1538 + $0x82] sm:$0xff]
      %v2331 = vld [vmem:[%s1538 + $0x92] sm:$0xff]
      %v2332 = vld [vmem:[%s1538 + $0x9a] sm:$0xff]
      %v2333 = vld [vmem:[%s1538 + $0xaa] sm:$0xff]
      %v2334 = vld [vmem:[%s1538 + $0xb2] sm:$0xff]
      %v2335 = vld [vmem:[%s1538 + $0xc2] sm:$0xff]
      %v2336 = vld [vmem:[%s1538 + $0xca] sm:$0xff]
      %v2337 = vld [vmem:[%s1538 + $0xda] sm:$0xff]
      %v2338 = vld [vmem:[%s1538 + $0xe2] sm:$0xff]
      %v2339 = vld [vmem:[%s1538 + $0xf2] sm:$0xff]
      %v2340 = vld [vmem:[%s1538 + $0xfa] sm:$0xff]
      %v2341 = vld [vmem:[%s1538 + $0x10a] sm:$0xff]
      %v2342 = vld [vmem:[%s1538 + $0x112] sm:$0xff]
      %v2343 = vld [vmem:[%s1538 + $0x122] sm:$0xff]
      %v2344 = vld [vmem:[%s1538 + $0x12a] sm:$0xff]
      %v2345 = vld [vmem:[%s1538 + $0x13a] sm:$0xff]
      %v2346 = vld [vmem:[%s1538 + $0x142] sm:$0xff]
      %v2347 = vld [vmem:[%s1538 + $0x152] sm:$0xff]
      %v2348 = vld [vmem:[%s1538 + $0x15a] sm:$0xff]
      %v2349 = vld [vmem:[%s1538 + $0x16a] sm:$0xff]
      %v2350 = vld [vmem:[%s1538 + $0x172] sm:$0xff]
      %s2351 = scalar_lea.vmem %s2, 20
      %v2352 = vld [vmem:[%s2351] sm:$0xf]
      %v2354 = vsel %vm368, %v2319, 0
      %v2357 = vsel %vm368, %v2320, 0
      %v2360 = vsel %vm368, %v2321, 0
      %v2363 = vsel %vm368, %v2322, 0
      %v2366 = vsel %vm368, %v2323, 0
      %v2369 = vsel %vm368, %v2324, 0
      %v2372 = vsel %vm368, %v2325, 0
      %v2375 = vsel %vm368, %v2326, 0
      %v2378 = vsel %vm368, %v2327, 0
      %v2381 = vsel %vm368, %v2328, 0
      %v2384 = vsel %vm368, %v2329, 0
      %v2387 = vsel %vm368, %v2330, 0
      %v2390 = vsel %vm368, %v2331, 0
      %v2393 = vsel %vm368, %v2332, 0
      %v2396 = vsel %vm368, %v2333, 0
      %v2399 = vsel %vm368, %v2334, 0
      %v2402 = vsel %vm368, %v2335, 0
      %v2405 = vsel %vm368, %v2336, 0
      %v2408 = vsel %vm368, %v2337, 0
      %v2411 = vsel %vm368, %v2338, 0
      %v2414 = vsel %vm368, %v2339, 0
      %v2417 = vsel %vm368, %v2340, 0
      %v2420 = vsel %vm368, %v2341, 0
      %v2423 = vsel %vm368, %v2342, 0
      %v2426 = vsel %vm368, %v2343, 0
      %v2429 = vsel %vm368, %v2344, 0
      %v2432 = vsel %vm368, %v2345, 0
      %v2435 = vsel %vm368, %v2346, 0
      %v2438 = vsel %vm368, %v2347, 0
      %v2441 = vsel %vm368, %v2348, 0
      %v2444 = vsel %vm368, %v2349, 0
      %v2447 = vsel %vm368, %v2350, 0
      %v2450 = vsel %vm595, %v2352, 0
      %2452 = vmatprep.subr.mxu0 0.0
      %2453 = vmatpush1.msra.mxu0 %v2450
      %2454 = vmatprep.subr.mxu0 0.0
      %2455 = vmatpush1.msra.mxu0 0.0
      %2456 = vmatprep.subr.mxu0 0.0
      %2457 = vmatpush1.msra.mxu0 0.0
      %2458 = vmatprep.subr.mxu0 0.0
      %2459 = vmatpush1.msra.mxu0 0.0
      %2460 = vmatprep.subr.mxu0 0.0
      %2461 = vmatpush1.msra.mxu0 0.0
      %2462 = vmatprep.subr.mxu0 0.0
      %2463 = vmatpush1.msra.mxu0 0.0
      %2464 = vmatprep.subr.mxu0 0.0
      %2465 = vmatpush1.msra.mxu0 0.0
      %2466 = vmatprep.subr.mxu0 0.0
      %2467 = vmatpush1.msra.mxu0 0.0
      %2468 = vmatprep.subr.mxu0 0.0
      %2469 = vmatpush1.msra.mxu0 0.0
      %2470 = vmatprep.subr.mxu0 0.0
      %2471 = vmatpush1.msra.mxu0 0.0
      %2472 = vmatprep.subr.mxu0 0.0
      %2473 = vmatpush1.msra.mxu0 0.0
      %2474 = vmatprep.subr.mxu0 0.0
      %2475 = vmatpush1.msra.mxu0 0.0
      %2476 = vmatprep.subr.mxu0 0.0
      %2477 = vmatpush1.msra.mxu0 0.0
      %2478 = vmatprep.subr.mxu0 0.0
      %2479 = vmatpush1.msra.mxu0 0.0
      %2480 = vmatprep.subr.mxu0 0.0
      %2481 = vmatpush1.msra.mxu0 0.0
      %2482 = vmatprep.subr.mxu0 0.0
      %2483 = vmatpush1.msra.mxu0 0.0
      %2484 = vmatprep.subr.mxu0 0.0
      %2485 = vmatpush1.msra.mxu0 0.0
      %2486 = vmatprep.subr.mxu0 0.0
      %2487 = vmatpush1.msra.mxu0 0.0
      %2488 = vmatprep.subr.mxu0 0.0
      %2489 = vmatpush1.msra.mxu0 0.0
      %2490 = vmatprep.subr.mxu0 0.0
      %2491 = vmatpush1.msra.mxu0 0.0
      %2492 = vmatprep.subr.mxu0 0.0
      %2493 = vmatpush1.msra.mxu0 0.0
      %2494 = vmatprep.subr.mxu0 0.0
      %2495 = vmatpush1.msra.mxu0 0.0
      %2496 = vmatprep.subr.mxu0 0.0
      %2497 = vmatpush1.msra.mxu0 0.0
      %2498 = vmatprep.subr.mxu0 0.0
      %2499 = vmatpush1.msra.mxu0 0.0
      %2500 = vmatprep.subr.mxu0 0.0
      %2501 = vmatpush1.msra.mxu0 0.0
      %2502 = vmatprep.subr.mxu0 0.0
      %2503 = vmatpush1.msra.mxu0 0.0
      %2504 = vmatprep.subr.mxu0 0.0
      %2505 = vmatpush1.msra.mxu0 0.0
      %2506 = vmatprep.subr.mxu0 0.0
      %2507 = vmatpush1.msra.mxu0 0.0
      %2508 = vmatprep.subr.mxu0 0.0
      %2509 = vmatpush1.msra.mxu0 0.0
      %2510 = vmatprep.subr.mxu0 0.0
      %2511 = vmatpush1.msra.mxu0 0.0
      %2512 = vmatprep.subr.mxu0 0.0
      %2513 = vmatpush1.msra.mxu0 0.0
      %2514 = vmatprep.subr.mxu0 0.0
      %2515 = vmatpush1.msra.mxu0 0.0
      %2516 = vmatprep.mubr.f32.mxu0 0.0
      %2517 = vmatmul.mubr.f32.gmra.mrb[0].mxu0 %v2354
      %v2518 = vpop.f32.mrb[0].mxu0
      %v2519 = vadd.f32 0.0, %v2518
      %v2520 = vpop.f32.mrb[0].mxu0
      %2521 = vmatprep.mubr.f32.mxu0 0.0
      %2522 = vmatmul.mubr.f32.gmra.mrb[0].mxu0 %v2357
      %v2523 = vpop.f32.mrb[0].mxu0
      %v2524 = vadd.f32 0.0, %v2523
      %v2525 = vpop.f32.mrb[0].mxu0
      %2526 = vmatprep.mubr.f32.mxu0 0.0
      %2527 = vmatmul.mubr.f32.gmra.mrb[0].mxu0 %v2360
      %v2528 = vpop.f32.mrb[0].mxu0
      %v2529 = vadd.f32 0.0, %v2528
      %v2530 = vpop.f32.mrb[0].mxu0
      %2531 = vmatprep.mubr.f32.mxu0 0.0
      %2532 = vmatmul.mubr.f32.gmra.mrb[0].mxu0 %v2363
      %v2533 = vpop.f32.mrb[0].mxu0
      %v2534 = vadd.f32 0.0, %v2533
      %v2535 = vpop.f32.mrb[0].mxu0
      %2536 = vmatprep.mubr.f32.mxu0 0.0
      %2537 = vmatmul.mubr.f32.gmra.mrb[0].mxu0 %v2366
      %v2538 = vpop.f32.mrb[0].mxu0
      %v2539 = vadd.f32 0.0, %v2538
      %v2540 = vpop.f32.mrb[0].mxu0
      %2541 = vmatprep.mubr.f32.mxu0 0.0
      %2542 = vmatmul.mubr.f32.gmra.mrb[0].mxu0 %v2369
      %v2543 = vpop.f32.mrb[0].mxu0
      %v2544 = vadd.f32 0.0, %v2543
      %v2545 = vpop.f32.mrb[0].mxu0
      %2546 = vmatprep.mubr.f32.mxu0 0.0
      %2547 = vmatmul.mubr.f32.gmra.mrb[0].mxu0 %v2372
      %v2548 = vpop.f32.mrb[0].mxu0
      %v2549 = vadd.f32 0.0, %v2548
      %v2550 = vpop.f32.mrb[0].mxu0
      %2551 = vmatprep.mubr.f32.mxu0 0.0
      %2552 = vmatmul.mubr.f32.gmra.mrb[0].mxu0 %v2375
      %v2553 = vpop.f32.mrb[0].mxu0
      %v2554 = vadd.f32 0.0, %v2553
      %v2555 = vpop.f32.mrb[0].mxu0
      %2556 = vmatprep.mubr.f32.mxu0 0.0
      %2557 = vmatmul.mubr.f32.gmra.mrb[0].mxu0 %v2378
      %v2558 = vpop.f32.mrb[0].mxu0
      %v2559 = vadd.f32 0.0, %v2558
      %v2560 = vpop.f32.mrb[0].mxu0
      %2561 = vmatprep.mubr.f32.mxu0 0.0
      %2562 = vmatmul.mubr.f32.gmra.mrb[0].mxu0 %v2381
      %v2563 = vpop.f32.mrb[0].mxu0
      %v2564 = vadd.f32 0.0, %v2563
      %v2565 = vpop.f32.mrb[0].mxu0
      %2566 = vmatprep.mubr.f32.mxu0 0.0
      %2567 = vmatmul.mubr.f32.gmra.mrb[0].mxu0 %v2384
      %v2568 = vpop.f32.mrb[0].mxu0
      %v2569 = vadd.f32 0.0, %v2568
      %v2570 = vpop.f32.mrb[0].mxu0
      %2571 = vmatprep.mubr.f32.mxu0 0.0
      %2572 = vmatmul.mubr.f32.gmra.mrb[0].mxu0 %v2387
      %v2573 = vpop.f32.mrb[0].mxu0
      %v2574 = vadd.f32 0.0, %v2573
      %v2575 = vpop.f32.mrb[0].mxu0
      %2576 = vmatprep.mubr.f32.mxu0 0.0
      %2577 = vmatmul.mubr.f32.gmra.mrb[0].mxu0 %v2390
      %v2578 = vpop.f32.mrb[0].mxu0
      %v2579 = vadd.f32 0.0, %v2578
      %v2580 = vpop.f32.mrb[0].mxu0
      %2581 = vmatprep.mubr.f32.mxu0 0.0
      %2582 = vmatmul.mubr.f32.gmra.mrb[0].mxu0 %v2393
      %v2583 = vpop.f32.mrb[0].mxu0
      %v2584 = vadd.f32 0.0, %v2583
      %v2585 = vpop.f32.mrb[0].mxu0
      %2586 = vmatprep.mubr.f32.mxu0 0.0
      %2587 = vmatmul.mubr.f32.gmra.mrb[0].mxu0 %v2396
      %v2588 = vpop.f32.mrb[0].mxu0
      %v2589 = vadd.f32 0.0, %v2588
      %v2590 = vpop.f32.mrb[0].mxu0
      %2591 = vmatprep.mubr.f32.mxu0 0.0
      %2592 = vmatmul.mubr.f32.gmra.mrb[0].mxu0 %v2399
      %v2593 = vpop.f32.mrb[0].mxu0
      %v2594 = vadd.f32 0.0, %v2593
      %v2595 = vpop.f32.mrb[0].mxu0
      %2596 = vmatprep.mubr.f32.mxu0 0.0
      %2597 = vmatmul.mubr.f32.gmra.mrb[0].mxu0 %v2402
      %v2598 = vpop.f32.mrb[0].mxu0
      %v2599 = vadd.f32 0.0, %v2598
      %v2600 = vpop.f32.mrb[0].mxu0
      %2601 = vmatprep.mubr.f32.mxu0 0.0
      %2602 = vmatmul.mubr.f32.gmra.mrb[0].mxu0 %v2405
      %v2603 = vpop.f32.mrb[0].mxu0
      %v2604 = vadd.f32 0.0, %v2603
      %v2605 = vpop.f32.mrb[0].mxu0
      %2606 = vmatprep.mubr.f32.mxu0 0.0
      %2607 = vmatmul.mubr.f32.gmra.mrb[0].mxu0 %v2408
      %v2608 = vpop.f32.mrb[0].mxu0
      %v2609 = vadd.f32 0.0, %v2608
      %v2610 = vpop.f32.mrb[0].mxu0
      %2611 = vmatprep.mubr.f32.mxu0 0.0
      %2612 = vmatmul.mubr.f32.gmra.mrb[0].mxu0 %v2411
      %v2613 = vpop.f32.mrb[0].mxu0
      %v2614 = vadd.f32 0.0, %v2613
      %v2615 = vpop.f32.mrb[0].mxu0
      %2616 = vmatprep.mubr.f32.mxu0 0.0
      %2617 = vmatmul.mubr.f32.gmra.mrb[0].mxu0 %v2414
      %v2618 = vpop.f32.mrb[0].mxu0
      %v2619 = vadd.f32 0.0, %v2618
      %v2620 = vpop.f32.mrb[0].mxu0
      %2621 = vmatprep.mubr.f32.mxu0 0.0
      %2622 = vmatmul.mubr.f32.gmra.mrb[0].mxu0 %v2417
      %v2623 = vpop.f32.mrb[0].mxu0
      %v2624 = vadd.f32 0.0, %v2623
      %v2625 = vpop.f32.mrb[0].mxu0
      %2626 = vmatprep.mubr.f32.mxu0 0.0
      %2627 = vmatmul.mubr.f32.gmra.mrb[0].mxu0 %v2420
      %v2628 = vpop.f32.mrb[0].mxu0
      %v2629 = vadd.f32 0.0, %v2628
      %v2630 = vpop.f32.mrb[0].mxu0
      %2631 = vmatprep.mubr.f32.mxu0 0.0
      %2632 = vmatmul.mubr.f32.gmra.mrb[0].mxu0 %v2423
      %v2633 = vpop.f32.mrb[0].mxu0
      %v2634 = vadd.f32 0.0, %v2633
      %v2635 = vpop.f32.mrb[0].mxu0
      %2636 = vmatprep.mubr.f32.mxu0 0.0
      %2637 = vmatmul.mubr.f32.gmra.mrb[0].mxu0 %v2426
      %v2638 = vpop.f32.mrb[0].mxu0
      %v2639 = vadd.f32 0.0, %v2638
      %v2640 = vpop.f32.mrb[0].mxu0
      %2641 = vmatprep.mubr.f32.mxu0 0.0
      %2642 = vmatmul.mubr.f32.gmra.mrb[0].mxu0 %v2429
      %v2643 = vpop.f32.mrb[0].mxu0
      %v2644 = vadd.f32 0.0, %v2643
      %v2645 = vpop.f32.mrb[0].mxu0
      %2646 = vmatprep.mubr.f32.mxu0 0.0
      %2647 = vmatmul.mubr.f32.gmra.mrb[0].mxu0 %v2432
      %v2648 = vpop.f32.mrb[0].mxu0
      %v2649 = vadd.f32 0.0, %v2648
      %v2650 = vpop.f32.mrb[0].mxu0
      %2651 = vmatprep.mubr.f32.mxu0 0.0
      %2652 = vmatmul.mubr.f32.gmra.mrb[0].mxu0 %v2435
      %v2653 = vpop.f32.mrb[0].mxu0
      %v2654 = vadd.f32 0.0, %v2653
      %v2655 = vpop.f32.mrb[0].mxu0
      %2656 = vmatprep.mubr.f32.mxu0 0.0
      %2657 = vmatmul.mubr.f32.gmra.mrb[0].mxu0 %v2438
      %v2658 = vpop.f32.mrb[0].mxu0
      %v2659 = vadd.f32 0.0, %v2658
      %v2660 = vpop.f32.mrb[0].mxu0
      %2661 = vmatprep.mubr.f32.mxu0 0.0
      %2662 = vmatmul.mubr.f32.gmra.mrb[0].mxu0 %v2441
      %v2663 = vpop.f32.mrb[0].mxu0
      %v2664 = vadd.f32 0.0, %v2663
      %v2665 = vpop.f32.mrb[0].mxu0
      %2666 = vmatprep.mubr.f32.mxu0 0.0
      %2667 = vmatmul.mubr.f32.gmra.mrb[0].mxu0 %v2444
      %v2668 = vpop.f32.mrb[0].mxu0
      %v2669 = vadd.f32 0.0, %v2668
      %v2670 = vpop.f32.mrb[0].mxu0
      %2671 = vmatprep.mubr.f32.mxu0 0.0
      %2672 = vmatmul.mubr.f32.gmra.mrb[0].mxu0 %v2447
      %v2673 = vpop.f32.mrb[0].mxu0
      %v2674 = vadd.f32 0.0, %v2673
      %v2675 = vpop.f32.mrb[0].mxu0
      %2676 = vdwg.mxu0
      %v2677 = vadd.f32 %v2287, %v2519
      %v2678 = vadd.f32 %v2288, %v2524
      %v2679 = vadd.f32 %v2289, %v2529
      %v2680 = vadd.f32 %v2290, %v2534
      %v2681 = vadd.f32 %v2291, %v2539
      %v2682 = vadd.f32 %v2292, %v2544
      %v2683 = vadd.f32 %v2293, %v2549
      %v2684 = vadd.f32 %v2294, %v2554
      %v2685 = vadd.f32 %v2295, %v2559
      %v2686 = vadd.f32 %v2296, %v2564
      %v2687 = vadd.f32 %v2297, %v2569
      %v2688 = vadd.f32 %v2298, %v2574
      %v2689 = vadd.f32 %v2299, %v2579
      %v2690 = vadd.f32 %v2300, %v2584
      %v2691 = vadd.f32 %v2301, %v2589
      %v2692 = vadd.f32 %v2302, %v2594
      %v2693 = vadd.f32 %v2303, %v2599
      %v2694 = vadd.f32 %v2304, %v2604
      %v2695 = vadd.f32 %v2305, %v2609
      %v2696 = vadd.f32 %v2306, %v2614
      %v2697 = vadd.f32 %v2307, %v2619
      %v2698 = vadd.f32 %v2308, %v2624
      %v2699 = vadd.f32 %v2309, %v2629
      %v2700 = vadd.f32 %v2310, %v2634
      %v2701 = vadd.f32 %v2311, %v2639
      %v2702 = vadd.f32 %v2312, %v2644
      %v2703 = vadd.f32 %v2313, %v2649
      %v2704 = vadd.f32 %v2314, %v2654
      %v2705 = vadd.f32 %v2315, %v2659
      %v2706 = vadd.f32 %v2316, %v2664
      %v2707 = vadd.f32 %v2317, %v2669
      %v2708 = vadd.f32 %v2318, %v2674
      %v2710 = vlaneseq
      %v2711 = vshrl.u32 %v2710, 7
      %v2712 = vsub.s32 0, %v2711
      %v2713 = vrot.slane %v431, %v2712
      %v2715 = vadd.f32 %v2677, %v2713
      %v2716 = vadd.f32 %v2678, %v2713
      %v2717 = vadd.f32 %v2679, %v2713
      %v2718 = vadd.f32 %v2680, %v2713
      %v2719 = vadd.f32 %v2681, %v2713
      %v2720 = vadd.f32 %v2682, %v2713
      %v2721 = vadd.f32 %v2683, %v2713
      %v2722 = vadd.f32 %v2684, %v2713
      %v2723 = vadd.f32 %v2685, %v2713
      %v2724 = vadd.f32 %v2686, %v2713
      %v2725 = vadd.f32 %v2687, %v2713
      %v2726 = vadd.f32 %v2688, %v2713
      %v2727 = vadd.f32 %v2689, %v2713
      %v2728 = vadd.f32 %v2690, %v2713
      %v2729 = vadd.f32 %v2691, %v2713
      %v2730 = vadd.f32 %v2692, %v2713
      %v2731 = vadd.f32 %v2693, %v2713
      %v2732 = vadd.f32 %v2694, %v2713
      %v2733 = vadd.f32 %v2695, %v2713
      %v2734 = vadd.f32 %v2696, %v2713
      %v2735 = vadd.f32 %v2697, %v2713
      %v2736 = vadd.f32 %v2698, %v2713
      %v2737 = vadd.f32 %v2699, %v2713
      %v2738 = vadd.f32 %v2700, %v2713
      %v2739 = vadd.f32 %v2701, %v2713
      %v2740 = vadd.f32 %v2702, %v2713
      %v2741 = vadd.f32 %v2703, %v2713
      %v2742 = vadd.f32 %v2704, %v2713
      %v2743 = vadd.f32 %v2705, %v2713
      %v2744 = vadd.f32 %v2706, %v2713
      %v2745 = vadd.f32 %v2707, %v2713
      %v2746 = vadd.f32 %v2708, %v2713
      %vm2747 = vcmask 64512
      %2748 = vst.msk [vmem:[%s318] sm:$0xff] %vm2747, %v2715
      %2749 = vst.msk [vmem:[%s318 + $0x8] sm:$0xff] %vm2747, %v2716
      %2750 = vst.msk [vmem:[%s318 + $0x20] sm:$0xff] %vm2747, %v2717
      %2751 = vst.msk [vmem:[%s318 + $0x28] sm:$0xff] %vm2747, %v2718
      %2752 = vst.msk [vmem:[%s318 + $0x40] sm:$0xff] %vm2747, %v2719
      %2753 = vst.msk [vmem:[%s318 + $0x48] sm:$0xff] %vm2747, %v2720
      %2754 = vst.msk [vmem:[%s318 + $0x60] sm:$0xff] %vm2747, %v2721
      %2755 = vst.msk [vmem:[%s318 + $0x68] sm:$0xff] %vm2747, %v2722
      %2756 = vst.msk [vmem:[%s318 + $0x80] sm:$0xff] %vm2747, %v2723
      %2757 = vst.msk [vmem:[%s318 + $0x88] sm:$0xff] %vm2747, %v2724
      %2758 = vst.msk [vmem:[%s318 + $0xa0] sm:$0xff] %vm2747, %v2725
      %2759 = vst.msk [vmem:[%s318 + $0xa8] sm:$0xff] %vm2747, %v2726
      %2760 = vst.msk [vmem:[%s318 + $0xc0] sm:$0xff] %vm2747, %v2727
      %2761 = vst.msk [vmem:[%s318 + $0xc8] sm:$0xff] %vm2747, %v2728
      %2762 = vst.msk [vmem:[%s318 + $0xe0] sm:$0xff] %vm2747, %v2729
      %2763 = vst.msk [vmem:[%s318 + $0xe8] sm:$0xff] %vm2747, %v2730
      %2764 = vst.msk [vmem:[%s318 + $0x100] sm:$0xff] %vm2747, %v2731
      %2765 = vst.msk [vmem:[%s318 + $0x108] sm:$0xff] %vm2747, %v2732
      %2766 = vst.msk [vmem:[%s318 + $0x120] sm:$0xff] %vm2747, %v2733
      %2767 = vst.msk [vmem:[%s318 + $0x128] sm:$0xff] %vm2747, %v2734
      %2768 = vst.msk [vmem:[%s318 + $0x140] sm:$0xff] %vm2747, %v2735
      %2769 = vst.msk [vmem:[%s318 + $0x148] sm:$0xff] %vm2747, %v2736
      %2770 = vst.msk [vmem:[%s318 + $0x160] sm:$0xff] %vm2747, %v2737
      %2771 = vst.msk [vmem:[%s318 + $0x168] sm:$0xff] %vm2747, %v2738
      %2772 = vst.msk [vmem:[%s318 + $0x180] sm:$0xff] %vm2747, %v2739
      %2773 = vst.msk [vmem:[%s318 + $0x188] sm:$0xff] %vm2747, %v2740
      %2774 = vst.msk [vmem:[%s318 + $0x1a0] sm:$0xff] %vm2747, %v2741
      %2775 = vst.msk [vmem:[%s318 + $0x1a8] sm:$0xff] %vm2747, %v2742
      %2776 = vst.msk [vmem:[%s318 + $0x1c0] sm:$0xff] %vm2747, %v2743
      %2777 = vst.msk [vmem:[%s318 + $0x1c8] sm:$0xff] %vm2747, %v2744
      %2778 = vst.msk [vmem:[%s318 + $0x1e0] sm:$0xff] %vm2747, %v2745
      %2779 = vst.msk [vmem:[%s318 + $0x1e8] sm:$0xff] %vm2747, %v2746
      %v2780 = vld [vmem:[%s1538] sm:$0xff]
      %v2781 = vld [vmem:[%s1538 + $0x8] sm:$0xff]
      %v2782 = vld [vmem:[%s1538 + $0x18] sm:$0xff]
      %v2783 = vld [vmem:[%s1538 + $0x20] sm:$0xff]
      %v2784 = vld [vmem:[%s1538 + $0x30] sm:$0xff]
      %v2785 = vld [vmem:[%s1538 + $0x38] sm:$0xff]
      %v2786 = vld [vmem:[%s1538 + $0x48] sm:$0xff]
      %v2787 = vld [vmem:[%s1538 + $0x50] sm:$0xff]
      %v2788 = vld [vmem:[%s1538 + $0x60] sm:$0xff]
      %v2789 = vld [vmem:[%s1538 + $0x68] sm:$0xff]
      %v2790 = vld [vmem:[%s1538 + $0x78] sm:$0xff]
      %v2791 = vld [vmem:[%s1538 + $0x80] sm:$0xff]
      %v2792 = vld [vmem:[%s1538 + $0x90] sm:$0xff]
      %v2793 = vld [vmem:[%s1538 + $0x98] sm:$0xff]
      %v2794 = vld [vmem:[%s1538 + $0xa8] sm:$0xff]
      %v2795 = vld [vmem:[%s1538 + $0xb0] sm:$0xff]
      %v2796 = vld [vmem:[%s1538 + $0xc0] sm:$0xff]
      %v2797 = vld [vmem:[%s1538 + $0xc8] sm:$0xff]
      %v2798 = vld [vmem:[%s1538 + $0xd8] sm:$0xff]
      %v2799 = vld [vmem:[%s1538 + $0xe0] sm:$0xff]
      %v2800 = vld [vmem:[%s1538 + $0xf0] sm:$0xff]
      %v2801 = vld [vmem:[%s1538 + $0xf8] sm:$0xff]
      %v2802 = vld [vmem:[%s1538 + $0x108] sm:$0xff]
      %v2803 = vld [vmem:[%s1538 + $0x110] sm:$0xff]
      %v2804 = vld [vmem:[%s1538 + $0x120] sm:$0xff]
      %v2805 = vld [vmem:[%s1538 + $0x128] sm:$0xff]
      %v2806 = vld [vmem:[%s1538 + $0x138] sm:$0xff]
      %v2807 = vld [vmem:[%s1538 + $0x140] sm:$0xff]
      %v2808 = vld [vmem:[%s1538 + $0x150] sm:$0xff]
      %v2809 = vld [vmem:[%s1538 + $0x158] sm:$0xff]
      %v2810 = vld [vmem:[%s1538 + $0x168] sm:$0xff]
      %v2811 = vld [vmem:[%s1538 + $0x170] sm:$0xff]
      %s2812 = scalar_lea.vmem %s2, 24
      %v2813 = vld [vmem:[%s2812] sm:$0xf]
      %v2814 = vld [vmem:[%s1538 + $0x1] sm:$0xff]
      %v2815 = vld [vmem:[%s1538 + $0x9] sm:$0xff]
      %v2816 = vld [vmem:[%s1538 + $0x19] sm:$0xff]
      %v2817 = vld [vmem:[%s1538 + $0x21] sm:$0xff]
      %v2818 = vld [vmem:[%s1538 + $0x31] sm:$0xff]
      %v2819 = vld [vmem:[%s1538 + $0x39] sm:$0xff]
      %v2820 = vld [vmem:[%s1538 + $0x49] sm:$0xff]
      %v2821 = vld [vmem:[%s1538 + $0x51] sm:$0xff]
      %v2822 = vld [vmem:[%s1538 + $0x61] sm:$0xff]
      %v2823 = vld [vmem:[%s1538 + $0x69] sm:$0xff]
      %v2824 = vld [vmem:[%s1538 + $0x79] sm:$0xff]
      %v2825 = vld [vmem:[%s1538 + $0x81] sm:$0xff]
      %v2826 = vld [vmem:[%s1538 + $0x91] sm:$0xff]
      %v2827 = vld [vmem:[%s1538 + $0x99] sm:$0xff]
      %v2828 = vld [vmem:[%s1538 + $0xa9] sm:$0xff]
      %v2829 = vld [vmem:[%s1538 + $0xb1] sm:$0xff]
      %v2830 = vld [vmem:[%s1538 + $0xc1] sm:$0xff]
      %v2831 = vld [vmem:[%s1538 + $0xc9] sm:$0xff]
      %v2832 = vld [vmem:[%s1538 + $0xd9] sm:$0xff]
      %v2833 = vld [vmem:[%s1538 + $0xe1] sm:$0xff]
      %v2834 = vld [vmem:[%s1538 + $0xf1] sm:$0xff]
      %v2835 = vld [vmem:[%s1538 + $0xf9] sm:$0xff]
      %v2836 = vld [vmem:[%s1538 + $0x109] sm:$0xff]
      %v2837 = vld [vmem:[%s1538 + $0x111] sm:$0xff]
      %v2838 = vld [vmem:[%s1538 + $0x121] sm:$0xff]
      %v2839 = vld [vmem:[%s1538 + $0x129] sm:$0xff]
      %v2840 = vld [vmem:[%s1538 + $0x139] sm:$0xff]
      %v2841 = vld [vmem:[%s1538 + $0x141] sm:$0xff]
      %v2842 = vld [vmem:[%s1538 + $0x151] sm:$0xff]
      %v2843 = vld [vmem:[%s1538 + $0x159] sm:$0xff]
      %v2844 = vld [vmem:[%s1538 + $0x169] sm:$0xff]
      %v2845 = vld [vmem:[%s1538 + $0x171] sm:$0xff]
      %s2846 = scalar_lea.vmem %s2, 28
      %v2847 = vld [vmem:[%s2846] sm:$0xf]
      %v2849 = vsel %vm368, %v2814, 0
      %v2852 = vsel %vm368, %v2815, 0
      %v2855 = vsel %vm368, %v2816, 0
      %v2858 = vsel %vm368, %v2817, 0
      %v2861 = vsel %vm368, %v2818, 0
      %v2864 = vsel %vm368, %v2819, 0
      %v2867 = vsel %vm368, %v2820, 0
      %v2870 = vsel %vm368, %v2821, 0
      %v2873 = vsel %vm368, %v2822, 0
      %v2876 = vsel %vm368, %v2823, 0
      %v2879 = vsel %vm368, %v2824, 0
      %v2882 = vsel %vm368, %v2825, 0
      %v2885 = vsel %vm368, %v2826, 0
      %v2888 = vsel %vm368, %v2827, 0
      %v2891 = vsel %vm368, %v2828, 0
      %v2894 = vsel %vm368, %v2829, 0
      %v2897 = vsel %vm368, %v2830, 0
      %v2900 = vsel %vm368, %v2831, 0
      %v2903 = vsel %vm368, %v2832, 0
      %v2906 = vsel %vm368, %v2833, 0
      %v2909 = vsel %vm368, %v2834, 0
      %v2912 = vsel %vm368, %v2835, 0
      %v2915 = vsel %vm368, %v2836, 0
      %v2918 = vsel %vm368, %v2837, 0
      %v2921 = vsel %vm368, %v2838, 0
      %v2924 = vsel %vm368, %v2839, 0
      %v2927 = vsel %vm368, %v2840, 0
      %v2930 = vsel %vm368, %v2841, 0
      %v2933 = vsel %vm368, %v2842, 0
      %v2936 = vsel %vm368, %v2843, 0
      %v2939 = vsel %vm368, %v2844, 0
      %v2942 = vsel %vm368, %v2845, 0
      %v2945 = vsel %vm595, %v2847, 0
      %2947 = vmatprep.subr.mxu0 0.0
      %2948 = vmatpush1.msra.mxu0 %v2945
      %2949 = vmatprep.subr.mxu0 0.0
      %2950 = vmatpush1.msra.mxu0 0.0
      %2951 = vmatprep.subr.mxu0 0.0
      %2952 = vmatpush1.msra.mxu0 0.0
      %2953 = vmatprep.subr.mxu0 0.0
      %2954 = vmatpush1.msra.mxu0 0.0
      %2955 = vmatprep.subr.mxu0 0.0
      %2956 = vmatpush1.msra.mxu0 0.0
      %2957 = vmatprep.subr.mxu0 0.0
      %2958 = vmatpush1.msra.mxu0 0.0
      %2959 = vmatprep.subr.mxu0 0.0
      %2960 = vmatpush1.msra.mxu0 0.0
      %2961 = vmatprep.subr.mxu0 0.0
      %2962 = vmatpush1.msra.mxu0 0.0
      %2963 = vmatprep.subr.mxu0 0.0
      %2964 = vmatpush1.msra.mxu0 0.0
      %2965 = vmatprep.subr.mxu0 0.0
      %2966 = vmatpush1.msra.mxu0 0.0
      %2967 = vmatprep.subr.mxu0 0.0
      %2968 = vmatpush1.msra.mxu0 0.0
      %2969 = vmatprep.subr.mxu0 0.0
      %2970 = vmatpush1.msra.mxu0 0.0
      %2971 = vmatprep.subr.mxu0 0.0
      %2972 = vmatpush1.msra.mxu0 0.0
      %2973 = vmatprep.subr.mxu0 0.0
      %2974 = vmatpush1.msra.mxu0 0.0
      %2975 = vmatprep.subr.mxu0 0.0
      %2976 = vmatpush1.msra.mxu0 0.0
      %2977 = vmatprep.subr.mxu0 0.0
      %2978 = vmatpush1.msra.mxu0 0.0
      %2979 = vmatprep.subr.mxu0 0.0
      %2980 = vmatpush1.msra.mxu0 0.0
      %2981 = vmatprep.subr.mxu0 0.0
      %2982 = vmatpush1.msra.mxu0 0.0
      %2983 = vmatprep.subr.mxu0 0.0
      %2984 = vmatpush1.msra.mxu0 0.0
      %2985 = vmatprep.subr.mxu0 0.0
      %2986 = vmatpush1.msra.mxu0 0.0
      %2987 = vmatprep.subr.mxu0 0.0
      %2988 = vmatpush1.msra.mxu0 0.0
      %2989 = vmatprep.subr.mxu0 0.0
      %2990 = vmatpush1.msra.mxu0 0.0
      %2991 = vmatprep.subr.mxu0 0.0
      %2992 = vmatpush1.msra.mxu0 0.0
      %2993 = vmatprep.subr.mxu0 0.0
      %2994 = vmatpush1.msra.mxu0 0.0
      %2995 = vmatprep.subr.mxu0 0.0
      %2996 = vmatpush1.msra.mxu0 0.0
      %2997 = vmatprep.subr.mxu0 0.0
      %2998 = vmatpush1.msra.mxu0 0.0
      %2999 = vmatprep.subr.mxu0 0.0
      %3000 = vmatpush1.msra.mxu0 0.0
      %3001 = vmatprep.subr.mxu0 0.0
      %3002 = vmatpush1.msra.mxu0 0.0
      %3003 = vmatprep.subr.mxu0 0.0
      %3004 = vmatpush1.msra.mxu0 0.0
      %3005 = vmatprep.subr.mxu0 0.0
      %3006 = vmatpush1.msra.mxu0 0.0
      %3007 = vmatprep.subr.mxu0 0.0
      %3008 = vmatpush1.msra.mxu0 0.0
      %3009 = vmatprep.subr.mxu0 0.0
      %3010 = vmatpush1.msra.mxu0 0.0
      %3011 = vmatprep.mubr.f32.mxu0 0.0
      %3012 = vmatmul.mubr.f32.gmra.mrb[0].mxu0 %v2849
      %v3013 = vpop.f32.mrb[0].mxu0
      %v3014 = vadd.f32 0.0, %v3013
      %v3015 = vpop.f32.mrb[0].mxu0
      %3016 = vmatprep.mubr.f32.mxu0 0.0
      %3017 = vmatmul.mubr.f32.gmra.mrb[0].mxu0 %v2852
      %v3018 = vpop.f32.mrb[0].mxu0
      %v3019 = vadd.f32 0.0, %v3018
      %v3020 = vpop.f32.mrb[0].mxu0
      %3021 = vmatprep.mubr.f32.mxu0 0.0
      %3022 = vmatmul.mubr.f32.gmra.mrb[0].mxu0 %v2855
      %v3023 = vpop.f32.mrb[0].mxu0
      %v3024 = vadd.f32 0.0, %v3023
      %v3025 = vpop.f32.mrb[0].mxu0
      %3026 = vmatprep.mubr.f32.mxu0 0.0
      %3027 = vmatmul.mubr.f32.gmra.mrb[0].mxu0 %v2858
      %v3028 = vpop.f32.mrb[0].mxu0
      %v3029 = vadd.f32 0.0, %v3028
      %v3030 = vpop.f32.mrb[0].mxu0
      %3031 = vmatprep.mubr.f32.mxu0 0.0
      %3032 = vmatmul.mubr.f32.gmra.mrb[0].mxu0 %v2861
      %v3033 = vpop.f32.mrb[0].mxu0
      %v3034 = vadd.f32 0.0, %v3033
      %v3035 = vpop.f32.mrb[0].mxu0
      %3036 = vmatprep.mubr.f32.mxu0 0.0
      %3037 = vmatmul.mubr.f32.gmra.mrb[0].mxu0 %v2864
      %v3038 = vpop.f32.mrb[0].mxu0
      %v3039 = vadd.f32 0.0, %v3038
      %v3040 = vpop.f32.mrb[0].mxu0
      %3041 = vmatprep.mubr.f32.mxu0 0.0
      %3042 = vmatmul.mubr.f32.gmra.mrb[0].mxu0 %v2867
      %v3043 = vpop.f32.mrb[0].mxu0
      %v3044 = vadd.f32 0.0, %v3043
      %v3045 = vpop.f32.mrb[0].mxu0
      %3046 = vmatprep.mubr.f32.mxu0 0.0
      %3047 = vmatmul.mubr.f32.gmra.mrb[0].mxu0 %v2870
      %v3048 = vpop.f32.mrb[0].mxu0
      %v3049 = vadd.f32 0.0, %v3048
      %v3050 = vpop.f32.mrb[0].mxu0
      %3051 = vmatprep.mubr.f32.mxu0 0.0
      %3052 = vmatmul.mubr.f32.gmra.mrb[0].mxu0 %v2873
      %v3053 = vpop.f32.mrb[0].mxu0
      %v3054 = vadd.f32 0.0, %v3053
      %v3055 = vpop.f32.mrb[0].mxu0
      %3056 = vmatprep.mubr.f32.mxu0 0.0
      %3057 = vmatmul.mubr.f32.gmra.mrb[0].mxu0 %v2876
      %v3058 = vpop.f32.mrb[0].mxu0
      %v3059 = vadd.f32 0.0, %v3058
      %v3060 = vpop.f32.mrb[0].mxu0
      %3061 = vmatprep.mubr.f32.mxu0 0.0
      %3062 = vmatmul.mubr.f32.gmra.mrb[0].mxu0 %v2879
      %v3063 = vpop.f32.mrb[0].mxu0
      %v3064 = vadd.f32 0.0, %v3063
      %v3065 = vpop.f32.mrb[0].mxu0
      %3066 = vmatprep.mubr.f32.mxu0 0.0
      %3067 = vmatmul.mubr.f32.gmra.mrb[0].mxu0 %v2882
      %v3068 = vpop.f32.mrb[0].mxu0
      %v3069 = vadd.f32 0.0, %v3068
      %v3070 = vpop.f32.mrb[0].mxu0
      %3071 = vmatprep.mubr.f32.mxu0 0.0
      %3072 = vmatmul.mubr.f32.gmra.mrb[0].mxu0 %v2885
      %v3073 = vpop.f32.mrb[0].mxu0
      %v3074 = vadd.f32 0.0, %v3073
      %v3075 = vpop.f32.mrb[0].mxu0
      %3076 = vmatprep.mubr.f32.mxu0 0.0
      %3077 = vmatmul.mubr.f32.gmra.mrb[0].mxu0 %v2888
      %v3078 = vpop.f32.mrb[0].mxu0
      %v3079 = vadd.f32 0.0, %v3078
      %v3080 = vpop.f32.mrb[0].mxu0
      %3081 = vmatprep.mubr.f32.mxu0 0.0
      %3082 = vmatmul.mubr.f32.gmra.mrb[0].mxu0 %v2891
      %v3083 = vpop.f32.mrb[0].mxu0
      %v3084 = vadd.f32 0.0, %v3083
      %v3085 = vpop.f32.mrb[0].mxu0
      %3086 = vmatprep.mubr.f32.mxu0 0.0
      %3087 = vmatmul.mubr.f32.gmra.mrb[0].mxu0 %v2894
      %v3088 = vpop.f32.mrb[0].mxu0
      %v3089 = vadd.f32 0.0, %v3088
      %v3090 = vpop.f32.mrb[0].mxu0
      %3091 = vmatprep.mubr.f32.mxu0 0.0
      %3092 = vmatmul.mubr.f32.gmra.mrb[0].mxu0 %v2897
      %v3093 = vpop.f32.mrb[0].mxu0
      %v3094 = vadd.f32 0.0, %v3093
      %v3095 = vpop.f32.mrb[0].mxu0
      %3096 = vmatprep.mubr.f32.mxu0 0.0
      %3097 = vmatmul.mubr.f32.gmra.mrb[0].mxu0 %v2900
      %v3098 = vpop.f32.mrb[0].mxu0
      %v3099 = vadd.f32 0.0, %v3098
      %v3100 = vpop.f32.mrb[0].mxu0
      %3101 = vmatprep.mubr.f32.mxu0 0.0
      %3102 = vmatmul.mubr.f32.gmra.mrb[0].mxu0 %v2903
      %v3103 = vpop.f32.mrb[0].mxu0
      %v3104 = vadd.f32 0.0, %v3103
      %v3105 = vpop.f32.mrb[0].mxu0
      %3106 = vmatprep.mubr.f32.mxu0 0.0
      %3107 = vmatmul.mubr.f32.gmra.mrb[0].mxu0 %v2906
      %v3108 = vpop.f32.mrb[0].mxu0
      %v3109 = vadd.f32 0.0, %v3108
      %v3110 = vpop.f32.mrb[0].mxu0
      %3111 = vmatprep.mubr.f32.mxu0 0.0
      %3112 = vmatmul.mubr.f32.gmra.mrb[0].mxu0 %v2909
      %v3113 = vpop.f32.mrb[0].mxu0
      %v3114 = vadd.f32 0.0, %v3113
      %v3115 = vpop.f32.mrb[0].mxu0
      %3116 = vmatprep.mubr.f32.mxu0 0.0
      %3117 = vmatmul.mubr.f32.gmra.mrb[0].mxu0 %v2912
      %v3118 = vpop.f32.mrb[0].mxu0
      %v3119 = vadd.f32 0.0, %v3118
      %v3120 = vpop.f32.mrb[0].mxu0
      %3121 = vmatprep.mubr.f32.mxu0 0.0
      %3122 = vmatmul.mubr.f32.gmra.mrb[0].mxu0 %v2915
      %v3123 = vpop.f32.mrb[0].mxu0
      %v3124 = vadd.f32 0.0, %v3123
      %v3125 = vpop.f32.mrb[0].mxu0
      %3126 = vmatprep.mubr.f32.mxu0 0.0
      %3127 = vmatmul.mubr.f32.gmra.mrb[0].mxu0 %v2918
      %v3128 = vpop.f32.mrb[0].mxu0
      %v3129 = vadd.f32 0.0, %v3128
      %v3130 = vpop.f32.mrb[0].mxu0
      %3131 = vmatprep.mubr.f32.mxu0 0.0
      %3132 = vmatmul.mubr.f32.gmra.mrb[0].mxu0 %v2921
      %v3133 = vpop.f32.mrb[0].mxu0
      %v3134 = vadd.f32 0.0, %v3133
      %v3135 = vpop.f32.mrb[0].mxu0
      %3136 = vmatprep.mubr.f32.mxu0 0.0
      %3137 = vmatmul.mubr.f32.gmra.mrb[0].mxu0 %v2924
      %v3138 = vpop.f32.mrb[0].mxu0
      %v3139 = vadd.f32 0.0, %v3138
      %v3140 = vpop.f32.mrb[0].mxu0
      %3141 = vmatprep.mubr.f32.mxu0 0.0
      %3142 = vmatmul.mubr.f32.gmra.mrb[0].mxu0 %v2927
      %v3143 = vpop.f32.mrb[0].mxu0
      %v3144 = vadd.f32 0.0, %v3143
      %v3145 = vpop.f32.mrb[0].mxu0
      %3146 = vmatprep.mubr.f32.mxu0 0.0
      %3147 = vmatmul.mubr.f32.gmra.mrb[0].mxu0 %v2930
      %v3148 = vpop.f32.mrb[0].mxu0
      %v3149 = vadd.f32 0.0, %v3148
      %v3150 = vpop.f32.mrb[0].mxu0
      %3151 = vmatprep.mubr.f32.mxu0 0.0
      %3152 = vmatmul.mubr.f32.gmra.mrb[0].mxu0 %v2933
      %v3153 = vpop.f32.mrb[0].mxu0
      %v3154 = vadd.f32 0.0, %v3153
      %v3155 = vpop.f32.mrb[0].mxu0
      %3156 = vmatprep.mubr.f32.mxu0 0.0
      %3157 = vmatmul.mubr.f32.gmra.mrb[0].mxu0 %v2936
      %v3158 = vpop.f32.mrb[0].mxu0
      %v3159 = vadd.f32 0.0, %v3158
      %v3160 = vpop.f32.mrb[0].mxu0
      %3161 = vmatprep.mubr.f32.mxu0 0.0
      %3162 = vmatmul.mubr.f32.gmra.mrb[0].mxu0 %v2939
      %v3163 = vpop.f32.mrb[0].mxu0
      %v3164 = vadd.f32 0.0, %v3163
      %v3165 = vpop.f32.mrb[0].mxu0
      %3166 = vmatprep.mubr.f32.mxu0 0.0
      %3167 = vmatmul.mubr.f32.gmra.mrb[0].mxu0 %v2942
      %v3168 = vpop.f32.mrb[0].mxu0
      %v3169 = vadd.f32 0.0, %v3168
      %v3170 = vpop.f32.mrb[0].mxu0
      %3171 = vdwg.mxu0
      %v3173 = vsel %vm368, %v2780, 0
      %v3176 = vsel %vm368, %v2781, 0
      %v3179 = vsel %vm368, %v2782, 0
      %v3182 = vsel %vm368, %v2783, 0
      %v3185 = vsel %vm368, %v2784, 0
      %v3188 = vsel %vm368, %v2785, 0
      %v3191 = vsel %vm368, %v2786, 0
      %v3194 = vsel %vm368, %v2787, 0
      %v3197 = vsel %vm368, %v2788, 0
      %v3200 = vsel %vm368, %v2789, 0
      %v3203 = vsel %vm368, %v2790, 0
      %v3206 = vsel %vm368, %v2791, 0
      %v3209 = vsel %vm368, %v2792, 0
      %v3212 = vsel %vm368, %v2793, 0
      %v3215 = vsel %vm368, %v2794, 0
      %v3218 = vsel %vm368, %v2795, 0
      %v3221 = vsel %vm368, %v2796, 0
      %v3224 = vsel %vm368, %v2797, 0
      %v3227 = vsel %vm368, %v2798, 0
      %v3230 = vsel %vm368, %v2799, 0
      %v3233 = vsel %vm368, %v2800, 0
      %v3236 = vsel %vm368, %v2801, 0
      %v3239 = vsel %vm368, %v2802, 0
      %v3242 = vsel %vm368, %v2803, 0
      %v3245 = vsel %vm368, %v2804, 0
      %v3248 = vsel %vm368, %v2805, 0
      %v3251 = vsel %vm368, %v2806, 0
      %v3254 = vsel %vm368, %v2807, 0
      %v3257 = vsel %vm368, %v2808, 0
      %v3260 = vsel %vm368, %v2809, 0
      %v3263 = vsel %vm368, %v2810, 0
      %v3266 = vsel %vm368, %v2811, 0
      %v3269 = vsel %vm595, %v2813, 0
      %3271 = vmatprep.subr.mxu0 0.0
      %3272 = vmatpush1.msra.mxu0 %v3269
      %3273 = vmatprep.subr.mxu0 0.0
      %3274 = vmatpush1.msra.mxu0 0.0
      %3275 = vmatprep.subr.mxu0 0.0
      %3276 = vmatpush1.msra.mxu0 0.0
      %3277 = vmatprep.subr.mxu0 0.0
      %3278 = vmatpush1.msra.mxu0 0.0
      %3279 = vmatprep.subr.mxu0 0.0
      %3280 = vmatpush1.msra.mxu0 0.0
      %3281 = vmatprep.subr.mxu0 0.0
      %3282 = vmatpush1.msra.mxu0 0.0
      %3283 = vmatprep.subr.mxu0 0.0
      %3284 = vmatpush1.msra.mxu0 0.0
      %3285 = vmatprep.subr.mxu0 0.0
      %3286 = vmatpush1.msra.mxu0 0.0
      %3287 = vmatprep.subr.mxu0 0.0
      %3288 = vmatpush1.msra.mxu0 0.0
      %3289 = vmatprep.subr.mxu0 0.0
      %3290 = vmatpush1.msra.mxu0 0.0
      %3291 = vmatprep.subr.mxu0 0.0
      %3292 = vmatpush1.msra.mxu0 0.0
      %3293 = vmatprep.subr.mxu0 0.0
      %3294 = vmatpush1.msra.mxu0 0.0
      %3295 = vmatprep.subr.mxu0 0.0
      %3296 = vmatpush1.msra.mxu0 0.0
      %3297 = vmatprep.subr.mxu0 0.0
      %3298 = vmatpush1.msra.mxu0 0.0
      %3299 = vmatprep.subr.mxu0 0.0
      %3300 = vmatpush1.msra.mxu0 0.0
      %3301 = vmatprep.subr.mxu0 0.0
      %3302 = vmatpush1.msra.mxu0 0.0
      %3303 = vmatprep.subr.mxu0 0.0
      %3304 = vmatpush1.msra.mxu0 0.0
      %3305 = vmatprep.subr.mxu0 0.0
      %3306 = vmatpush1.msra.mxu0 0.0
      %3307 = vmatprep.subr.mxu0 0.0
      %3308 = vmatpush1.msra.mxu0 0.0
      %3309 = vmatprep.subr.mxu0 0.0
      %3310 = vmatpush1.msra.mxu0 0.0
      %3311 = vmatprep.subr.mxu0 0.0
      %3312 = vmatpush1.msra.mxu0 0.0
      %3313 = vmatprep.subr.mxu0 0.0
      %3314 = vmatpush1.msra.mxu0 0.0
      %3315 = vmatprep.subr.mxu0 0.0
      %3316 = vmatpush1.msra.mxu0 0.0
      %3317 = vmatprep.subr.mxu0 0.0
      %3318 = vmatpush1.msra.mxu0 0.0
      %3319 = vmatprep.subr.mxu0 0.0
      %3320 = vmatpush1.msra.mxu0 0.0
      %3321 = vmatprep.subr.mxu0 0.0
      %3322 = vmatpush1.msra.mxu0 0.0
      %3323 = vmatprep.subr.mxu0 0.0
      %3324 = vmatpush1.msra.mxu0 0.0
      %3325 = vmatprep.subr.mxu0 0.0
      %3326 = vmatpush1.msra.mxu0 0.0
      %3327 = vmatprep.subr.mxu0 0.0
      %3328 = vmatpush1.msra.mxu0 0.0
      %3329 = vmatprep.subr.mxu0 0.0
      %3330 = vmatpush1.msra.mxu0 0.0
      %3331 = vmatprep.subr.mxu0 0.0
      %3332 = vmatpush1.msra.mxu0 0.0
      %3333 = vmatprep.subr.mxu0 0.0
      %3334 = vmatpush1.msra.mxu0 0.0
      %3335 = vmatprep.mubr.f32.mxu0 0.0
      %3336 = vmatmul.mubr.f32.gmra.mrb[0].mxu0 %v3173
      %v3337 = vpop.f32.mrb[0].mxu0
      %v3338 = vadd.f32 %v3014, %v3337
      %v3339 = vpop.f32.mrb[0].mxu0
      %3340 = vmatprep.mubr.f32.mxu0 0.0
      %3341 = vmatmul.mubr.f32.gmra.mrb[0].mxu0 %v3176
      %v3342 = vpop.f32.mrb[0].mxu0
      %v3343 = vadd.f32 %v3019, %v3342
      %v3344 = vpop.f32.mrb[0].mxu0
      %3345 = vmatprep.mubr.f32.mxu0 0.0
      %3346 = vmatmul.mubr.f32.gmra.mrb[0].mxu0 %v3179
      %v3347 = vpop.f32.mrb[0].mxu0
      %v3348 = vadd.f32 %v3024, %v3347
      %v3349 = vpop.f32.mrb[0].mxu0
      %3350 = vmatprep.mubr.f32.mxu0 0.0
      %3351 = vmatmul.mubr.f32.gmra.mrb[0].mxu0 %v3182
      %v3352 = vpop.f32.mrb[0].mxu0
      %v3353 = vadd.f32 %v3029, %v3352
      %v3354 = vpop.f32.mrb[0].mxu0
      %3355 = vmatprep.mubr.f32.mxu0 0.0
      %3356 = vmatmul.mubr.f32.gmra.mrb[0].mxu0 %v3185
      %v3357 = vpop.f32.mrb[0].mxu0
      %v3358 = vadd.f32 %v3034, %v3357
      %v3359 = vpop.f32.mrb[0].mxu0
      %3360 = vmatprep.mubr.f32.mxu0 0.0
      %3361 = vmatmul.mubr.f32.gmra.mrb[0].mxu0 %v3188
      %v3362 = vpop.f32.mrb[0].mxu0
      %v3363 = vadd.f32 %v3039, %v3362
      %v3364 = vpop.f32.mrb[0].mxu0
      %3365 = vmatprep.mubr.f32.mxu0 0.0
      %3366 = vmatmul.mubr.f32.gmra.mrb[0].mxu0 %v3191
      %v3367 = vpop.f32.mrb[0].mxu0
      %v3368 = vadd.f32 %v3044, %v3367
      %v3369 = vpop.f32.mrb[0].mxu0
      %3370 = vmatprep.mubr.f32.mxu0 0.0
      %3371 = vmatmul.mubr.f32.gmra.mrb[0].mxu0 %v3194
      %v3372 = vpop.f32.mrb[0].mxu0
      %v3373 = vadd.f32 %v3049, %v3372
      %v3374 = vpop.f32.mrb[0].mxu0
      %3375 = vmatprep.mubr.f32.mxu0 0.0
      %3376 = vmatmul.mubr.f32.gmra.mrb[0].mxu0 %v3197
      %v3377 = vpop.f32.mrb[0].mxu0
      %v3378 = vadd.f32 %v3054, %v3377
      %v3379 = vpop.f32.mrb[0].mxu0
      %3380 = vmatprep.mubr.f32.mxu0 0.0
      %3381 = vmatmul.mubr.f32.gmra.mrb[0].mxu0 %v3200
      %v3382 = vpop.f32.mrb[0].mxu0
      %v3383 = vadd.f32 %v3059, %v3382
      %v3384 = vpop.f32.mrb[0].mxu0
      %3385 = vmatprep.mubr.f32.mxu0 0.0
      %3386 = vmatmul.mubr.f32.gmra.mrb[0].mxu0 %v3203
      %v3387 = vpop.f32.mrb[0].mxu0
      %v3388 = vadd.f32 %v3064, %v3387
      %v3389 = vpop.f32.mrb[0].mxu0
      %3390 = vmatprep.mubr.f32.mxu0 0.0
      %3391 = vmatmul.mubr.f32.gmra.mrb[0].mxu0 %v3206
      %v3392 = vpop.f32.mrb[0].mxu0
      %v3393 = vadd.f32 %v3069, %v3392
      %v3394 = vpop.f32.mrb[0].mxu0
      %3395 = vmatprep.mubr.f32.mxu0 0.0
      %3396 = vmatmul.mubr.f32.gmra.mrb[0].mxu0 %v3209
      %v3397 = vpop.f32.mrb[0].mxu0
      %v3398 = vadd.f32 %v3074, %v3397
      %v3399 = vpop.f32.mrb[0].mxu0
      %3400 = vmatprep.mubr.f32.mxu0 0.0
      %3401 = vmatmul.mubr.f32.gmra.mrb[0].mxu0 %v3212
      %v3402 = vpop.f32.mrb[0].mxu0
      %v3403 = vadd.f32 %v3079, %v3402
      %v3404 = vpop.f32.mrb[0].mxu0
      %3405 = vmatprep.mubr.f32.mxu0 0.0
      %3406 = vmatmul.mubr.f32.gmra.mrb[0].mxu0 %v3215
      %v3407 = vpop.f32.mrb[0].mxu0
      %v3408 = vadd.f32 %v3084, %v3407
      %v3409 = vpop.f32.mrb[0].mxu0
      %3410 = vmatprep.mubr.f32.mxu0 0.0
      %3411 = vmatmul.mubr.f32.gmra.mrb[0].mxu0 %v3218
      %v3412 = vpop.f32.mrb[0].mxu0
      %v3413 = vadd.f32 %v3089, %v3412
      %v3414 = vpop.f32.mrb[0].mxu0
      %3415 = vmatprep.mubr.f32.mxu0 0.0
      %3416 = vmatmul.mubr.f32.gmra.mrb[0].mxu0 %v3221
      %v3417 = vpop.f32.mrb[0].mxu0
      %v3418 = vadd.f32 %v3094, %v3417
      %v3419 = vpop.f32.mrb[0].mxu0
      %3420 = vmatprep.mubr.f32.mxu0 0.0
      %3421 = vmatmul.mubr.f32.gmra.mrb[0].mxu0 %v3224
      %v3422 = vpop.f32.mrb[0].mxu0
      %v3423 = vadd.f32 %v3099, %v3422
      %v3424 = vpop.f32.mrb[0].mxu0
      %3425 = vmatprep.mubr.f32.mxu0 0.0
      %3426 = vmatmul.mubr.f32.gmra.mrb[0].mxu0 %v3227
      %v3427 = vpop.f32.mrb[0].mxu0
      %v3428 = vadd.f32 %v3104, %v3427
      %v3429 = vpop.f32.mrb[0].mxu0
      %3430 = vmatprep.mubr.f32.mxu0 0.0
      %3431 = vmatmul.mubr.f32.gmra.mrb[0].mxu0 %v3230
      %v3432 = vpop.f32.mrb[0].mxu0
      %v3433 = vadd.f32 %v3109, %v3432
      %v3434 = vpop.f32.mrb[0].mxu0
      %3435 = vmatprep.mubr.f32.mxu0 0.0
      %3436 = vmatmul.mubr.f32.gmra.mrb[0].mxu0 %v3233
      %v3437 = vpop.f32.mrb[0].mxu0
      %v3438 = vadd.f32 %v3114, %v3437
      %v3439 = vpop.f32.mrb[0].mxu0
      %3440 = vmatprep.mubr.f32.mxu0 0.0
      %3441 = vmatmul.mubr.f32.gmra.mrb[0].mxu0 %v3236
      %v3442 = vpop.f32.mrb[0].mxu0
      %v3443 = vadd.f32 %v3119, %v3442
      %v3444 = vpop.f32.mrb[0].mxu0
      %3445 = vmatprep.mubr.f32.mxu0 0.0
      %3446 = vmatmul.mubr.f32.gmra.mrb[0].mxu0 %v3239
      %v3447 = vpop.f32.mrb[0].mxu0
      %v3448 = vadd.f32 %v3124, %v3447
      %v3449 = vpop.f32.mrb[0].mxu0
      %3450 = vmatprep.mubr.f32.mxu0 0.0
      %3451 = vmatmul.mubr.f32.gmra.mrb[0].mxu0 %v3242
      %v3452 = vpop.f32.mrb[0].mxu0
      %v3453 = vadd.f32 %v3129, %v3452
      %v3454 = vpop.f32.mrb[0].mxu0
      %3455 = vmatprep.mubr.f32.mxu0 0.0
      %3456 = vmatmul.mubr.f32.gmra.mrb[0].mxu0 %v3245
      %v3457 = vpop.f32.mrb[0].mxu0
      %v3458 = vadd.f32 %v3134, %v3457
      %v3459 = vpop.f32.mrb[0].mxu0
      %3460 = vmatprep.mubr.f32.mxu0 0.0
      %3461 = vmatmul.mubr.f32.gmra.mrb[0].mxu0 %v3248
      %v3462 = vpop.f32.mrb[0].mxu0
      %v3463 = vadd.f32 %v3139, %v3462
      %v3464 = vpop.f32.mrb[0].mxu0
      %3465 = vmatprep.mubr.f32.mxu0 0.0
      %3466 = vmatmul.mubr.f32.gmra.mrb[0].mxu0 %v3251
      %v3467 = vpop.f32.mrb[0].mxu0
      %v3468 = vadd.f32 %v3144, %v3467
      %v3469 = vpop.f32.mrb[0].mxu0
      %3470 = vmatprep.mubr.f32.mxu0 0.0
      %3471 = vmatmul.mubr.f32.gmra.mrb[0].mxu0 %v3254
      %v3472 = vpop.f32.mrb[0].mxu0
      %v3473 = vadd.f32 %v3149, %v3472
      %v3474 = vpop.f32.mrb[0].mxu0
      %3475 = vmatprep.mubr.f32.mxu0 0.0
      %3476 = vmatmul.mubr.f32.gmra.mrb[0].mxu0 %v3257
      %v3477 = vpop.f32.mrb[0].mxu0
      %v3478 = vadd.f32 %v3154, %v3477
      %v3479 = vpop.f32.mrb[0].mxu0
      %3480 = vmatprep.mubr.f32.mxu0 0.0
      %3481 = vmatmul.mubr.f32.gmra.mrb[0].mxu0 %v3260
      %v3482 = vpop.f32.mrb[0].mxu0
      %v3483 = vadd.f32 %v3159, %v3482
      %v3484 = vpop.f32.mrb[0].mxu0
      %3485 = vmatprep.mubr.f32.mxu0 0.0
      %3486 = vmatmul.mubr.f32.gmra.mrb[0].mxu0 %v3263
      %v3487 = vpop.f32.mrb[0].mxu0
      %v3488 = vadd.f32 %v3164, %v3487
      %v3489 = vpop.f32.mrb[0].mxu0
      %3490 = vmatprep.mubr.f32.mxu0 0.0
      %3491 = vmatmul.mubr.f32.gmra.mrb[0].mxu0 %v3266
      %v3492 = vpop.f32.mrb[0].mxu0
      %v3493 = vadd.f32 %v3169, %v3492
      %v3494 = vpop.f32.mrb[0].mxu0
      %3495 = vdwg.mxu0
      %v3496 = vld [vmem:[%s1538 + $0x2] sm:$0xff]
      %v3497 = vld [vmem:[%s1538 + $0xa] sm:$0xff]
      %v3498 = vld [vmem:[%s1538 + $0x1a] sm:$0xff]
      %v3499 = vld [vmem:[%s1538 + $0x22] sm:$0xff]
      %v3500 = vld [vmem:[%s1538 + $0x32] sm:$0xff]
      %v3501 = vld [vmem:[%s1538 + $0x3a] sm:$0xff]
      %v3502 = vld [vmem:[%s1538 + $0x4a] sm:$0xff]
      %v3503 = vld [vmem:[%s1538 + $0x52] sm:$0xff]
      %v3504 = vld [vmem:[%s1538 + $0x62] sm:$0xff]
      %v3505 = vld [vmem:[%s1538 + $0x6a] sm:$0xff]
      %v3506 = vld [vmem:[%s1538 + $0x7a] sm:$0xff]
      %v3507 = vld [vmem:[%s1538 + $0x82] sm:$0xff]
      %v3508 = vld [vmem:[%s1538 + $0x92] sm:$0xff]
      %v3509 = vld [vmem:[%s1538 + $0x9a] sm:$0xff]
      %v3510 = vld [vmem:[%s1538 + $0xaa] sm:$0xff]
      %v3511 = vld [vmem:[%s1538 + $0xb2] sm:$0xff]
      %v3512 = vld [vmem:[%s1538 + $0xc2] sm:$0xff]
      %v3513 = vld [vmem:[%s1538 + $0xca] sm:$0xff]
      %v3514 = vld [vmem:[%s1538 + $0xda] sm:$0xff]
      %v3515 = vld [vmem:[%s1538 + $0xe2] sm:$0xff]
      %v3516 = vld [vmem:[%s1538 + $0xf2] sm:$0xff]
      %v3517 = vld [vmem:[%s1538 + $0xfa] sm:$0xff]
      %v3518 = vld [vmem:[%s1538 + $0x10a] sm:$0xff]
      %v3519 = vld [vmem:[%s1538 + $0x112] sm:$0xff]
      %v3520 = vld [vmem:[%s1538 + $0x122] sm:$0xff]
      %v3521 = vld [vmem:[%s1538 + $0x12a] sm:$0xff]
      %v3522 = vld [vmem:[%s1538 + $0x13a] sm:$0xff]
      %v3523 = vld [vmem:[%s1538 + $0x142] sm:$0xff]
      %v3524 = vld [vmem:[%s1538 + $0x152] sm:$0xff]
      %v3525 = vld [vmem:[%s1538 + $0x15a] sm:$0xff]
      %v3526 = vld [vmem:[%s1538 + $0x16a] sm:$0xff]
      %v3527 = vld [vmem:[%s1538 + $0x172] sm:$0xff]
      %s3528 = scalar_lea.vmem %s2, 32
      %v3529 = vld [vmem:[%s3528] sm:$0xf]
      %v3531 = vsel %vm368, %v3496, 0
      %v3534 = vsel %vm368, %v3497, 0
      %v3537 = vsel %vm368, %v3498, 0
      %v3540 = vsel %vm368, %v3499, 0
      %v3543 = vsel %vm368, %v3500, 0
      %v3546 = vsel %vm368, %v3501, 0
      %v3549 = vsel %vm368, %v3502, 0
      %v3552 = vsel %vm368, %v3503, 0
      %v3555 = vsel %vm368, %v3504, 0
      %v3558 = vsel %vm368, %v3505, 0
      %v3561 = vsel %vm368, %v3506, 0
      %v3564 = vsel %vm368, %v3507, 0
      %v3567 = vsel %vm368, %v3508, 0
      %v3570 = vsel %vm368, %v3509, 0
      %v3573 = vsel %vm368, %v3510, 0
      %v3576 = vsel %vm368, %v3511, 0
      %v3579 = vsel %vm368, %v3512, 0
      %v3582 = vsel %vm368, %v3513, 0
      %v3585 = vsel %vm368, %v3514, 0
      %v3588 = vsel %vm368, %v3515, 0
      %v3591 = vsel %vm368, %v3516, 0
      %v3594 = vsel %vm368, %v3517, 0
      %v3597 = vsel %vm368, %v3518, 0
      %v3600 = vsel %vm368, %v3519, 0
      %v3603 = vsel %vm368, %v3520, 0
      %v3606 = vsel %vm368, %v3521, 0
      %v3609 = vsel %vm368, %v3522, 0
      %v3612 = vsel %vm368, %v3523, 0
      %v3615 = vsel %vm368, %v3524, 0
      %v3618 = vsel %vm368, %v3525, 0
      %v3621 = vsel %vm368, %v3526, 0
      %v3624 = vsel %vm368, %v3527, 0
      %v3627 = vsel %vm595, %v3529, 0
      %3629 = vmatprep.subr.mxu0 0.0
      %3630 = vmatpush1.msra.mxu0 %v3627
      %3631 = vmatprep.subr.mxu0 0.0
      %3632 = vmatpush1.msra.mxu0 0.0
      %3633 = vmatprep.subr.mxu0 0.0
      %3634 = vmatpush1.msra.mxu0 0.0
      %3635 = vmatprep.subr.mxu0 0.0
      %3636 = vmatpush1.msra.mxu0 0.0
      %3637 = vmatprep.subr.mxu0 0.0
      %3638 = vmatpush1.msra.mxu0 0.0
      %3639 = vmatprep.subr.mxu0 0.0
      %3640 = vmatpush1.msra.mxu0 0.0
      %3641 = vmatprep.subr.mxu0 0.0
      %3642 = vmatpush1.msra.mxu0 0.0
      %3643 = vmatprep.subr.mxu0 0.0
      %3644 = vmatpush1.msra.mxu0 0.0
      %3645 = vmatprep.subr.mxu0 0.0
      %3646 = vmatpush1.msra.mxu0 0.0
      %3647 = vmatprep.subr.mxu0 0.0
      %3648 = vmatpush1.msra.mxu0 0.0
      %3649 = vmatprep.subr.mxu0 0.0
      %3650 = vmatpush1.msra.mxu0 0.0
      %3651 = vmatprep.subr.mxu0 0.0
      %3652 = vmatpush1.msra.mxu0 0.0
      %3653 = vmatprep.subr.mxu0 0.0
      %3654 = vmatpush1.msra.mxu0 0.0
      %3655 = vmatprep.subr.mxu0 0.0
      %3656 = vmatpush1.msra.mxu0 0.0
      %3657 = vmatprep.subr.mxu0 0.0
      %3658 = vmatpush1.msra.mxu0 0.0
      %3659 = vmatprep.subr.mxu0 0.0
      %3660 = vmatpush1.msra.mxu0 0.0
      %3661 = vmatprep.subr.mxu0 0.0
      %3662 = vmatpush1.msra.mxu0 0.0
      %3663 = vmatprep.subr.mxu0 0.0
      %3664 = vmatpush1.msra.mxu0 0.0
      %3665 = vmatprep.subr.mxu0 0.0
      %3666 = vmatpush1.msra.mxu0 0.0
      %3667 = vmatprep.subr.mxu0 0.0
      %3668 = vmatpush1.msra.mxu0 0.0
      %3669 = vmatprep.subr.mxu0 0.0
      %3670 = vmatpush1.msra.mxu0 0.0
      %3671 = vmatprep.subr.mxu0 0.0
      %3672 = vmatpush1.msra.mxu0 0.0
      %3673 = vmatprep.subr.mxu0 0.0
      %3674 = vmatpush1.msra.mxu0 0.0
      %3675 = vmatprep.subr.mxu0 0.0
      %3676 = vmatpush1.msra.mxu0 0.0
      %3677 = vmatprep.subr.mxu0 0.0
      %3678 = vmatpush1.msra.mxu0 0.0
      %3679 = vmatprep.subr.mxu0 0.0
      %3680 = vmatpush1.msra.mxu0 0.0
      %3681 = vmatprep.subr.mxu0 0.0
      %3682 = vmatpush1.msra.mxu0 0.0
      %3683 = vmatprep.subr.mxu0 0.0
      %3684 = vmatpush1.msra.mxu0 0.0
      %3685 = vmatprep.subr.mxu0 0.0
      %3686 = vmatpush1.msra.mxu0 0.0
      %3687 = vmatprep.subr.mxu0 0.0
      %3688 = vmatpush1.msra.mxu0 0.0
      %3689 = vmatprep.subr.mxu0 0.0
      %3690 = vmatpush1.msra.mxu0 0.0
      %3691 = vmatprep.subr.mxu0 0.0
      %3692 = vmatpush1.msra.mxu0 0.0
      %3693 = vmatprep.mubr.f32.mxu0 0.0
      %3694 = vmatmul.mubr.f32.gmra.mrb[0].mxu0 %v3531
      %v3695 = vpop.f32.mrb[0].mxu0
      %v3696 = vadd.f32 0.0, %v3695
      %v3697 = vpop.f32.mrb[0].mxu0
      %3698 = vmatprep.mubr.f32.mxu0 0.0
      %3699 = vmatmul.mubr.f32.gmra.mrb[0].mxu0 %v3534
      %v3700 = vpop.f32.mrb[0].mxu0
      %v3701 = vadd.f32 0.0, %v3700
      %v3702 = vpop.f32.mrb[0].mxu0
      %3703 = vmatprep.mubr.f32.mxu0 0.0
      %3704 = vmatmul.mubr.f32.gmra.mrb[0].mxu0 %v3537
      %v3705 = vpop.f32.mrb[0].mxu0
      %v3706 = vadd.f32 0.0, %v3705
      %v3707 = vpop.f32.mrb[0].mxu0
      %3708 = vmatprep.mubr.f32.mxu0 0.0
      %3709 = vmatmul.mubr.f32.gmra.mrb[0].mxu0 %v3540
      %v3710 = vpop.f32.mrb[0].mxu0
      %v3711 = vadd.f32 0.0, %v3710
      %v3712 = vpop.f32.mrb[0].mxu0
      %3713 = vmatprep.mubr.f32.mxu0 0.0
      %3714 = vmatmul.mubr.f32.gmra.mrb[0].mxu0 %v3543
      %v3715 = vpop.f32.mrb[0].mxu0
      %v3716 = vadd.f32 0.0, %v3715
      %v3717 = vpop.f32.mrb[0].mxu0
      %3718 = vmatprep.mubr.f32.mxu0 0.0
      %3719 = vmatmul.mubr.f32.gmra.mrb[0].mxu0 %v3546
      %v3720 = vpop.f32.mrb[0].mxu0
      %v3721 = vadd.f32 0.0, %v3720
      %v3722 = vpop.f32.mrb[0].mxu0
      %3723 = vmatprep.mubr.f32.mxu0 0.0
      %3724 = vmatmul.mubr.f32.gmra.mrb[0].mxu0 %v3549
      %v3725 = vpop.f32.mrb[0].mxu0
      %v3726 = vadd.f32 0.0, %v3725
      %v3727 = vpop.f32.mrb[0].mxu0
      %3728 = vmatprep.mubr.f32.mxu0 0.0
      %3729 = vmatmul.mubr.f32.gmra.mrb[0].mxu0 %v3552
      %v3730 = vpop.f32.mrb[0].mxu0
      %v3731 = vadd.f32 0.0, %v3730
      %v3732 = vpop.f32.mrb[0].mxu0
      %3733 = vmatprep.mubr.f32.mxu0 0.0
      %3734 = vmatmul.mubr.f32.gmra.mrb[0].mxu0 %v3555
      %v3735 = vpop.f32.mrb[0].mxu0
      %v3736 = vadd.f32 0.0, %v3735
      %v3737 = vpop.f32.mrb[0].mxu0
      %3738 = vmatprep.mubr.f32.mxu0 0.0
      %3739 = vmatmul.mubr.f32.gmra.mrb[0].mxu0 %v3558
      %v3740 = vpop.f32.mrb[0].mxu0
      %v3741 = vadd.f32 0.0, %v3740
      %v3742 = vpop.f32.mrb[0].mxu0
      %3743 = vmatprep.mubr.f32.mxu0 0.0
      %3744 = vmatmul.mubr.f32.gmra.mrb[0].mxu0 %v3561
      %v3745 = vpop.f32.mrb[0].mxu0
      %v3746 = vadd.f32 0.0, %v3745
      %v3747 = vpop.f32.mrb[0].mxu0
      %3748 = vmatprep.mubr.f32.mxu0 0.0
      %3749 = vmatmul.mubr.f32.gmra.mrb[0].mxu0 %v3564
      %v3750 = vpop.f32.mrb[0].mxu0
      %v3751 = vadd.f32 0.0, %v3750
      %v3752 = vpop.f32.mrb[0].mxu0
      %3753 = vmatprep.mubr.f32.mxu0 0.0
      %3754 = vmatmul.mubr.f32.gmra.mrb[0].mxu0 %v3567
      %v3755 = vpop.f32.mrb[0].mxu0
      %v3756 = vadd.f32 0.0, %v3755
      %v3757 = vpop.f32.mrb[0].mxu0
      %3758 = vmatprep.mubr.f32.mxu0 0.0
      %3759 = vmatmul.mubr.f32.gmra.mrb[0].mxu0 %v3570
      %v3760 = vpop.f32.mrb[0].mxu0
      %v3761 = vadd.f32 0.0, %v3760
      %v3762 = vpop.f32.mrb[0].mxu0
      %3763 = vmatprep.mubr.f32.mxu0 0.0
      %3764 = vmatmul.mubr.f32.gmra.mrb[0].mxu0 %v3573
      %v3765 = vpop.f32.mrb[0].mxu0
      %v3766 = vadd.f32 0.0, %v3765
      %v3767 = vpop.f32.mrb[0].mxu0
      %3768 = vmatprep.mubr.f32.mxu0 0.0
      %3769 = vmatmul.mubr.f32.gmra.mrb[0].mxu0 %v3576
      %v3770 = vpop.f32.mrb[0].mxu0
      %v3771 = vadd.f32 0.0, %v3770
      %v3772 = vpop.f32.mrb[0].mxu0
      %3773 = vmatprep.mubr.f32.mxu0 0.0
      %3774 = vmatmul.mubr.f32.gmra.mrb[0].mxu0 %v3579
      %v3775 = vpop.f32.mrb[0].mxu0
      %v3776 = vadd.f32 0.0, %v3775
      %v3777 = vpop.f32.mrb[0].mxu0
      %3778 = vmatprep.mubr.f32.mxu0 0.0
      %3779 = vmatmul.mubr.f32.gmra.mrb[0].mxu0 %v3582
      %v3780 = vpop.f32.mrb[0].mxu0
      %v3781 = vadd.f32 0.0, %v3780
      %v3782 = vpop.f32.mrb[0].mxu0
      %3783 = vmatprep.mubr.f32.mxu0 0.0
      %3784 = vmatmul.mubr.f32.gmra.mrb[0].mxu0 %v3585
      %v3785 = vpop.f32.mrb[0].mxu0
      %v3786 = vadd.f32 0.0, %v3785
      %v3787 = vpop.f32.mrb[0].mxu0
      %3788 = vmatprep.mubr.f32.mxu0 0.0
      %3789 = vmatmul.mubr.f32.gmra.mrb[0].mxu0 %v3588
      %v3790 = vpop.f32.mrb[0].mxu0
      %v3791 = vadd.f32 0.0, %v3790
      %v3792 = vpop.f32.mrb[0].mxu0
      %3793 = vmatprep.mubr.f32.mxu0 0.0
      %3794 = vmatmul.mubr.f32.gmra.mrb[0].mxu0 %v3591
      %v3795 = vpop.f32.mrb[0].mxu0
      %v3796 = vadd.f32 0.0, %v3795
      %v3797 = vpop.f32.mrb[0].mxu0
      %3798 = vmatprep.mubr.f32.mxu0 0.0
      %3799 = vmatmul.mubr.f32.gmra.mrb[0].mxu0 %v3594
      %v3800 = vpop.f32.mrb[0].mxu0
      %v3801 = vadd.f32 0.0, %v3800
      %v3802 = vpop.f32.mrb[0].mxu0
      %3803 = vmatprep.mubr.f32.mxu0 0.0
      %3804 = vmatmul.mubr.f32.gmra.mrb[0].mxu0 %v3597
      %v3805 = vpop.f32.mrb[0].mxu0
      %v3806 = vadd.f32 0.0, %v3805
      %v3807 = vpop.f32.mrb[0].mxu0
      %3808 = vmatprep.mubr.f32.mxu0 0.0
      %3809 = vmatmul.mubr.f32.gmra.mrb[0].mxu0 %v3600
      %v3810 = vpop.f32.mrb[0].mxu0
      %v3811 = vadd.f32 0.0, %v3810
      %v3812 = vpop.f32.mrb[0].mxu0
      %3813 = vmatprep.mubr.f32.mxu0 0.0
      %3814 = vmatmul.mubr.f32.gmra.mrb[0].mxu0 %v3603
      %v3815 = vpop.f32.mrb[0].mxu0
      %v3816 = vadd.f32 0.0, %v3815
      %v3817 = vpop.f32.mrb[0].mxu0
      %3818 = vmatprep.mubr.f32.mxu0 0.0
      %3819 = vmatmul.mubr.f32.gmra.mrb[0].mxu0 %v3606
      %v3820 = vpop.f32.mrb[0].mxu0
      %v3821 = vadd.f32 0.0, %v3820
      %v3822 = vpop.f32.mrb[0].mxu0
      %3823 = vmatprep.mubr.f32.mxu0 0.0
      %3824 = vmatmul.mubr.f32.gmra.mrb[0].mxu0 %v3609
      %v3825 = vpop.f32.mrb[0].mxu0
      %v3826 = vadd.f32 0.0, %v3825
      %v3827 = vpop.f32.mrb[0].mxu0
      %3828 = vmatprep.mubr.f32.mxu0 0.0
      %3829 = vmatmul.mubr.f32.gmra.mrb[0].mxu0 %v3612
      %v3830 = vpop.f32.mrb[0].mxu0
      %v3831 = vadd.f32 0.0, %v3830
      %v3832 = vpop.f32.mrb[0].mxu0
      %3833 = vmatprep.mubr.f32.mxu0 0.0
      %3834 = vmatmul.mubr.f32.gmra.mrb[0].mxu0 %v3615
      %v3835 = vpop.f32.mrb[0].mxu0
      %v3836 = vadd.f32 0.0, %v3835
      %v3837 = vpop.f32.mrb[0].mxu0
      %3838 = vmatprep.mubr.f32.mxu0 0.0
      %3839 = vmatmul.mubr.f32.gmra.mrb[0].mxu0 %v3618
      %v3840 = vpop.f32.mrb[0].mxu0
      %v3841 = vadd.f32 0.0, %v3840
      %v3842 = vpop.f32.mrb[0].mxu0
      %3843 = vmatprep.mubr.f32.mxu0 0.0
      %3844 = vmatmul.mubr.f32.gmra.mrb[0].mxu0 %v3621
      %v3845 = vpop.f32.mrb[0].mxu0
      %v3846 = vadd.f32 0.0, %v3845
      %v3847 = vpop.f32.mrb[0].mxu0
      %3848 = vmatprep.mubr.f32.mxu0 0.0
      %3849 = vmatmul.mubr.f32.gmra.mrb[0].mxu0 %v3624
      %v3850 = vpop.f32.mrb[0].mxu0
      %v3851 = vadd.f32 0.0, %v3850
      %v3852 = vpop.f32.mrb[0].mxu0
      %3853 = vdwg.mxu0
      %v3854 = vadd.f32 %v3338, %v3696
      %v3855 = vadd.f32 %v3343, %v3701
      %v3856 = vadd.f32 %v3348, %v3706
      %v3857 = vadd.f32 %v3353, %v3711
      %v3858 = vadd.f32 %v3358, %v3716
      %v3859 = vadd.f32 %v3363, %v3721
      %v3860 = vadd.f32 %v3368, %v3726
      %v3861 = vadd.f32 %v3373, %v3731
      %v3862 = vadd.f32 %v3378, %v3736
      %v3863 = vadd.f32 %v3383, %v3741
      %v3864 = vadd.f32 %v3388, %v3746
      %v3865 = vadd.f32 %v3393, %v3751
      %v3866 = vadd.f32 %v3398, %v3756
      %v3867 = vadd.f32 %v3403, %v3761
      %v3868 = vadd.f32 %v3408, %v3766
      %v3869 = vadd.f32 %v3413, %v3771
      %v3870 = vadd.f32 %v3418, %v3776
      %v3871 = vadd.f32 %v3423, %v3781
      %v3872 = vadd.f32 %v3428, %v3786
      %v3873 = vadd.f32 %v3433, %v3791
      %v3874 = vadd.f32 %v3438, %v3796
      %v3875 = vadd.f32 %v3443, %v3801
      %v3876 = vadd.f32 %v3448, %v3806
      %v3877 = vadd.f32 %v3453, %v3811
      %v3878 = vadd.f32 %v3458, %v3816
      %v3879 = vadd.f32 %v3463, %v3821
      %v3880 = vadd.f32 %v3468, %v3826
      %v3881 = vadd.f32 %v3473, %v3831
      %v3882 = vadd.f32 %v3478, %v3836
      %v3883 = vadd.f32 %v3483, %v3841
      %v3884 = vadd.f32 %v3488, %v3846
      %v3885 = vadd.f32 %v3493, %v3851
      %s3886 = scalar_lea.vmem [#allocation2], 48
      %v3887 = vld [vmem:[%s3886] sm:$0xff]
      %v3888 = vld [vmem:[%s3886 + $0x8] sm:$0xff]
      %v3889 = vld [vmem:[%s3886 + $0x18] sm:$0xff]
      %v3890 = vld [vmem:[%s3886 + $0x20] sm:$0xff]
      %v3891 = vld [vmem:[%s3886 + $0x30] sm:$0xff]
      %v3892 = vld [vmem:[%s3886 + $0x38] sm:$0xff]
      %v3893 = vld [vmem:[%s3886 + $0x48] sm:$0xff]
      %v3894 = vld [vmem:[%s3886 + $0x50] sm:$0xff]
      %v3895 = vld [vmem:[%s3886 + $0x60] sm:$0xff]
      %v3896 = vld [vmem:[%s3886 + $0x68] sm:$0xff]
      %v3897 = vld [vmem:[%s3886 + $0x78] sm:$0xff]
      %v3898 = vld [vmem:[%s3886 + $0x80] sm:$0xff]
      %v3899 = vld [vmem:[%s3886 + $0x90] sm:$0xff]
      %v3900 = vld [vmem:[%s3886 + $0x98] sm:$0xff]
      %v3901 = vld [vmem:[%s3886 + $0xa8] sm:$0xff]
      %v3902 = vld [vmem:[%s3886 + $0xb0] sm:$0xff]
      %v3903 = vld [vmem:[%s3886 + $0xc0] sm:$0xff]
      %v3904 = vld [vmem:[%s3886 + $0xc8] sm:$0xff]
      %v3905 = vld [vmem:[%s3886 + $0xd8] sm:$0xff]
      %v3906 = vld [vmem:[%s3886 + $0xe0] sm:$0xff]
      %v3907 = vld [vmem:[%s3886 + $0xf0] sm:$0xff]
      %v3908 = vld [vmem:[%s3886 + $0xf8] sm:$0xff]
      %v3909 = vld [vmem:[%s3886 + $0x108] sm:$0xff]
      %v3910 = vld [vmem:[%s3886 + $0x110] sm:$0xff]
      %v3911 = vld [vmem:[%s3886 + $0x120] sm:$0xff]
      %v3912 = vld [vmem:[%s3886 + $0x128] sm:$0xff]
      %v3913 = vld [vmem:[%s3886 + $0x138] sm:$0xff]
      %v3914 = vld [vmem:[%s3886 + $0x140] sm:$0xff]
      %v3915 = vld [vmem:[%s3886 + $0x150] sm:$0xff]
      %v3916 = vld [vmem:[%s3886 + $0x158] sm:$0xff]
      %v3917 = vld [vmem:[%s3886 + $0x168] sm:$0xff]
      %v3918 = vld [vmem:[%s3886 + $0x170] sm:$0xff]
      %s3919 = scalar_lea.vmem %s2, 36
      %v3920 = vld [vmem:[%s3919] sm:$0xf]
      %v3922 = vsel %vm368, %v3887, 0
      %v3925 = vsel %vm368, %v3888, 0
      %v3928 = vsel %vm368, %v3889, 0
      %v3931 = vsel %vm368, %v3890, 0
      %v3934 = vsel %vm368, %v3891, 0
      %v3937 = vsel %vm368, %v3892, 0
      %v3940 = vsel %vm368, %v3893, 0
      %v3943 = vsel %vm368, %v3894, 0
      %v3946 = vsel %vm368, %v3895, 0
      %v3949 = vsel %vm368, %v3896, 0
      %v3952 = vsel %vm368, %v3897, 0
      %v3955 = vsel %vm368, %v3898, 0
      %v3958 = vsel %vm368, %v3899, 0
      %v3961 = vsel %vm368, %v3900, 0
      %v3964 = vsel %vm368, %v3901, 0
      %v3967 = vsel %vm368, %v3902, 0
      %v3970 = vsel %vm368, %v3903, 0
      %v3973 = vsel %vm368, %v3904, 0
      %v3976 = vsel %vm368, %v3905, 0
      %v3979 = vsel %vm368, %v3906, 0
      %v3982 = vsel %vm368, %v3907, 0
      %v3985 = vsel %vm368, %v3908, 0
      %v3988 = vsel %vm368, %v3909, 0
      %v3991 = vsel %vm368, %v3910, 0
      %v3994 = vsel %vm368, %v3911, 0
      %v3997 = vsel %vm368, %v3912, 0
      %v4000 = vsel %vm368, %v3913, 0
      %v4003 = vsel %vm368, %v3914, 0
      %v4006 = vsel %vm368, %v3915, 0
      %v4009 = vsel %vm368, %v3916, 0
      %v4012 = vsel %vm368, %v3917, 0
      %v4015 = vsel %vm368, %v3918, 0
      %v4018 = vsel %vm595, %v3920, 0
      %4020 = vmatprep.subr.mxu0 0.0
      %4021 = vmatpush1.msra.mxu0 %v4018
      %4022 = vmatprep.subr.mxu0 0.0
      %4023 = vmatpush1.msra.mxu0 0.0
      %4024 = vmatprep.subr.mxu0 0.0
      %4025 = vmatpush1.msra.mxu0 0.0
      %4026 = vmatprep.subr.mxu0 0.0
      %4027 = vmatpush1.msra.mxu0 0.0
      %4028 = vmatprep.subr.mxu0 0.0
      %4029 = vmatpush1.msra.mxu0 0.0
      %4030 = vmatprep.subr.mxu0 0.0
      %4031 = vmatpush1.msra.mxu0 0.0
      %4032 = vmatprep.subr.mxu0 0.0
      %4033 = vmatpush1.msra.mxu0 0.0
      %4034 = vmatprep.subr.mxu0 0.0
      %4035 = vmatpush1.msra.mxu0 0.0
      %4036 = vmatprep.subr.mxu0 0.0
      %4037 = vmatpush1.msra.mxu0 0.0
      %4038 = vmatprep.subr.mxu0 0.0
      %4039 = vmatpush1.msra.mxu0 0.0
      %4040 = vmatprep.subr.mxu0 0.0
      %4041 = vmatpush1.msra.mxu0 0.0
      %4042 = vmatprep.subr.mxu0 0.0
      %4043 = vmatpush1.msra.mxu0 0.0
      %4044 = vmatprep.subr.mxu0 0.0
      %4045 = vmatpush1.msra.mxu0 0.0
      %4046 = vmatprep.subr.mxu0 0.0
      %4047 = vmatpush1.msra.mxu0 0.0
      %4048 = vmatprep.subr.mxu0 0.0
      %4049 = vmatpush1.msra.mxu0 0.0
      %4050 = vmatprep.subr.mxu0 0.0
      %4051 = vmatpush1.msra.mxu0 0.0
      %4052 = vmatprep.subr.mxu0 0.0
      %4053 = vmatpush1.msra.mxu0 0.0
      %4054 = vmatprep.subr.mxu0 0.0
      %4055 = vmatpush1.msra.mxu0 0.0
      %4056 = vmatprep.subr.mxu0 0.0
      %4057 = vmatpush1.msra.mxu0 0.0
      %4058 = vmatprep.subr.mxu0 0.0
      %4059 = vmatpush1.msra.mxu0 0.0
      %4060 = vmatprep.subr.mxu0 0.0
      %4061 = vmatpush1.msra.mxu0 0.0
      %4062 = vmatprep.subr.mxu0 0.0
      %4063 = vmatpush1.msra.mxu0 0.0
      %4064 = vmatprep.subr.mxu0 0.0
      %4065 = vmatpush1.msra.mxu0 0.0
      %4066 = vmatprep.subr.mxu0 0.0
      %4067 = vmatpush1.msra.mxu0 0.0
      %4068 = vmatprep.subr.mxu0 0.0
      %4069 = vmatpush1.msra.mxu0 0.0
      %4070 = vmatprep.subr.mxu0 0.0
      %4071 = vmatpush1.msra.mxu0 0.0
      %4072 = vmatprep.subr.mxu0 0.0
      %4073 = vmatpush1.msra.mxu0 0.0
      %4074 = vmatprep.subr.mxu0 0.0
      %4075 = vmatpush1.msra.mxu0 0.0
      %4076 = vmatprep.subr.mxu0 0.0
      %4077 = vmatpush1.msra.mxu0 0.0
      %4078 = vmatprep.subr.mxu0 0.0
      %4079 = vmatpush1.msra.mxu0 0.0
      %4080 = vmatprep.subr.mxu0 0.0
      %4081 = vmatpush1.msra.mxu0 0.0
      %4082 = vmatprep.subr.mxu0 0.0
      %4083 = vmatpush1.msra.mxu0 0.0
      %4084 = vmatprep.mubr.f32.mxu0 0.0
      %4085 = vmatmul.mubr.f32.gmra.mrb[0].mxu0 %v3922
      %v4086 = vpop.f32.mrb[0].mxu0
      %v4087 = vadd.f32 0.0, %v4086
      %v4088 = vpop.f32.mrb[0].mxu0
      %4089 = vmatprep.mubr.f32.mxu0 0.0
      %4090 = vmatmul.mubr.f32.gmra.mrb[0].mxu0 %v3925
      %v4091 = vpop.f32.mrb[0].mxu0
      %v4092 = vadd.f32 0.0, %v4091
      %v4093 = vpop.f32.mrb[0].mxu0
      %4094 = vmatprep.mubr.f32.mxu0 0.0
      %4095 = vmatmul.mubr.f32.gmra.mrb[0].mxu0 %v3928
      %v4096 = vpop.f32.mrb[0].mxu0
      %v4097 = vadd.f32 0.0, %v4096
      %v4098 = vpop.f32.mrb[0].mxu0
      %4099 = vmatprep.mubr.f32.mxu0 0.0
      %4100 = vmatmul.mubr.f32.gmra.mrb[0].mxu0 %v3931
      %v4101 = vpop.f32.mrb[0].mxu0
      %v4102 = vadd.f32 0.0, %v4101
      %v4103 = vpop.f32.mrb[0].mxu0
      %4104 = vmatprep.mubr.f32.mxu0 0.0
      %4105 = vmatmul.mubr.f32.gmra.mrb[0].mxu0 %v3934
      %v4106 = vpop.f32.mrb[0].mxu0
      %v4107 = vadd.f32 0.0, %v4106
      %v4108 = vpop.f32.mrb[0].mxu0
      %4109 = vmatprep.mubr.f32.mxu0 0.0
      %4110 = vmatmul.mubr.f32.gmra.mrb[0].mxu0 %v3937
      %v4111 = vpop.f32.mrb[0].mxu0
      %v4112 = vadd.f32 0.0, %v4111
      %v4113 = vpop.f32.mrb[0].mxu0
      %4114 = vmatprep.mubr.f32.mxu0 0.0
      %4115 = vmatmul.mubr.f32.gmra.mrb[0].mxu0 %v3940
      %v4116 = vpop.f32.mrb[0].mxu0
      %v4117 = vadd.f32 0.0, %v4116
      %v4118 = vpop.f32.mrb[0].mxu0
      %4119 = vmatprep.mubr.f32.mxu0 0.0
      %4120 = vmatmul.mubr.f32.gmra.mrb[0].mxu0 %v3943
      %v4121 = vpop.f32.mrb[0].mxu0
      %v4122 = vadd.f32 0.0, %v4121
      %v4123 = vpop.f32.mrb[0].mxu0
      %4124 = vmatprep.mubr.f32.mxu0 0.0
      %4125 = vmatmul.mubr.f32.gmra.mrb[0].mxu0 %v3946
      %v4126 = vpop.f32.mrb[0].mxu0
      %v4127 = vadd.f32 0.0, %v4126
      %v4128 = vpop.f32.mrb[0].mxu0
      %4129 = vmatprep.mubr.f32.mxu0 0.0
      %4130 = vmatmul.mubr.f32.gmra.mrb[0].mxu0 %v3949
      %v4131 = vpop.f32.mrb[0].mxu0
      %v4132 = vadd.f32 0.0, %v4131
      %v4133 = vpop.f32.mrb[0].mxu0
      %4134 = vmatprep.mubr.f32.mxu0 0.0
      %4135 = vmatmul.mubr.f32.gmra.mrb[0].mxu0 %v3952
      %v4136 = vpop.f32.mrb[0].mxu0
      %v4137 = vadd.f32 0.0, %v4136
      %v4138 = vpop.f32.mrb[0].mxu0
      %4139 = vmatprep.mubr.f32.mxu0 0.0
      %4140 = vmatmul.mubr.f32.gmra.mrb[0].mxu0 %v3955
      %v4141 = vpop.f32.mrb[0].mxu0
      %v4142 = vadd.f32 0.0, %v4141
      %v4143 = vpop.f32.mrb[0].mxu0
      %4144 = vmatprep.mubr.f32.mxu0 0.0
      %4145 = vmatmul.mubr.f32.gmra.mrb[0].mxu0 %v3958
      %v4146 = vpop.f32.mrb[0].mxu0
      %v4147 = vadd.f32 0.0, %v4146
      %v4148 = vpop.f32.mrb[0].mxu0
      %4149 = vmatprep.mubr.f32.mxu0 0.0
      %4150 = vmatmul.mubr.f32.gmra.mrb[0].mxu0 %v3961
      %v4151 = vpop.f32.mrb[0].mxu0
      %v4152 = vadd.f32 0.0, %v4151
      %v4153 = vpop.f32.mrb[0].mxu0
      %4154 = vmatprep.mubr.f32.mxu0 0.0
      %4155 = vmatmul.mubr.f32.gmra.mrb[0].mxu0 %v3964
      %v4156 = vpop.f32.mrb[0].mxu0
      %v4157 = vadd.f32 0.0, %v4156
      %v4158 = vpop.f32.mrb[0].mxu0
      %4159 = vmatprep.mubr.f32.mxu0 0.0
      %4160 = vmatmul.mubr.f32.gmra.mrb[0].mxu0 %v3967
      %v4161 = vpop.f32.mrb[0].mxu0
      %v4162 = vadd.f32 0.0, %v4161
      %v4163 = vpop.f32.mrb[0].mxu0
      %4164 = vmatprep.mubr.f32.mxu0 0.0
      %4165 = vmatmul.mubr.f32.gmra.mrb[0].mxu0 %v3970
      %v4166 = vpop.f32.mrb[0].mxu0
      %v4167 = vadd.f32 0.0, %v4166
      %v4168 = vpop.f32.mrb[0].mxu0
      %4169 = vmatprep.mubr.f32.mxu0 0.0
      %4170 = vmatmul.mubr.f32.gmra.mrb[0].mxu0 %v3973
      %v4171 = vpop.f32.mrb[0].mxu0
      %v4172 = vadd.f32 0.0, %v4171
      %v4173 = vpop.f32.mrb[0].mxu0
      %4174 = vmatprep.mubr.f32.mxu0 0.0
      %4175 = vmatmul.mubr.f32.gmra.mrb[0].mxu0 %v3976
      %v4176 = vpop.f32.mrb[0].mxu0
      %v4177 = vadd.f32 0.0, %v4176
      %v4178 = vpop.f32.mrb[0].mxu0
      %4179 = vmatprep.mubr.f32.mxu0 0.0
      %4180 = vmatmul.mubr.f32.gmra.mrb[0].mxu0 %v3979
      %v4181 = vpop.f32.mrb[0].mxu0
      %v4182 = vadd.f32 0.0, %v4181
      %v4183 = vpop.f32.mrb[0].mxu0
      %4184 = vmatprep.mubr.f32.mxu0 0.0
      %4185 = vmatmul.mubr.f32.gmra.mrb[0].mxu0 %v3982
      %v4186 = vpop.f32.mrb[0].mxu0
      %v4187 = vadd.f32 0.0, %v4186
      %v4188 = vpop.f32.mrb[0].mxu0
      %4189 = vmatprep.mubr.f32.mxu0 0.0
      %4190 = vmatmul.mubr.f32.gmra.mrb[0].mxu0 %v3985
      %v4191 = vpop.f32.mrb[0].mxu0
      %v4192 = vadd.f32 0.0, %v4191
      %v4193 = vpop.f32.mrb[0].mxu0
      %4194 = vmatprep.mubr.f32.mxu0 0.0
      %4195 = vmatmul.mubr.f32.gmra.mrb[0].mxu0 %v3988
      %v4196 = vpop.f32.mrb[0].mxu0
      %v4197 = vadd.f32 0.0, %v4196
      %v4198 = vpop.f32.mrb[0].mxu0
      %4199 = vmatprep.mubr.f32.mxu0 0.0
      %4200 = vmatmul.mubr.f32.gmra.mrb[0].mxu0 %v3991
      %v4201 = vpop.f32.mrb[0].mxu0
      %v4202 = vadd.f32 0.0, %v4201
      %v4203 = vpop.f32.mrb[0].mxu0
      %4204 = vmatprep.mubr.f32.mxu0 0.0
      %4205 = vmatmul.mubr.f32.gmra.mrb[0].mxu0 %v3994
      %v4206 = vpop.f32.mrb[0].mxu0
      %v4207 = vadd.f32 0.0, %v4206
      %v4208 = vpop.f32.mrb[0].mxu0
      %4209 = vmatprep.mubr.f32.mxu0 0.0
      %4210 = vmatmul.mubr.f32.gmra.mrb[0].mxu0 %v3997
      %v4211 = vpop.f32.mrb[0].mxu0
      %v4212 = vadd.f32 0.0, %v4211
      %v4213 = vpop.f32.mrb[0].mxu0
      %4214 = vmatprep.mubr.f32.mxu0 0.0
      %4215 = vmatmul.mubr.f32.gmra.mrb[0].mxu0 %v4000
      %v4216 = vpop.f32.mrb[0].mxu0
      %v4217 = vadd.f32 0.0, %v4216
      %v4218 = vpop.f32.mrb[0].mxu0
      %4219 = vmatprep.mubr.f32.mxu0 0.0
      %4220 = vmatmul.mubr.f32.gmra.mrb[0].mxu0 %v4003
      %v4221 = vpop.f32.mrb[0].mxu0
      %v4222 = vadd.f32 0.0, %v4221
      %v4223 = vpop.f32.mrb[0].mxu0
      %4224 = vmatprep.mubr.f32.mxu0 0.0
      %4225 = vmatmul.mubr.f32.gmra.mrb[0].mxu0 %v4006
      %v4226 = vpop.f32.mrb[0].mxu0
      %v4227 = vadd.f32 0.0, %v4226
      %v4228 = vpop.f32.mrb[0].mxu0
      %4229 = vmatprep.mubr.f32.mxu0 0.0
      %4230 = vmatmul.mubr.f32.gmra.mrb[0].mxu0 %v4009
      %v4231 = vpop.f32.mrb[0].mxu0
      %v4232 = vadd.f32 0.0, %v4231
      %v4233 = vpop.f32.mrb[0].mxu0
      %4234 = vmatprep.mubr.f32.mxu0 0.0
      %4235 = vmatmul.mubr.f32.gmra.mrb[0].mxu0 %v4012
      %v4236 = vpop.f32.mrb[0].mxu0
      %v4237 = vadd.f32 0.0, %v4236
      %v4238 = vpop.f32.mrb[0].mxu0
      %4239 = vmatprep.mubr.f32.mxu0 0.0
      %4240 = vmatmul.mubr.f32.gmra.mrb[0].mxu0 %v4015
      %v4241 = vpop.f32.mrb[0].mxu0
      %v4242 = vadd.f32 0.0, %v4241
      %v4243 = vpop.f32.mrb[0].mxu0
      %4244 = vdwg.mxu0
      %v4245 = vadd.f32 %v3854, %v4087
      %v4246 = vadd.f32 %v3855, %v4092
      %v4247 = vadd.f32 %v3856, %v4097
      %v4248 = vadd.f32 %v3857, %v4102
      %v4249 = vadd.f32 %v3858, %v4107
      %v4250 = vadd.f32 %v3859, %v4112
      %v4251 = vadd.f32 %v3860, %v4117
      %v4252 = vadd.f32 %v3861, %v4122
      %v4253 = vadd.f32 %v3862, %v4127
      %v4254 = vadd.f32 %v3863, %v4132
      %v4255 = vadd.f32 %v3864, %v4137
      %v4256 = vadd.f32 %v3865, %v4142
      %v4257 = vadd.f32 %v3866, %v4147
      %v4258 = vadd.f32 %v3867, %v4152
      %v4259 = vadd.f32 %v3868, %v4157
      %v4260 = vadd.f32 %v3869, %v4162
      %v4261 = vadd.f32 %v3870, %v4167
      %v4262 = vadd.f32 %v3871, %v4172
      %v4263 = vadd.f32 %v3872, %v4177
      %v4264 = vadd.f32 %v3873, %v4182
      %v4265 = vadd.f32 %v3874, %v4187
      %v4266 = vadd.f32 %v3875, %v4192
      %v4267 = vadd.f32 %v3876, %v4197
      %v4268 = vadd.f32 %v3877, %v4202
      %v4269 = vadd.f32 %v3878, %v4207
      %v4270 = vadd.f32 %v3879, %v4212
      %v4271 = vadd.f32 %v3880, %v4217
      %v4272 = vadd.f32 %v3881, %v4222
      %v4273 = vadd.f32 %v3882, %v4227
      %v4274 = vadd.f32 %v3883, %v4232
      %v4275 = vadd.f32 %v3884, %v4237
      %v4276 = vadd.f32 %v3885, %v4242
      %v4277 = vld [vmem:[%s3886 + $0x1] sm:$0xff]
      %v4278 = vld [vmem:[%s3886 + $0x9] sm:$0xff]
      %v4279 = vld [vmem:[%s3886 + $0x19] sm:$0xff]
      %v4280 = vld [vmem:[%s3886 + $0x21] sm:$0xff]
      %v4281 = vld [vmem:[%s3886 + $0x31] sm:$0xff]
      %v4282 = vld [vmem:[%s3886 + $0x39] sm:$0xff]
      %v4283 = vld [vmem:[%s3886 + $0x49] sm:$0xff]
      %v4284 = vld [vmem:[%s3886 + $0x51] sm:$0xff]
      %v4285 = vld [vmem:[%s3886 + $0x61] sm:$0xff]
      %v4286 = vld [vmem:[%s3886 + $0x69] sm:$0xff]
      %v4287 = vld [vmem:[%s3886 + $0x79] sm:$0xff]
      %v4288 = vld [vmem:[%s3886 + $0x81] sm:$0xff]
      %v4289 = vld [vmem:[%s3886 + $0x91] sm:$0xff]
      %v4290 = vld [vmem:[%s3886 + $0x99] sm:$0xff]
      %v4291 = vld [vmem:[%s3886 + $0xa9] sm:$0xff]
      %v4292 = vld [vmem:[%s3886 + $0xb1] sm:$0xff]
      %v4293 = vld [vmem:[%s3886 + $0xc1] sm:$0xff]
      %v4294 = vld [vmem:[%s3886 + $0xc9] sm:$0xff]
      %v4295 = vld [vmem:[%s3886 + $0xd9] sm:$0xff]
      %v4296 = vld [vmem:[%s3886 + $0xe1] sm:$0xff]
      %v4297 = vld [vmem:[%s3886 + $0xf1] sm:$0xff]
      %v4298 = vld [vmem:[%s3886 + $0xf9] sm:$0xff]
      %v4299 = vld [vmem:[%s3886 + $0x109] sm:$0xff]
      %v4300 = vld [vmem:[%s3886 + $0x111] sm:$0xff]
      %v4301 = vld [vmem:[%s3886 + $0x121] sm:$0xff]
      %v4302 = vld [vmem:[%s3886 + $0x129] sm:$0xff]
      %v4303 = vld [vmem:[%s3886 + $0x139] sm:$0xff]
      %v4304 = vld [vmem:[%s3886 + $0x141] sm:$0xff]
      %v4305 = vld [vmem:[%s3886 + $0x151] sm:$0xff]
      %v4306 = vld [vmem:[%s3886 + $0x159] sm:$0xff]
      %v4307 = vld [vmem:[%s3886 + $0x169] sm:$0xff]
      %v4308 = vld [vmem:[%s3886 + $0x171] sm:$0xff]
      %s4309 = scalar_lea.vmem %s2, 40
      %v4310 = vld [vmem:[%s4309] sm:$0xf]
      %v4312 = vsel %vm368, %v4277, 0
      %v4315 = vsel %vm368, %v4278, 0
      %v4318 = vsel %vm368, %v4279, 0
      %v4321 = vsel %vm368, %v4280, 0
      %v4324 = vsel %vm368, %v4281, 0
      %v4327 = vsel %vm368, %v4282, 0
      %v4330 = vsel %vm368, %v4283, 0
      %v4333 = vsel %vm368, %v4284, 0
      %v4336 = vsel %vm368, %v4285, 0
      %v4339 = vsel %vm368, %v4286, 0
      %v4342 = vsel %vm368, %v4287, 0
      %v4345 = vsel %vm368, %v4288, 0
      %v4348 = vsel %vm368, %v4289, 0
      %v4351 = vsel %vm368, %v4290, 0
      %v4354 = vsel %vm368, %v4291, 0
      %v4357 = vsel %vm368, %v4292, 0
      %v4360 = vsel %vm368, %v4293, 0
      %v4363 = vsel %vm368, %v4294, 0
      %v4366 = vsel %vm368, %v4295, 0
      %v4369 = vsel %vm368, %v4296, 0
      %v4372 = vsel %vm368, %v4297, 0
      %v4375 = vsel %vm368, %v4298, 0
      %v4378 = vsel %vm368, %v4299, 0
      %v4381 = vsel %vm368, %v4300, 0
      %v4384 = vsel %vm368, %v4301, 0
      %v4387 = vsel %vm368, %v4302, 0
      %v4390 = vsel %vm368, %v4303, 0
      %v4393 = vsel %vm368, %v4304, 0
      %v4396 = vsel %vm368, %v4305, 0
      %v4399 = vsel %vm368, %v4306, 0
      %v4402 = vsel %vm368, %v4307, 0
      %v4405 = vsel %vm368, %v4308, 0
      %v4408 = vsel %vm595, %v4310, 0
      %4410 = vmatprep.subr.mxu0 0.0
      %4411 = vmatpush1.msra.mxu0 %v4408
      %4412 = vmatprep.subr.mxu0 0.0
      %4413 = vmatpush1.msra.mxu0 0.0
      %4414 = vmatprep.subr.mxu0 0.0
      %4415 = vmatpush1.msra.mxu0 0.0
      %4416 = vmatprep.subr.mxu0 0.0
      %4417 = vmatpush1.msra.mxu0 0.0
      %4418 = vmatprep.subr.mxu0 0.0
      %4419 = vmatpush1.msra.mxu0 0.0
      %4420 = vmatprep.subr.mxu0 0.0
      %4421 = vmatpush1.msra.mxu0 0.0
      %4422 = vmatprep.subr.mxu0 0.0
      %4423 = vmatpush1.msra.mxu0 0.0
      %4424 = vmatprep.subr.mxu0 0.0
      %4425 = vmatpush1.msra.mxu0 0.0
      %4426 = vmatprep.subr.mxu0 0.0
      %4427 = vmatpush1.msra.mxu0 0.0
      %4428 = vmatprep.subr.mxu0 0.0
      %4429 = vmatpush1.msra.mxu0 0.0
      %4430 = vmatprep.subr.mxu0 0.0
      %4431 = vmatpush1.msra.mxu0 0.0
      %4432 = vmatprep.subr.mxu0 0.0
      %4433 = vmatpush1.msra.mxu0 0.0
      %4434 = vmatprep.subr.mxu0 0.0
      %4435 = vmatpush1.msra.mxu0 0.0
      %4436 = vmatprep.subr.mxu0 0.0
      %4437 = vmatpush1.msra.mxu0 0.0
      %4438 = vmatprep.subr.mxu0 0.0
      %4439 = vmatpush1.msra.mxu0 0.0
      %4440 = vmatprep.subr.mxu0 0.0
      %4441 = vmatpush1.msra.mxu0 0.0
      %4442 = vmatprep.subr.mxu0 0.0
      %4443 = vmatpush1.msra.mxu0 0.0
      %4444 = vmatprep.subr.mxu0 0.0
      %4445 = vmatpush1.msra.mxu0 0.0
      %4446 = vmatprep.subr.mxu0 0.0
      %4447 = vmatpush1.msra.mxu0 0.0
      %4448 = vmatprep.subr.mxu0 0.0
      %4449 = vmatpush1.msra.mxu0 0.0
      %4450 = vmatprep.subr.mxu0 0.0
      %4451 = vmatpush1.msra.mxu0 0.0
      %4452 = vmatprep.subr.mxu0 0.0
      %4453 = vmatpush1.msra.mxu0 0.0
      %4454 = vmatprep.subr.mxu0 0.0
      %4455 = vmatpush1.msra.mxu0 0.0
      %4456 = vmatprep.subr.mxu0 0.0
      %4457 = vmatpush1.msra.mxu0 0.0
      %4458 = vmatprep.subr.mxu0 0.0
      %4459 = vmatpush1.msra.mxu0 0.0
      %4460 = vmatprep.subr.mxu0 0.0
      %4461 = vmatpush1.msra.mxu0 0.0
      %4462 = vmatprep.subr.mxu0 0.0
      %4463 = vmatpush1.msra.mxu0 0.0
      %4464 = vmatprep.subr.mxu0 0.0
      %4465 = vmatpush1.msra.mxu0 0.0
      %4466 = vmatprep.subr.mxu0 0.0
      %4467 = vmatpush1.msra.mxu0 0.0
      %4468 = vmatprep.subr.mxu0 0.0
      %4469 = vmatpush1.msra.mxu0 0.0
      %4470 = vmatprep.subr.mxu0 0.0
      %4471 = vmatpush1.msra.mxu0 0.0
      %4472 = vmatprep.subr.mxu0 0.0
      %4473 = vmatpush1.msra.mxu0 0.0
      %4474 = vmatprep.mubr.f32.mxu0 0.0
      %4475 = vmatmul.mubr.f32.gmra.mrb[0].mxu0 %v4312
      %v4476 = vpop.f32.mrb[0].mxu0
      %v4477 = vadd.f32 0.0, %v4476
      %v4478 = vpop.f32.mrb[0].mxu0
      %4479 = vmatprep.mubr.f32.mxu0 0.0
      %4480 = vmatmul.mubr.f32.gmra.mrb[0].mxu0 %v4315
      %v4481 = vpop.f32.mrb[0].mxu0
      %v4482 = vadd.f32 0.0, %v4481
      %v4483 = vpop.f32.mrb[0].mxu0
      %4484 = vmatprep.mubr.f32.mxu0 0.0
      %4485 = vmatmul.mubr.f32.gmra.mrb[0].mxu0 %v4318
      %v4486 = vpop.f32.mrb[0].mxu0
      %v4487 = vadd.f32 0.0, %v4486
      %v4488 = vpop.f32.mrb[0].mxu0
      %4489 = vmatprep.mubr.f32.mxu0 0.0
      %4490 = vmatmul.mubr.f32.gmra.mrb[0].mxu0 %v4321
      %v4491 = vpop.f32.mrb[0].mxu0
      %v4492 = vadd.f32 0.0, %v4491
      %v4493 = vpop.f32.mrb[0].mxu0
      %4494 = vmatprep.mubr.f32.mxu0 0.0
      %4495 = vmatmul.mubr.f32.gmra.mrb[0].mxu0 %v4324
      %v4496 = vpop.f32.mrb[0].mxu0
      %v4497 = vadd.f32 0.0, %v4496
      %v4498 = vpop.f32.mrb[0].mxu0
      %4499 = vmatprep.mubr.f32.mxu0 0.0
      %4500 = vmatmul.mubr.f32.gmra.mrb[0].mxu0 %v4327
      %v4501 = vpop.f32.mrb[0].mxu0
      %v4502 = vadd.f32 0.0, %v4501
      %v4503 = vpop.f32.mrb[0].mxu0
      %4504 = vmatprep.mubr.f32.mxu0 0.0
      %4505 = vmatmul.mubr.f32.gmra.mrb[0].mxu0 %v4330
      %v4506 = vpop.f32.mrb[0].mxu0
      %v4507 = vadd.f32 0.0, %v4506
      %v4508 = vpop.f32.mrb[0].mxu0
      %4509 = vmatprep.mubr.f32.mxu0 0.0
      %4510 = vmatmul.mubr.f32.gmra.mrb[0].mxu0 %v4333
      %v4511 = vpop.f32.mrb[0].mxu0
      %v4512 = vadd.f32 0.0, %v4511
      %v4513 = vpop.f32.mrb[0].mxu0
      %4514 = vmatprep.mubr.f32.mxu0 0.0
      %4515 = vmatmul.mubr.f32.gmra.mrb[0].mxu0 %v4336
      %v4516 = vpop.f32.mrb[0].mxu0
      %v4517 = vadd.f32 0.0, %v4516
      %v4518 = vpop.f32.mrb[0].mxu0
      %4519 = vmatprep.mubr.f32.mxu0 0.0
      %4520 = vmatmul.mubr.f32.gmra.mrb[0].mxu0 %v4339
      %v4521 = vpop.f32.mrb[0].mxu0
      %v4522 = vadd.f32 0.0, %v4521
      %v4523 = vpop.f32.mrb[0].mxu0
      %4524 = vmatprep.mubr.f32.mxu0 0.0
      %4525 = vmatmul.mubr.f32.gmra.mrb[0].mxu0 %v4342
      %v4526 = vpop.f32.mrb[0].mxu0
      %v4527 = vadd.f32 0.0, %v4526
      %v4528 = vpop.f32.mrb[0].mxu0
      %4529 = vmatprep.mubr.f32.mxu0 0.0
      %4530 = vmatmul.mubr.f32.gmra.mrb[0].mxu0 %v4345
      %v4531 = vpop.f32.mrb[0].mxu0
      %v4532 = vadd.f32 0.0, %v4531
      %v4533 = vpop.f32.mrb[0].mxu0
      %4534 = vmatprep.mubr.f32.mxu0 0.0
      %4535 = vmatmul.mubr.f32.gmra.mrb[0].mxu0 %v4348
      %v4536 = vpop.f32.mrb[0].mxu0
      %v4537 = vadd.f32 0.0, %v4536
      %v4538 = vpop.f32.mrb[0].mxu0
      %4539 = vmatprep.mubr.f32.mxu0 0.0
      %4540 = vmatmul.mubr.f32.gmra.mrb[0].mxu0 %v4351
      %v4541 = vpop.f32.mrb[0].mxu0
      %v4542 = vadd.f32 0.0, %v4541
      %v4543 = vpop.f32.mrb[0].mxu0
      %4544 = vmatprep.mubr.f32.mxu0 0.0
      %4545 = vmatmul.mubr.f32.gmra.mrb[0].mxu0 %v4354
      %v4546 = vpop.f32.mrb[0].mxu0
      %v4547 = vadd.f32 0.0, %v4546
      %v4548 = vpop.f32.mrb[0].mxu0
      %4549 = vmatprep.mubr.f32.mxu0 0.0
      %4550 = vmatmul.mubr.f32.gmra.mrb[0].mxu0 %v4357
      %v4551 = vpop.f32.mrb[0].mxu0
      %v4552 = vadd.f32 0.0, %v4551
      %v4553 = vpop.f32.mrb[0].mxu0
      %4554 = vmatprep.mubr.f32.mxu0 0.0
      %4555 = vmatmul.mubr.f32.gmra.mrb[0].mxu0 %v4360
      %v4556 = vpop.f32.mrb[0].mxu0
      %v4557 = vadd.f32 0.0, %v4556
      %v4558 = vpop.f32.mrb[0].mxu0
      %4559 = vmatprep.mubr.f32.mxu0 0.0
      %4560 = vmatmul.mubr.f32.gmra.mrb[0].mxu0 %v4363
      %v4561 = vpop.f32.mrb[0].mxu0
      %v4562 = vadd.f32 0.0, %v4561
      %v4563 = vpop.f32.mrb[0].mxu0
      %4564 = vmatprep.mubr.f32.mxu0 0.0
      %4565 = vmatmul.mubr.f32.gmra.mrb[0].mxu0 %v4366
      %v4566 = vpop.f32.mrb[0].mxu0
      %v4567 = vadd.f32 0.0, %v4566
      %v4568 = vpop.f32.mrb[0].mxu0
      %4569 = vmatprep.mubr.f32.mxu0 0.0
      %4570 = vmatmul.mubr.f32.gmra.mrb[0].mxu0 %v4369
      %v4571 = vpop.f32.mrb[0].mxu0
      %v4572 = vadd.f32 0.0, %v4571
      %v4573 = vpop.f32.mrb[0].mxu0
      %4574 = vmatprep.mubr.f32.mxu0 0.0
      %4575 = vmatmul.mubr.f32.gmra.mrb[0].mxu0 %v4372
      %v4576 = vpop.f32.mrb[0].mxu0
      %v4577 = vadd.f32 0.0, %v4576
      %v4578 = vpop.f32.mrb[0].mxu0
      %4579 = vmatprep.mubr.f32.mxu0 0.0
      %4580 = vmatmul.mubr.f32.gmra.mrb[0].mxu0 %v4375
      %v4581 = vpop.f32.mrb[0].mxu0
      %v4582 = vadd.f32 0.0, %v4581
      %v4583 = vpop.f32.mrb[0].mxu0
      %4584 = vmatprep.mubr.f32.mxu0 0.0
      %4585 = vmatmul.mubr.f32.gmra.mrb[0].mxu0 %v4378
      %v4586 = vpop.f32.mrb[0].mxu0
      %v4587 = vadd.f32 0.0, %v4586
      %v4588 = vpop.f32.mrb[0].mxu0
      %4589 = vmatprep.mubr.f32.mxu0 0.0
      %4590 = vmatmul.mubr.f32.gmra.mrb[0].mxu0 %v4381
      %v4591 = vpop.f32.mrb[0].mxu0
      %v4592 = vadd.f32 0.0, %v4591
      %v4593 = vpop.f32.mrb[0].mxu0
      %4594 = vmatprep.mubr.f32.mxu0 0.0
      %4595 = vmatmul.mubr.f32.gmra.mrb[0].mxu0 %v4384
      %v4596 = vpop.f32.mrb[0].mxu0
      %v4597 = vadd.f32 0.0, %v4596
      %v4598 = vpop.f32.mrb[0].mxu0
      %4599 = vmatprep.mubr.f32.mxu0 0.0
      %4600 = vmatmul.mubr.f32.gmra.mrb[0].mxu0 %v4387
      %v4601 = vpop.f32.mrb[0].mxu0
      %v4602 = vadd.f32 0.0, %v4601
      %v4603 = vpop.f32.mrb[0].mxu0
      %4604 = vmatprep.mubr.f32.mxu0 0.0
      %4605 = vmatmul.mubr.f32.gmra.mrb[0].mxu0 %v4390
      %v4606 = vpop.f32.mrb[0].mxu0
      %v4607 = vadd.f32 0.0, %v4606
      %v4608 = vpop.f32.mrb[0].mxu0
      %4609 = vmatprep.mubr.f32.mxu0 0.0
      %4610 = vmatmul.mubr.f32.gmra.mrb[0].mxu0 %v4393
      %v4611 = vpop.f32.mrb[0].mxu0
      %v4612 = vadd.f32 0.0, %v4611
      %v4613 = vpop.f32.mrb[0].mxu0
      %4614 = vmatprep.mubr.f32.mxu0 0.0
      %4615 = vmatmul.mubr.f32.gmra.mrb[0].mxu0 %v4396
      %v4616 = vpop.f32.mrb[0].mxu0
      %v4617 = vadd.f32 0.0, %v4616
      %v4618 = vpop.f32.mrb[0].mxu0
      %4619 = vmatprep.mubr.f32.mxu0 0.0
      %4620 = vmatmul.mubr.f32.gmra.mrb[0].mxu0 %v4399
      %v4621 = vpop.f32.mrb[0].mxu0
      %v4622 = vadd.f32 0.0, %v4621
      %v4623 = vpop.f32.mrb[0].mxu0
      %4624 = vmatprep.mubr.f32.mxu0 0.0
      %4625 = vmatmul.mubr.f32.gmra.mrb[0].mxu0 %v4402
      %v4626 = vpop.f32.mrb[0].mxu0
      %v4627 = vadd.f32 0.0, %v4626
      %v4628 = vpop.f32.mrb[0].mxu0
      %4629 = vmatprep.mubr.f32.mxu0 0.0
      %4630 = vmatmul.mubr.f32.gmra.mrb[0].mxu0 %v4405
      %v4631 = vpop.f32.mrb[0].mxu0
      %v4632 = vadd.f32 0.0, %v4631
      %v4633 = vpop.f32.mrb[0].mxu0
      %4634 = vdwg.mxu0
      %v4635 = vadd.f32 %v4245, %v4477
      %v4636 = vadd.f32 %v4246, %v4482
      %v4637 = vadd.f32 %v4247, %v4487
      %v4638 = vadd.f32 %v4248, %v4492
      %v4639 = vadd.f32 %v4249, %v4497
      %v4640 = vadd.f32 %v4250, %v4502
      %v4641 = vadd.f32 %v4251, %v4507
      %v4642 = vadd.f32 %v4252, %v4512
      %v4643 = vadd.f32 %v4253, %v4517
      %v4644 = vadd.f32 %v4254, %v4522
      %v4645 = vadd.f32 %v4255, %v4527
      %v4646 = vadd.f32 %v4256, %v4532
      %v4647 = vadd.f32 %v4257, %v4537
      %v4648 = vadd.f32 %v4258, %v4542
      %v4649 = vadd.f32 %v4259, %v4547
      %v4650 = vadd.f32 %v4260, %v4552
      %v4651 = vadd.f32 %v4261, %v4557
      %v4652 = vadd.f32 %v4262, %v4562
      %v4653 = vadd.f32 %v4263, %v4567
      %v4654 = vadd.f32 %v4264, %v4572
      %v4655 = vadd.f32 %v4265, %v4577
      %v4656 = vadd.f32 %v4266, %v4582
      %v4657 = vadd.f32 %v4267, %v4587
      %v4658 = vadd.f32 %v4268, %v4592
      %v4659 = vadd.f32 %v4269, %v4597
      %v4660 = vadd.f32 %v4270, %v4602
      %v4661 = vadd.f32 %v4271, %v4607
      %v4662 = vadd.f32 %v4272, %v4612
      %v4663 = vadd.f32 %v4273, %v4617
      %v4664 = vadd.f32 %v4274, %v4622
      %v4665 = vadd.f32 %v4275, %v4627
      %v4666 = vadd.f32 %v4276, %v4632
      %v4667 = vld [vmem:[%s3886 + $0x2] sm:$0xff]
      %v4668 = vld [vmem:[%s3886 + $0xa] sm:$0xff]
      %v4669 = vld [vmem:[%s3886 + $0x1a] sm:$0xff]
      %v4670 = vld [vmem:[%s3886 + $0x22] sm:$0xff]
      %v4671 = vld [vmem:[%s3886 + $0x32] sm:$0xff]
      %v4672 = vld [vmem:[%s3886 + $0x3a] sm:$0xff]
      %v4673 = vld [vmem:[%s3886 + $0x4a] sm:$0xff]
      %v4674 = vld [vmem:[%s3886 + $0x52] sm:$0xff]
      %v4675 = vld [vmem:[%s3886 + $0x62] sm:$0xff]
      %v4676 = vld [vmem:[%s3886 + $0x6a] sm:$0xff]
      %v4677 = vld [vmem:[%s3886 + $0x7a] sm:$0xff]
      %v4678 = vld [vmem:[%s3886 + $0x82] sm:$0xff]
      %v4679 = vld [vmem:[%s3886 + $0x92] sm:$0xff]
      %v4680 = vld [vmem:[%s3886 + $0x9a] sm:$0xff]
      %v4681 = vld [vmem:[%s3886 + $0xaa] sm:$0xff]
      %v4682 = vld [vmem:[%s3886 + $0xb2] sm:$0xff]
      %v4683 = vld [vmem:[%s3886 + $0xc2] sm:$0xff]
      %v4684 = vld [vmem:[%s3886 + $0xca] sm:$0xff]
      %v4685 = vld [vmem:[%s3886 + $0xda] sm:$0xff]
      %v4686 = vld [vmem:[%s3886 + $0xe2] sm:$0xff]
      %v4687 = vld [vmem:[%s3886 + $0xf2] sm:$0xff]
      %v4688 = vld [vmem:[%s3886 + $0xfa] sm:$0xff]
      %v4689 = vld [vmem:[%s3886 + $0x10a] sm:$0xff]
      %v4690 = vld [vmem:[%s3886 + $0x112] sm:$0xff]
      %v4691 = vld [vmem:[%s3886 + $0x122] sm:$0xff]
      %v4692 = vld [vmem:[%s3886 + $0x12a] sm:$0xff]
      %v4693 = vld [vmem:[%s3886 + $0x13a] sm:$0xff]
      %v4694 = vld [vmem:[%s3886 + $0x142] sm:$0xff]
      %v4695 = vld [vmem:[%s3886 + $0x152] sm:$0xff]
      %v4696 = vld [vmem:[%s3886 + $0x15a] sm:$0xff]
      %v4697 = vld [vmem:[%s3886 + $0x16a] sm:$0xff]
      %v4698 = vld [vmem:[%s3886 + $0x172] sm:$0xff]
      %s4699 = scalar_lea.vmem %s2, 44
      %v4700 = vld [vmem:[%s4699] sm:$0xf]
      %v4702 = vsel %vm368, %v4667, 0
      %v4705 = vsel %vm368, %v4668, 0
      %v4708 = vsel %vm368, %v4669, 0
      %v4711 = vsel %vm368, %v4670, 0
      %v4714 = vsel %vm368, %v4671, 0
      %v4717 = vsel %vm368, %v4672, 0
      %v4720 = vsel %vm368, %v4673, 0
      %v4723 = vsel %vm368, %v4674, 0
      %v4726 = vsel %vm368, %v4675, 0
      %v4729 = vsel %vm368, %v4676, 0
      %v4732 = vsel %vm368, %v4677, 0
      %v4735 = vsel %vm368, %v4678, 0
      %v4738 = vsel %vm368, %v4679, 0
      %v4741 = vsel %vm368, %v4680, 0
      %v4744 = vsel %vm368, %v4681, 0
      %v4747 = vsel %vm368, %v4682, 0
      %v4750 = vsel %vm368, %v4683, 0
      %v4753 = vsel %vm368, %v4684, 0
      %v4756 = vsel %vm368, %v4685, 0
      %v4759 = vsel %vm368, %v4686, 0
      %v4762 = vsel %vm368, %v4687, 0
      %v4765 = vsel %vm368, %v4688, 0
      %v4768 = vsel %vm368, %v4689, 0
      %v4771 = vsel %vm368, %v4690, 0
      %v4774 = vsel %vm368, %v4691, 0
      %v4777 = vsel %vm368, %v4692, 0
      %v4780 = vsel %vm368, %v4693, 0
      %v4783 = vsel %vm368, %v4694, 0
      %v4786 = vsel %vm368, %v4695, 0
      %v4789 = vsel %vm368, %v4696, 0
      %v4792 = vsel %vm368, %v4697, 0
      %v4795 = vsel %vm368, %v4698, 0
      %v4798 = vsel %vm595, %v4700, 0
      %4800 = vmatprep.subr.mxu0 0.0
      %4801 = vmatpush1.msra.mxu0 %v4798
      %4802 = vmatprep.subr.mxu0 0.0
      %4803 = vmatpush1.msra.mxu0 0.0
      %4804 = vmatprep.subr.mxu0 0.0
      %4805 = vmatpush1.msra.mxu0 0.0
      %4806 = vmatprep.subr.mxu0 0.0
      %4807 = vmatpush1.msra.mxu0 0.0
      %4808 = vmatprep.subr.mxu0 0.0
      %4809 = vmatpush1.msra.mxu0 0.0
      %4810 = vmatprep.subr.mxu0 0.0
      %4811 = vmatpush1.msra.mxu0 0.0
      %4812 = vmatprep.subr.mxu0 0.0
      %4813 = vmatpush1.msra.mxu0 0.0
      %4814 = vmatprep.subr.mxu0 0.0
      %4815 = vmatpush1.msra.mxu0 0.0
      %4816 = vmatprep.subr.mxu0 0.0
      %4817 = vmatpush1.msra.mxu0 0.0
      %4818 = vmatprep.subr.mxu0 0.0
      %4819 = vmatpush1.msra.mxu0 0.0
      %4820 = vmatprep.subr.mxu0 0.0
      %4821 = vmatpush1.msra.mxu0 0.0
      %4822 = vmatprep.subr.mxu0 0.0
      %4823 = vmatpush1.msra.mxu0 0.0
      %4824 = vmatprep.subr.mxu0 0.0
      %4825 = vmatpush1.msra.mxu0 0.0
      %4826 = vmatprep.subr.mxu0 0.0
      %4827 = vmatpush1.msra.mxu0 0.0
      %4828 = vmatprep.subr.mxu0 0.0
      %4829 = vmatpush1.msra.mxu0 0.0
      %4830 = vmatprep.subr.mxu0 0.0
      %4831 = vmatpush1.msra.mxu0 0.0
      %4832 = vmatprep.subr.mxu0 0.0
      %4833 = vmatpush1.msra.mxu0 0.0
      %4834 = vmatprep.subr.mxu0 0.0
      %4835 = vmatpush1.msra.mxu0 0.0
      %4836 = vmatprep.subr.mxu0 0.0
      %4837 = vmatpush1.msra.mxu0 0.0
      %4838 = vmatprep.subr.mxu0 0.0
      %4839 = vmatpush1.msra.mxu0 0.0
      %4840 = vmatprep.subr.mxu0 0.0
      %4841 = vmatpush1.msra.mxu0 0.0
      %4842 = vmatprep.subr.mxu0 0.0
      %4843 = vmatpush1.msra.mxu0 0.0
      %4844 = vmatprep.subr.mxu0 0.0
      %4845 = vmatpush1.msra.mxu0 0.0
      %4846 = vmatprep.subr.mxu0 0.0
      %4847 = vmatpush1.msra.mxu0 0.0
      %4848 = vmatprep.subr.mxu0 0.0
      %4849 = vmatpush1.msra.mxu0 0.0
      %4850 = vmatprep.subr.mxu0 0.0
      %4851 = vmatpush1.msra.mxu0 0.0
      %4852 = vmatprep.subr.mxu0 0.0
      %4853 = vmatpush1.msra.mxu0 0.0
      %4854 = vmatprep.subr.mxu0 0.0
      %4855 = vmatpush1.msra.mxu0 0.0
      %4856 = vmatprep.subr.mxu0 0.0
      %4857 = vmatpush1.msra.mxu0 0.0
      %4858 = vmatprep.subr.mxu0 0.0
      %4859 = vmatpush1.msra.mxu0 0.0
      %4860 = vmatprep.subr.mxu0 0.0
      %4861 = vmatpush1.msra.mxu0 0.0
      %4862 = vmatprep.subr.mxu0 0.0
      %4863 = vmatpush1.msra.mxu0 0.0
      %4864 = vmatprep.mubr.f32.mxu0 0.0
      %4865 = vmatmul.mubr.f32.gmra.mrb[0].mxu0 %v4702
      %v4866 = vpop.f32.mrb[0].mxu0
      %v4867 = vadd.f32 0.0, %v4866
      %v4868 = vpop.f32.mrb[0].mxu0
      %4869 = vmatprep.mubr.f32.mxu0 0.0
      %4870 = vmatmul.mubr.f32.gmra.mrb[0].mxu0 %v4705
      %v4871 = vpop.f32.mrb[0].mxu0
      %v4872 = vadd.f32 0.0, %v4871
      %v4873 = vpop.f32.mrb[0].mxu0
      %4874 = vmatprep.mubr.f32.mxu0 0.0
      %4875 = vmatmul.mubr.f32.gmra.mrb[0].mxu0 %v4708
      %v4876 = vpop.f32.mrb[0].mxu0
      %v4877 = vadd.f32 0.0, %v4876
      %v4878 = vpop.f32.mrb[0].mxu0
      %4879 = vmatprep.mubr.f32.mxu0 0.0
      %4880 = vmatmul.mubr.f32.gmra.mrb[0].mxu0 %v4711
      %v4881 = vpop.f32.mrb[0].mxu0
      %v4882 = vadd.f32 0.0, %v4881
      %v4883 = vpop.f32.mrb[0].mxu0
      %4884 = vmatprep.mubr.f32.mxu0 0.0
      %4885 = vmatmul.mubr.f32.gmra.mrb[0].mxu0 %v4714
      %v4886 = vpop.f32.mrb[0].mxu0
      %v4887 = vadd.f32 0.0, %v4886
      %v4888 = vpop.f32.mrb[0].mxu0
      %4889 = vmatprep.mubr.f32.mxu0 0.0
      %4890 = vmatmul.mubr.f32.gmra.mrb[0].mxu0 %v4717
      %v4891 = vpop.f32.mrb[0].mxu0
      %v4892 = vadd.f32 0.0, %v4891
      %v4893 = vpop.f32.mrb[0].mxu0
      %4894 = vmatprep.mubr.f32.mxu0 0.0
      %4895 = vmatmul.mubr.f32.gmra.mrb[0].mxu0 %v4720
      %v4896 = vpop.f32.mrb[0].mxu0
      %v4897 = vadd.f32 0.0, %v4896
      %v4898 = vpop.f32.mrb[0].mxu0
      %4899 = vmatprep.mubr.f32.mxu0 0.0
      %4900 = vmatmul.mubr.f32.gmra.mrb[0].mxu0 %v4723
      %v4901 = vpop.f32.mrb[0].mxu0
      %v4902 = vadd.f32 0.0, %v4901
      %v4903 = vpop.f32.mrb[0].mxu0
      %4904 = vmatprep.mubr.f32.mxu0 0.0
      %4905 = vmatmul.mubr.f32.gmra.mrb[0].mxu0 %v4726
      %v4906 = vpop.f32.mrb[0].mxu0
      %v4907 = vadd.f32 0.0, %v4906
      %v4908 = vpop.f32.mrb[0].mxu0
      %4909 = vmatprep.mubr.f32.mxu0 0.0
      %4910 = vmatmul.mubr.f32.gmra.mrb[0].mxu0 %v4729
      %v4911 = vpop.f32.mrb[0].mxu0
      %v4912 = vadd.f32 0.0, %v4911
      %v4913 = vpop.f32.mrb[0].mxu0
      %4914 = vmatprep.mubr.f32.mxu0 0.0
      %4915 = vmatmul.mubr.f32.gmra.mrb[0].mxu0 %v4732
      %v4916 = vpop.f32.mrb[0].mxu0
      %v4917 = vadd.f32 0.0, %v4916
      %v4918 = vpop.f32.mrb[0].mxu0
      %4919 = vmatprep.mubr.f32.mxu0 0.0
      %4920 = vmatmul.mubr.f32.gmra.mrb[0].mxu0 %v4735
      %v4921 = vpop.f32.mrb[0].mxu0
      %v4922 = vadd.f32 0.0, %v4921
      %v4923 = vpop.f32.mrb[0].mxu0
      %4924 = vmatprep.mubr.f32.mxu0 0.0
      %4925 = vmatmul.mubr.f32.gmra.mrb[0].mxu0 %v4738
      %v4926 = vpop.f32.mrb[0].mxu0
      %v4927 = vadd.f32 0.0, %v4926
      %v4928 = vpop.f32.mrb[0].mxu0
      %4929 = vmatprep.mubr.f32.mxu0 0.0
      %4930 = vmatmul.mubr.f32.gmra.mrb[0].mxu0 %v4741
      %v4931 = vpop.f32.mrb[0].mxu0
      %v4932 = vadd.f32 0.0, %v4931
      %v4933 = vpop.f32.mrb[0].mxu0
      %4934 = vmatprep.mubr.f32.mxu0 0.0
      %4935 = vmatmul.mubr.f32.gmra.mrb[0].mxu0 %v4744
      %v4936 = vpop.f32.mrb[0].mxu0
      %v4937 = vadd.f32 0.0, %v4936
      %v4938 = vpop.f32.mrb[0].mxu0
      %4939 = vmatprep.mubr.f32.mxu0 0.0
      %4940 = vmatmul.mubr.f32.gmra.mrb[0].mxu0 %v4747
      %v4941 = vpop.f32.mrb[0].mxu0
      %v4942 = vadd.f32 0.0, %v4941
      %v4943 = vpop.f32.mrb[0].mxu0
      %4944 = vmatprep.mubr.f32.mxu0 0.0
      %4945 = vmatmul.mubr.f32.gmra.mrb[0].mxu0 %v4750
      %v4946 = vpop.f32.mrb[0].mxu0
      %v4947 = vadd.f32 0.0, %v4946
      %v4948 = vpop.f32.mrb[0].mxu0
      %4949 = vmatprep.mubr.f32.mxu0 0.0
      %4950 = vmatmul.mubr.f32.gmra.mrb[0].mxu0 %v4753
      %v4951 = vpop.f32.mrb[0].mxu0
      %v4952 = vadd.f32 0.0, %v4951
      %v4953 = vpop.f32.mrb[0].mxu0
      %4954 = vmatprep.mubr.f32.mxu0 0.0
      %4955 = vmatmul.mubr.f32.gmra.mrb[0].mxu0 %v4756
      %v4956 = vpop.f32.mrb[0].mxu0
      %v4957 = vadd.f32 0.0, %v4956
      %v4958 = vpop.f32.mrb[0].mxu0
      %4959 = vmatprep.mubr.f32.mxu0 0.0
      %4960 = vmatmul.mubr.f32.gmra.mrb[0].mxu0 %v4759
      %v4961 = vpop.f32.mrb[0].mxu0
      %v4962 = vadd.f32 0.0, %v4961
      %v4963 = vpop.f32.mrb[0].mxu0
      %4964 = vmatprep.mubr.f32.mxu0 0.0
      %4965 = vmatmul.mubr.f32.gmra.mrb[0].mxu0 %v4762
      %v4966 = vpop.f32.mrb[0].mxu0
      %v4967 = vadd.f32 0.0, %v4966
      %v4968 = vpop.f32.mrb[0].mxu0
      %4969 = vmatprep.mubr.f32.mxu0 0.0
      %4970 = vmatmul.mubr.f32.gmra.mrb[0].mxu0 %v4765
      %v4971 = vpop.f32.mrb[0].mxu0
      %v4972 = vadd.f32 0.0, %v4971
      %v4973 = vpop.f32.mrb[0].mxu0
      %4974 = vmatprep.mubr.f32.mxu0 0.0
      %4975 = vmatmul.mubr.f32.gmra.mrb[0].mxu0 %v4768
      %v4976 = vpop.f32.mrb[0].mxu0
      %v4977 = vadd.f32 0.0, %v4976
      %v4978 = vpop.f32.mrb[0].mxu0
      %4979 = vmatprep.mubr.f32.mxu0 0.0
      %4980 = vmatmul.mubr.f32.gmra.mrb[0].mxu0 %v4771
      %v4981 = vpop.f32.mrb[0].mxu0
      %v4982 = vadd.f32 0.0, %v4981
      %v4983 = vpop.f32.mrb[0].mxu0
      %4984 = vmatprep.mubr.f32.mxu0 0.0
      %4985 = vmatmul.mubr.f32.gmra.mrb[0].mxu0 %v4774
      %v4986 = vpop.f32.mrb[0].mxu0
      %v4987 = vadd.f32 0.0, %v4986
      %v4988 = vpop.f32.mrb[0].mxu0
      %4989 = vmatprep.mubr.f32.mxu0 0.0
      %4990 = vmatmul.mubr.f32.gmra.mrb[0].mxu0 %v4777
      %v4991 = vpop.f32.mrb[0].mxu0
      %v4992 = vadd.f32 0.0, %v4991
      %v4993 = vpop.f32.mrb[0].mxu0
      %4994 = vmatprep.mubr.f32.mxu0 0.0
      %4995 = vmatmul.mubr.f32.gmra.mrb[0].mxu0 %v4780
      %v4996 = vpop.f32.mrb[0].mxu0
      %v4997 = vadd.f32 0.0, %v4996
      %v4998 = vpop.f32.mrb[0].mxu0
      %4999 = vmatprep.mubr.f32.mxu0 0.0
      %5000 = vmatmul.mubr.f32.gmra.mrb[0].mxu0 %v4783
      %v5001 = vpop.f32.mrb[0].mxu0
      %v5002 = vadd.f32 0.0, %v5001
      %v5003 = vpop.f32.mrb[0].mxu0
      %5004 = vmatprep.mubr.f32.mxu0 0.0
      %5005 = vmatmul.mubr.f32.gmra.mrb[0].mxu0 %v4786
      %v5006 = vpop.f32.mrb[0].mxu0
      %v5007 = vadd.f32 0.0, %v5006
      %v5008 = vpop.f32.mrb[0].mxu0
      %5009 = vmatprep.mubr.f32.mxu0 0.0
      %5010 = vmatmul.mubr.f32.gmra.mrb[0].mxu0 %v4789
      %v5011 = vpop.f32.mrb[0].mxu0
      %v5012 = vadd.f32 0.0, %v5011
      %v5013 = vpop.f32.mrb[0].mxu0
      %5014 = vmatprep.mubr.f32.mxu0 0.0
      %5015 = vmatmul.mubr.f32.gmra.mrb[0].mxu0 %v4792
      %v5016 = vpop.f32.mrb[0].mxu0
      %v5017 = vadd.f32 0.0, %v5016
      %v5018 = vpop.f32.mrb[0].mxu0
      %5019 = vmatprep.mubr.f32.mxu0 0.0
      %5020 = vmatmul.mubr.f32.gmra.mrb[0].mxu0 %v4795
      %v5021 = vpop.f32.mrb[0].mxu0
      %v5022 = vadd.f32 0.0, %v5021
      %v5023 = vpop.f32.mrb[0].mxu0
      %5024 = vdwg.mxu0
      %v5025 = vadd.f32 %v4635, %v4867
      %v5026 = vadd.f32 %v4636, %v4872
      %v5027 = vadd.f32 %v4637, %v4877
      %v5028 = vadd.f32 %v4638, %v4882
      %v5029 = vadd.f32 %v4639, %v4887
      %v5030 = vadd.f32 %v4640, %v4892
      %v5031 = vadd.f32 %v4641, %v4897
      %v5032 = vadd.f32 %v4642, %v4902
      %v5033 = vadd.f32 %v4643, %v4907
      %v5034 = vadd.f32 %v4644, %v4912
      %v5035 = vadd.f32 %v4645, %v4917
      %v5036 = vadd.f32 %v4646, %v4922
      %v5037 = vadd.f32 %v4647, %v4927
      %v5038 = vadd.f32 %v4648, %v4932
      %v5039 = vadd.f32 %v4649, %v4937
      %v5040 = vadd.f32 %v4650, %v4942
      %v5041 = vadd.f32 %v4651, %v4947
      %v5042 = vadd.f32 %v4652, %v4952
      %v5043 = vadd.f32 %v4653, %v4957
      %v5044 = vadd.f32 %v4654, %v4962
      %v5045 = vadd.f32 %v4655, %v4967
      %v5046 = vadd.f32 %v4656, %v4972
      %v5047 = vadd.f32 %v4657, %v4977
      %v5048 = vadd.f32 %v4658, %v4982
      %v5049 = vadd.f32 %v4659, %v4987
      %v5050 = vadd.f32 %v4660, %v4992
      %v5051 = vadd.f32 %v4661, %v4997
      %v5052 = vadd.f32 %v4662, %v5002
      %v5053 = vadd.f32 %v4663, %v5007
      %v5054 = vadd.f32 %v4664, %v5012
      %v5055 = vadd.f32 %v4665, %v5017
      %v5056 = vadd.f32 %v4666, %v5022
      %v5057 = vadd.f32 %v5025, %v2713
      %v5058 = vadd.f32 %v5026, %v2713
      %v5059 = vadd.f32 %v5027, %v2713
      %v5060 = vadd.f32 %v5028, %v2713
      %v5061 = vadd.f32 %v5029, %v2713
      %v5062 = vadd.f32 %v5030, %v2713
      %v5063 = vadd.f32 %v5031, %v2713
      %v5064 = vadd.f32 %v5032, %v2713
      %v5065 = vadd.f32 %v5033, %v2713
      %v5066 = vadd.f32 %v5034, %v2713
      %v5067 = vadd.f32 %v5035, %v2713
      %v5068 = vadd.f32 %v5036, %v2713
      %v5069 = vadd.f32 %v5037, %v2713
      %v5070 = vadd.f32 %v5038, %v2713
      %v5071 = vadd.f32 %v5039, %v2713
      %v5072 = vadd.f32 %v5040, %v2713
      %v5073 = vadd.f32 %v5041, %v2713
      %v5074 = vadd.f32 %v5042, %v2713
      %v5075 = vadd.f32 %v5043, %v2713
      %v5076 = vadd.f32 %v5044, %v2713
      %v5077 = vadd.f32 %v5045, %v2713
      %v5078 = vadd.f32 %v5046, %v2713
      %v5079 = vadd.f32 %v5047, %v2713
      %v5080 = vadd.f32 %v5048, %v2713
      %v5081 = vadd.f32 %v5049, %v2713
      %v5082 = vadd.f32 %v5050, %v2713
      %v5083 = vadd.f32 %v5051, %v2713
      %v5084 = vadd.f32 %v5052, %v2713
      %v5085 = vadd.f32 %v5053, %v2713
      %v5086 = vadd.f32 %v5054, %v2713
      %v5087 = vadd.f32 %v5055, %v2713
      %v5088 = vadd.f32 %v5056, %v2713
      %s5089 = scalar_lea.vmem %s318, 16
      %5090 = vst.msk [vmem:[%s5089] sm:$0xff] %vm2747, %v5057
      %5091 = vst.msk [vmem:[%s5089 + $0x8] sm:$0xff] %vm2747, %v5058
      %5092 = vst.msk [vmem:[%s5089 + $0x20] sm:$0xff] %vm2747, %v5059
      %5093 = vst.msk [vmem:[%s5089 + $0x28] sm:$0xff] %vm2747, %v5060
      %5094 = vst.msk [vmem:[%s5089 + $0x40] sm:$0xff] %vm2747, %v5061
      %5095 = vst.msk [vmem:[%s5089 + $0x48] sm:$0xff] %vm2747, %v5062
      %5096 = vst.msk [vmem:[%s5089 + $0x60] sm:$0xff] %vm2747, %v5063
      %5097 = vst.msk [vmem:[%s5089 + $0x68] sm:$0xff] %vm2747, %v5064
      %5098 = vst.msk [vmem:[%s5089 + $0x80] sm:$0xff] %vm2747, %v5065
      %5099 = vst.msk [vmem:[%s5089 + $0x88] sm:$0xff] %vm2747, %v5066
      %5100 = vst.msk [vmem:[%s5089 + $0xa0] sm:$0xff] %vm2747, %v5067
      %5101 = vst.msk [vmem:[%s5089 + $0xa8] sm:$0xff] %vm2747, %v5068
      %5102 = vst.msk [vmem:[%s5089 + $0xc0] sm:$0xff] %vm2747, %v5069
      %5103 = vst.msk [vmem:[%s5089 + $0xc8] sm:$0xff] %vm2747, %v5070
      %5104 = vst.msk [vmem:[%s5089 + $0xe0] sm:$0xff] %vm2747, %v5071
      %5105 = vst.msk [vmem:[%s5089 + $0xe8] sm:$0xff] %vm2747, %v5072
      %5106 = vst.msk [vmem:[%s5089 + $0x100] sm:$0xff] %vm2747, %v5073
      %5107 = vst.msk [vmem:[%s5089 + $0x108] sm:$0xff] %vm2747, %v5074
      %5108 = vst.msk [vmem:[%s5089 + $0x120] sm:$0xff] %vm2747, %v5075
      %5109 = vst.msk [vmem:[%s5089 + $0x128] sm:$0xff] %vm2747, %v5076
      %5110 = vst.msk [vmem:[%s5089 + $0x140] sm:$0xff] %vm2747, %v5077
      %5111 = vst.msk [vmem:[%s5089 + $0x148] sm:$0xff] %vm2747, %v5078
      %5112 = vst.msk [vmem:[%s5089 + $0x160] sm:$0xff] %vm2747, %v5079
      %5113 = vst.msk [vmem:[%s5089 + $0x168] sm:$0xff] %vm2747, %v5080
      %5114 = vst.msk [vmem:[%s5089 + $0x180] sm:$0xff] %vm2747, %v5081
      %5115 = vst.msk [vmem:[%s5089 + $0x188] sm:$0xff] %vm2747, %v5082
      %5116 = vst.msk [vmem:[%s5089 + $0x1a0] sm:$0xff] %vm2747, %v5083
      %5117 = vst.msk [vmem:[%s5089 + $0x1a8] sm:$0xff] %vm2747, %v5084
      %5118 = vst.msk [vmem:[%s5089 + $0x1c0] sm:$0xff] %vm2747, %v5085
      %5119 = vst.msk [vmem:[%s5089 + $0x1c8] sm:$0xff] %vm2747, %v5086
      %5120 = vst.msk [vmem:[%s5089 + $0x1e0] sm:$0xff] %vm2747, %v5087
      %5121 = vst.msk [vmem:[%s5089 + $0x1e8] sm:$0xff] %vm2747, %v5088
      %s5122 = smul.u32 16, %s20
      %p5123 = scmp.lt.s32.totalorder %s19, 1
      %s5124 = scalar_select %p5123, %s19, 1
      %p5125 = scmp.lt.s32.totalorder %s5122, 15
      %s5126 = scalar_select %p5125, %s5122, 15
      %s5127 = smul.addr %s5126, 4
      %s5128 = smul.addr %s5124, 64
      %s5129 = sadd.s32 %s5127, %s5128
      %s5130 = smul.addr %s5129, 8
      %s5131 = scalar_lea.vmem %s4, %s5130
      // Predicated region
      $region37: #{tpu_custom_call.1} parent=35 // pred_check
        %p5132 = pneg %p149
      $region38: #{tpu_custom_call.1} parent=35 // pred_check_branch
        %5134 = sbr.rel (%p5132) target = $region40
      $region39: #{tpu_custom_call.1} parent=35 // pred_region
        %s5135 = smul.u32 16, %s20
      $region40: #{tpu_custom_call.1} parent=35 // pred_fallthru
        _
    $region36: #{tpu_custom_call.1} parent=5 // pred_fallthru
      _
    %p5136 = scmp.le.s32.totalorder 2, %s10
    // Predicated region
    $region41: #{tpu_custom_call.1} parent=5 // pred_check
      %p5137 = pneg %p5136
    $region42: #{tpu_custom_call.1} parent=5 // pred_check_branch
      %5139 = sbr.rel (%p5137) target = $region44
    $region43: #{tpu_custom_call.1} parent=5 // pred_region
      %s5140 = ssub.s32 %s10, 2
      // Predicated region
      $region45: #{tpu_custom_call.1} parent=43 // pred_check
        %p5141 = pneg %p155
      $region46: #{tpu_custom_call.1} parent=43 // pred_check_branch
        %5143 = sbr.rel (%p5141) target = $region48
      $region47: #{tpu_custom_call.1} parent=43 // pred_region
        %s5144 = smul.u32 16, %s22
        %p5145 = scmp.lt.s32.totalorder %s21, 1
        %s5146 = scalar_select %p5145, %s21, 1
        %p5147 = scmp.lt.s32.totalorder %s5144, 15
        %s5148 = scalar_select %p5147, %s5144, 15
        %s5149 = smul.addr %s5148, 4
        %s5150 = smul.addr %s5146, 64
        %s5151 = sadd.s32 %s5149, %s5150
        %s5152 = smul.addr %s5151, 8
        %s5153 = scalar_lea.vmem %s4, %s5152
      $region48: #{tpu_custom_call.1} parent=43 // pred_fallthru
        _
    $region44: #{tpu_custom_call.1} parent=5 // pred_fallthru
      _
  $region6: #{tpu_custom_call.1} parent=0 // loop_footer
    %s14 = sadd.s32 1, %s10
  $region7: #{tpu_custom_call.1} parent=0 // loop_footer_branch
    %9 = sbr.rel target = $region3
  $region8: #{tpu_custom_call.1} parent=0 // loop_exit
    _

</llo_original>
